<compile_context>
chip_gen: v6e
topology: v6e:2x2x1
jax: 0.10.0
libtpu: 0.0.40
codegen_flags: <defaults>
</compile_context>

<pallas_src>
import functools

import jax
import jax.numpy as jnp
from jax import lax
from jax.experimental import pallas as pl
from jax.experimental.pallas import tpu as pltpu


def _round_up(x, m):
    return ((x + m - 1) // m) * m


def _conv_in_relu_kernel(x_ref, w_ref, m_ref, o_ref, *, kh, kw, wp, inv_count, eps):
    """Fused Conv2d(kxk, stride 1) + InstanceNorm2d(affine=False) + ReLU, one sample.

    x_ref: (1, Lp, Cin)      reflect-padded input, flattened row-major over (Hp, Wp),
                             channels minor, zero tail pad so every tap slice fits.
    w_ref: (kh*kw, Cout, Cin) tap-major weights.
    m_ref: (1, Lw)           1.0 for valid output columns, 0.0 for junk columns.
    o_ref: (1, Cout, Lw)     output; flattened spatial (row stride Wp) on lanes.
    """
    cout = w_ref.shape[1]
    lw = o_ref.shape[2]

    # 3x3 conv as kh*kw shifted-tap matmuls; each tap is a native sublane-offset
    # slice of the single VMEM copy; 'nt' dot_general yields (Cout, Lw) directly.
    acc = jnp.zeros((cout, lw), dtype=jnp.float32)
    for dy in range(kh):
        for dx in range(kw):
            t = dy * kw + dx
            off = dy * wp + dx
            tap = x_ref[0, off:off + lw, :]                  # (Lw, Cin)
            acc = acc + lax.dot_general(
                w_ref[t], tap,                               # (Cout,Cin) x (Lw,Cin)^T
                dimension_numbers=(((1,), (1,)), ((), ())),
                preferred_element_type=jnp.float32,
            )

    # InstanceNorm2d(affine=False): masked single-pass stats, lane-axis reduction.
    m = m_ref[...]                                           # (1, Lw)
    s1 = jnp.sum(acc * m, axis=1, keepdims=True)             # (Cout, 1)
    s2 = jnp.sum(acc * acc * m, axis=1, keepdims=True)       # (Cout, 1)
    mean = s1 * inv_count
    var = jnp.maximum(s2 * inv_count - mean * mean, 0.0)
    y = (acc - mean) * lax.rsqrt(var + eps)

    # ReLU (lane-dense store: Lw is a multiple of 128).
    o_ref[0] = jnp.maximum(y, 0.0).astype(o_ref.dtype)


def relu_ins_conv2d(x, weight, bias=None, *, stride=1, padding=0, eps=1e-5):
    """ReLUINSConv2d forward.  x: (N, Cin, H, W) f32 NCHW; weight: (Cout, Cin, k, k)."""
    del bias  # exactly cancelled by the following InstanceNorm (affine=False)
    if stride != 1:
        # TODO(synk): stride > 1 not implemented in the Pallas path.
        raise NotImplementedError("Pallas ReLUINSConv2d kernel supports stride=1 only")

    n, cin, h, w = x.shape
    cout, cin_w, kh, kw = weight.shape
    assert cin_w == cin

    # Reflection pad (matches nn.ReflectionPad2d), then flatten each sample
    # row-major over (Hp, Wp) with channels minor -> one input copy, no im2col.
    if padding > 0:
        xp = jnp.pad(x, ((0, 0), (0, 0), (padding, padding), (padding, padding)),
                     mode="reflect")
    else:
        xp = x
    hp, wp = h + 2 * padding, w + 2 * padding
    hout, wout = hp - kh + 1, wp - kw + 1

    lw = _round_up(hout * wp, 128)          # lane-dense output columns (padded)
    lp = (kh - 1) * wp + (kw - 1) + lw      # flat input length every tap slice needs

    xflat = jnp.transpose(xp, (0, 2, 3, 1)).reshape(n, hp * wp, cin)
    xflat = jnp.pad(xflat, ((0, 0), (0, lp - hp * wp), (0, 0))).astype(jnp.float32)

    # (kh*kw, Cout, Cin): tap-major weights for the in-kernel 'nt' matmuls.
    w9 = jnp.transpose(weight, (2, 3, 0, 1)).reshape(kh * kw, cout, cin)
    w9 = w9.astype(jnp.float32)

    # Valid-column mask: column j -> (y, x) = (j // Wp, j % Wp); junk columns
    # (x >= Wout, or lane-padding tail) are excluded from the IN statistics.
    j = jnp.arange(lw)
    mask = ((j < hout * wp) & ((j % wp) < wout)).astype(jnp.float32).reshape(1, lw)

    kernel = functools.partial(
        _conv_in_relu_kernel, kh=kh, kw=kw, wp=wp,
        inv_count=1.0 / float(hout * wout), eps=float(eps))

    out = pl.pallas_call(
        kernel,
        out_shape=jax.ShapeDtypeStruct((n, cout, lw), jnp.float32),
        grid_spec=pltpu.PrefetchScalarGridSpec(
            num_scalar_prefetch=0,
            grid=(n,),
            in_specs=[
                pl.BlockSpec((1, lp, cin), lambda i: (i, 0, 0)),
                pl.BlockSpec((kh * kw, cout, cin), lambda i: (0, 0, 0)),
                pl.BlockSpec((1, lw), lambda i: (0, 0)),
            ],
            out_specs=pl.BlockSpec((1, cout, lw), lambda i: (i, 0, 0)),
        ),
        compiler_params=pltpu.CompilerParams(
            dimension_semantics=("parallel",),
        ),
    )(xflat, w9, mask)

    # Drop lane padding / junk columns; result is already NCHW.
    out = out[:, :, :hout * wp].reshape(n, cout, hout, wp)[:, :, :, :wout]
    return out


def _reference(x, weight, bias, stride, padding, eps=1e-5):
    """Pure-JAX reference: ReflectionPad -> Conv2d(bias) -> InstanceNorm -> ReLU."""
    if padding > 0:
        xp = jnp.pad(x, ((0, 0), (0, 0), (padding, padding), (padding, padding)),
                     mode="reflect")
    else:
        xp = x
    y = lax.conv_general_dilated(
        xp.astype(jnp.float32), weight.astype(jnp.float32),
        window_strides=(stride, stride), padding="VALID",
        dimension_numbers=("NCHW", "OIHW", "NCHW"),
        precision=lax.Precision.HIGHEST)
    y = y + bias[None, :, None, None]
    mean = jnp.mean(y, axis=(2, 3), keepdims=True)
    var = jnp.mean((y - mean) ** 2, axis=(2, 3), keepdims=True)
    y = (y - mean) * lax.rsqrt(var + eps)
    return jnp.maximum(y, 0.0)


if __name__ == "__main__":
    key = jax.random.PRNGKey(0)
    kx, kwt, kb = jax.random.split(key, 3)

    # ReLUINSConv2d(n_in=4, n_out=32, kernel_size=3, stride=1, padding=1)
    n, cin, h, w = 2, 4, 16, 16
    cout, ksz, stride, pad = 32, 3, 1, 1

    x = jax.random.normal(kx, (n, cin, h, w), jnp.float32)
    # gaussian_weights_init: conv weight ~ N(0, 0.02)
    weight = 0.02 * jax.random.normal(kwt, (cout, cin, ksz, ksz), jnp.float32)
    bias = 0.02 * jax.random.normal(kb, (cout,), jnp.float32)

    fwd = jax.jit(functools.partial(relu_ins_conv2d, stride=stride, padding=pad))
    out = jax.block_until_ready(fwd(x, weight, bias))
    assert out.shape == (n, cout, h, w), out.shape

    ref = jax.block_until_ready(_reference(x, weight, bias, stride, pad))
    # Loose tolerance: MXU default-precision f32 matmul passes vs. HIGHEST XLA conv.
    max_err = float(jnp.max(jnp.abs(out - ref)))
    assert max_err < 1e-1, f"max abs error vs reference: {max_err}"

    print("KERNEL_OK")
</pallas_src>

<mosaic_0001>
module attributes {stable_mosaic.version = 11 : i64} {
  func.func @_conv_in_relu_kernel(%arg0: i32, %arg1: memref<1x422x4xf32, #tpu.memory_space<vmem>>, %arg2: memref<9x32x4xf32, #tpu.memory_space<vmem>>, %arg3: memref<1x384xf32, #tpu.memory_space<vmem>>, %arg4: memref<1x32x384xf32, #tpu.memory_space<vmem>>) attributes {dimension_semantics = [#tpu.dimension_semantics<parallel>], iteration_bounds = array<i64: 2>, scalar_prefetch = 0 : i64, scratch_operands = 0 : i64, tpu.core_type = #tpu.core_type<tc>, window_params = [{transform_indices = @transform_0, window_bounds = array<i64: 1, 422, 4>}, {pipeline_mode = #tpu.pipeline_mode<synchronous>, transform_indices = @transform_1, window_bounds = array<i64: 9, 32, 4>}, {pipeline_mode = #tpu.pipeline_mode<synchronous>, transform_indices = @transform_2, window_bounds = array<i64: 1, 384>}, {transform_indices = @transform_3, window_bounds = array<i64: 1, 32, 384>}]} {
    %cst = arith.constant 0.000000e+00 : f32
    %0 = vector.broadcast %cst : f32 to vector<32x384xf32>
    %c0 = arith.constant 0 : index
    %c0_0 = arith.constant 0 : index
    %c0_1 = arith.constant 0 : index
    %1 = vector.load %arg1[%c0, %c0_0, %c0_1] : memref<1x422x4xf32, #tpu.memory_space<vmem>>, vector<1x384x4xf32>
    %2 = vector.shape_cast %1 : vector<1x384x4xf32> to vector<384x4xf32>
    %c0_2 = arith.constant 0 : index
    %c0_3 = arith.constant 0 : index
    %c0_4 = arith.constant 0 : index
    %3 = vector.load %arg2[%c0_2, %c0_3, %c0_4] : memref<9x32x4xf32, #tpu.memory_space<vmem>>, vector<1x32x4xf32>
    %4 = vector.shape_cast %3 : vector<1x32x4xf32> to vector<32x4xf32>
    %cst_5 = arith.constant dense<0.000000e+00> : vector<32x384xf32>
    %5 = tpu.matmul %4, %2, %cst_5 {dimension_numbers = #tpu.dot_dimension_numbers<[1], [1], [0], [0], [0, 0, 1, 0], [], []>} : vector<32x4xf32>, vector<384x4xf32>, vector<32x384xf32> -> vector<32x384xf32>
    %6 = arith.addf %0, %5 : vector<32x384xf32>
    %c0_6 = arith.constant 0 : index
    %c1 = arith.constant 1 : index
    %c0_7 = arith.constant 0 : index
    %7 = vector.load %arg1[%c0_6, %c1, %c0_7] : memref<1x422x4xf32, #tpu.memory_space<vmem>>, vector<1x384x4xf32>
    %8 = vector.shape_cast %7 : vector<1x384x4xf32> to vector<384x4xf32>
    %c1_8 = arith.constant 1 : index
    %c0_9 = arith.constant 0 : index
    %c0_10 = arith.constant 0 : index
    %9 = vector.load %arg2[%c1_8, %c0_9, %c0_10] : memref<9x32x4xf32, #tpu.memory_space<vmem>>, vector<1x32x4xf32>
    %10 = vector.shape_cast %9 : vector<1x32x4xf32> to vector<32x4xf32>
    %cst_11 = arith.constant dense<0.000000e+00> : vector<32x384xf32>
    %11 = tpu.matmul %10, %8, %cst_11 {dimension_numbers = #tpu.dot_dimension_numbers<[1], [1], [0], [0], [0, 0, 1, 0], [], []>} : vector<32x4xf32>, vector<384x4xf32>, vector<32x384xf32> -> vector<32x384xf32>
    %12 = arith.addf %6, %11 : vector<32x384xf32>
    %c0_12 = arith.constant 0 : index
    %c2 = arith.constant 2 : index
    %c0_13 = arith.constant 0 : index
    %13 = vector.load %arg1[%c0_12, %c2, %c0_13] : memref<1x422x4xf32, #tpu.memory_space<vmem>>, vector<1x384x4xf32>
    %14 = vector.shape_cast %13 : vector<1x384x4xf32> to vector<384x4xf32>
    %c2_14 = arith.constant 2 : index
    %c0_15 = arith.constant 0 : index
    %c0_16 = arith.constant 0 : index
    %15 = vector.load %arg2[%c2_14, %c0_15, %c0_16] : memref<9x32x4xf32, #tpu.memory_space<vmem>>, vector<1x32x4xf32>
    %16 = vector.shape_cast %15 : vector<1x32x4xf32> to vector<32x4xf32>
    %cst_17 = arith.constant dense<0.000000e+00> : vector<32x384xf32>
    %17 = tpu.matmul %16, %14, %cst_17 {dimension_numbers = #tpu.dot_dimension_numbers<[1], [1], [0], [0], [0, 0, 1, 0], [], []>} : vector<32x4xf32>, vector<384x4xf32>, vector<32x384xf32> -> vector<32x384xf32>
    %18 = arith.addf %12, %17 : vector<32x384xf32>
    %c0_18 = arith.constant 0 : index
    %c18 = arith.constant 18 : index
    %c0_19 = arith.constant 0 : index
    %19 = vector.load %arg1[%c0_18, %c18, %c0_19] : memref<1x422x4xf32, #tpu.memory_space<vmem>>, vector<1x384x4xf32>
    %20 = vector.shape_cast %19 : vector<1x384x4xf32> to vector<384x4xf32>
    %c3 = arith.constant 3 : index
    %c0_20 = arith.constant 0 : index
    %c0_21 = arith.constant 0 : index
    %21 = vector.load %arg2[%c3, %c0_20, %c0_21] : memref<9x32x4xf32, #tpu.memory_space<vmem>>, vector<1x32x4xf32>
    %22 = vector.shape_cast %21 : vector<1x32x4xf32> to vector<32x4xf32>
    %cst_22 = arith.constant dense<0.000000e+00> : vector<32x384xf32>
    %23 = tpu.matmul %22, %20, %cst_22 {dimension_numbers = #tpu.dot_dimension_numbers<[1], [1], [0], [0], [0, 0, 1, 0], [], []>} : vector<32x4xf32>, vector<384x4xf32>, vector<32x384xf32> -> vector<32x384xf32>
    %24 = arith.addf %18, %23 : vector<32x384xf32>
    %c0_23 = arith.constant 0 : index
    %c19 = arith.constant 19 : index
    %c0_24 = arith.constant 0 : index
    %25 = vector.load %arg1[%c0_23, %c19, %c0_24] : memref<1x422x4xf32, #tpu.memory_space<vmem>>, vector<1x384x4xf32>
    %26 = vector.shape_cast %25 : vector<1x384x4xf32> to vector<384x4xf32>
    %c4 = arith.constant 4 : index
    %c0_25 = arith.constant 0 : index
    %c0_26 = arith.constant 0 : index
    %27 = vector.load %arg2[%c4, %c0_25, %c0_26] : memref<9x32x4xf32, #tpu.memory_space<vmem>>, vector<1x32x4xf32>
    %28 = vector.shape_cast %27 : vector<1x32x4xf32> to vector<32x4xf32>
    %cst_27 = arith.constant dense<0.000000e+00> : vector<32x384xf32>
    %29 = tpu.matmul %28, %26, %cst_27 {dimension_numbers = #tpu.dot_dimension_numbers<[1], [1], [0], [0], [0, 0, 1, 0], [], []>} : vector<32x4xf32>, vector<384x4xf32>, vector<32x384xf32> -> vector<32x384xf32>
    %30 = arith.addf %24, %29 : vector<32x384xf32>
    %c0_28 = arith.constant 0 : index
    %c20 = arith.constant 20 : index
    %c0_29 = arith.constant 0 : index
    %31 = vector.load %arg1[%c0_28, %c20, %c0_29] : memref<1x422x4xf32, #tpu.memory_space<vmem>>, vector<1x384x4xf32>
    %32 = vector.shape_cast %31 : vector<1x384x4xf32> to vector<384x4xf32>
    %c5 = arith.constant 5 : index
    %c0_30 = arith.constant 0 : index
    %c0_31 = arith.constant 0 : index
    %33 = vector.load %arg2[%c5, %c0_30, %c0_31] : memref<9x32x4xf32, #tpu.memory_space<vmem>>, vector<1x32x4xf32>
    %34 = vector.shape_cast %33 : vector<1x32x4xf32> to vector<32x4xf32>
    %cst_32 = arith.constant dense<0.000000e+00> : vector<32x384xf32>
    %35 = tpu.matmul %34, %32, %cst_32 {dimension_numbers = #tpu.dot_dimension_numbers<[1], [1], [0], [0], [0, 0, 1, 0], [], []>} : vector<32x4xf32>, vector<384x4xf32>, vector<32x384xf32> -> vector<32x384xf32>
    %36 = arith.addf %30, %35 : vector<32x384xf32>
    %c0_33 = arith.constant 0 : index
    %c36 = arith.constant 36 : index
    %c0_34 = arith.constant 0 : index
    %37 = vector.load %arg1[%c0_33, %c36, %c0_34] : memref<1x422x4xf32, #tpu.memory_space<vmem>>, vector<1x384x4xf32>
    %38 = vector.shape_cast %37 : vector<1x384x4xf32> to vector<384x4xf32>
    %c6 = arith.constant 6 : index
    %c0_35 = arith.constant 0 : index
    %c0_36 = arith.constant 0 : index
    %39 = vector.load %arg2[%c6, %c0_35, %c0_36] : memref<9x32x4xf32, #tpu.memory_space<vmem>>, vector<1x32x4xf32>
    %40 = vector.shape_cast %39 : vector<1x32x4xf32> to vector<32x4xf32>
    %cst_37 = arith.constant dense<0.000000e+00> : vector<32x384xf32>
    %41 = tpu.matmul %40, %38, %cst_37 {dimension_numbers = #tpu.dot_dimension_numbers<[1], [1], [0], [0], [0, 0, 1, 0], [], []>} : vector<32x4xf32>, vector<384x4xf32>, vector<32x384xf32> -> vector<32x384xf32>
    %42 = arith.addf %36, %41 : vector<32x384xf32>
    %c0_38 = arith.constant 0 : index
    %c37 = arith.constant 37 : index
    %c0_39 = arith.constant 0 : index
    %43 = vector.load %arg1[%c0_38, %c37, %c0_39] : memref<1x422x4xf32, #tpu.memory_space<vmem>>, vector<1x384x4xf32>
    %44 = vector.shape_cast %43 : vector<1x384x4xf32> to vector<384x4xf32>
    %c7 = arith.constant 7 : index
    %c0_40 = arith.constant 0 : index
    %c0_41 = arith.constant 0 : index
    %45 = vector.load %arg2[%c7, %c0_40, %c0_41] : memref<9x32x4xf32, #tpu.memory_space<vmem>>, vector<1x32x4xf32>
    %46 = vector.shape_cast %45 : vector<1x32x4xf32> to vector<32x4xf32>
    %cst_42 = arith.constant dense<0.000000e+00> : vector<32x384xf32>
    %47 = tpu.matmul %46, %44, %cst_42 {dimension_numbers = #tpu.dot_dimension_numbers<[1], [1], [0], [0], [0, 0, 1, 0], [], []>} : vector<32x4xf32>, vector<384x4xf32>, vector<32x384xf32> -> vector<32x384xf32>
    %48 = arith.addf %42, %47 : vector<32x384xf32>
    %c0_43 = arith.constant 0 : index
    %c38 = arith.constant 38 : index
    %c0_44 = arith.constant 0 : index
    %49 = vector.load %arg1[%c0_43, %c38, %c0_44] : memref<1x422x4xf32, #tpu.memory_space<vmem>>, vector<1x384x4xf32>
    %50 = vector.shape_cast %49 : vector<1x384x4xf32> to vector<384x4xf32>
    %c8 = arith.constant 8 : index
    %c0_45 = arith.constant 0 : index
    %c0_46 = arith.constant 0 : index
    %51 = vector.load %arg2[%c8, %c0_45, %c0_46] : memref<9x32x4xf32, #tpu.memory_space<vmem>>, vector<1x32x4xf32>
    %52 = vector.shape_cast %51 : vector<1x32x4xf32> to vector<32x4xf32>
    %cst_47 = arith.constant dense<0.000000e+00> : vector<32x384xf32>
    %53 = tpu.matmul %52, %50, %cst_47 {dimension_numbers = #tpu.dot_dimension_numbers<[1], [1], [0], [0], [0, 0, 1, 0], [], []>} : vector<32x4xf32>, vector<384x4xf32>, vector<32x384xf32> -> vector<32x384xf32>
    %54 = arith.addf %48, %53 : vector<32x384xf32>
    %c0_48 = arith.constant 0 : index
    %c0_49 = arith.constant 0 : index
    %55 = vector.load %arg3[%c0_48, %c0_49] : memref<1x384xf32, #tpu.memory_space<vmem>>, vector<1x384xf32>
    %56 = vector.broadcast %55 : vector<1x384xf32> to vector<32x384xf32>
    %57 = arith.mulf %54, %56 : vector<32x384xf32>
    %cst_50 = arith.constant dense<0.000000e+00> : vector<32xf32>
    %58 = vector.multi_reduction <add>, %57, %cst_50 [1] : vector<32x384xf32> to vector<32xf32>
    %59 = vector.shape_cast %58 : vector<32xf32> to vector<32x1xf32>
    %60 = arith.mulf %54, %54 : vector<32x384xf32>
    %61 = vector.broadcast %55 : vector<1x384xf32> to vector<32x384xf32>
    %62 = arith.mulf %60, %61 : vector<32x384xf32>
    %cst_51 = arith.constant dense<0.000000e+00> : vector<32xf32>
    %63 = vector.multi_reduction <add>, %62, %cst_51 [1] : vector<32x384xf32> to vector<32xf32>
    %64 = vector.shape_cast %63 : vector<32xf32> to vector<32x1xf32>
    %cst_52 = arith.constant 3.906250e-03 : f32
    %65 = vector.broadcast %cst_52 : f32 to vector<32x1xf32>
    %66 = arith.mulf %59, %65 : vector<32x1xf32>
    %cst_53 = arith.constant 3.906250e-03 : f32
    %67 = vector.broadcast %cst_53 : f32 to vector<32x1xf32>
    %68 = arith.mulf %64, %67 : vector<32x1xf32>
    %69 = arith.mulf %66, %66 : vector<32x1xf32>
    %70 = arith.subf %68, %69 : vector<32x1xf32>
    %cst_54 = arith.constant 0.000000e+00 : f32
    %71 = vector.broadcast %cst_54 : f32 to vector<32x1xf32>
    %72 = arith.maximumf %70, %71 : vector<32x1xf32>
    %73 = vector.broadcast %66 : vector<32x1xf32> to vector<32x384xf32>
    %74 = arith.subf %54, %73 : vector<32x384xf32>
    %cst_55 = arith.constant 9.99999974E-6 : f32
    %75 = vector.broadcast %cst_55 : f32 to vector<32x1xf32>
    %76 = arith.addf %72, %75 : vector<32x1xf32>
    %77 = math.rsqrt %76 : vector<32x1xf32>
    %78 = vector.broadcast %77 : vector<32x1xf32> to vector<32x384xf32>
    %79 = arith.mulf %74, %78 : vector<32x384xf32>
    %cst_56 = arith.constant 0.000000e+00 : f32
    %80 = vector.broadcast %cst_56 : f32 to vector<32x384xf32>
    %81 = arith.maximumf %79, %80 : vector<32x384xf32>
    %c0_57 = arith.constant 0 : index
    %c0_58 = arith.constant 0 : index
    %c0_59 = arith.constant 0 : index
    %82 = vector.load %arg4[%c0_57, %c0_58, %c0_59] : memref<1x32x384xf32, #tpu.memory_space<vmem>>, vector<1x32x384xf32>
    %83 = vector.shape_cast %82 : vector<1x32x384xf32> to vector<32x384xf32>
    %84 = vector.shape_cast %81 : vector<32x384xf32> to vector<1x32x384xf32>
    tpu.vector_store %arg4[%c0_57, %c0_58, %c0_59], %84 {strides = array<i32>} : memref<1x32x384xf32, #tpu.memory_space<vmem>>, vector<1x32x384xf32>,
    return
  }
  func.func @transform_0(%arg0: i32) -> (i32, i32, i32) {
    %c0_i32 = arith.constant 0 : i32
    %c0_i32_0 = arith.constant 0 : i32
    %c0_i32_1 = arith.constant 0 : i32
    return %arg0, %c0_i32, %c0_i32_0 : i32, i32, i32
  }
  func.func @transform_1(%arg0: i32) -> (i32, i32, i32) {
    %c0_i32 = arith.constant 0 : i32
    %c0_i32_0 = arith.constant 0 : i32
    %c0_i32_1 = arith.constant 0 : i32
    %c0_i32_2 = arith.constant 0 : i32
    return %c0_i32, %c0_i32_0, %c0_i32_1 : i32, i32, i32
  }
  func.func @transform_2(%arg0: i32) -> (i32, i32) {
    %c0_i32 = arith.constant 0 : i32
    %c0_i32_0 = arith.constant 0 : i32
    %c0_i32_1 = arith.constant 0 : i32
    return %c0_i32, %c0_i32_0 : i32, i32
  }
  func.func @transform_3(%arg0: i32) -> (i32, i32, i32) {
    %c0_i32 = arith.constant 0 : i32
    %c0_i32_0 = arith.constant 0 : i32
    %c0_i32_1 = arith.constant 0 : i32
    return %arg0, %c0_i32, %c0_i32_0 : i32, i32, i32
  }
}

</mosaic_0001>

<llo_original>
// kernel: relu_ins_conv2d.1
$region0: #{relu_ins_conv2d.1}
  #allocation0 [shape = 'u32[]', space=smem, size = 0x4, offset = 0x4, fixed_abs, tag = 'smem constant byte address 0x4 - core index']
  #allocation1 [shape = 'u32[144,128]{1,0:T(1,128)}', space=vmem, size = 0x12000, scoped, tag = 'internal scratch']
  %s0 = inlined_call_operand.vmem [shape: f32[2,422,4], index: 0, kind: input, shape index: {}]
  %s1 = inlined_call_operand.vmem [shape: f32[9,32,4], index: 1, kind: input, shape index: {}]
  %s2 = inlined_call_operand.vmem [shape: f32[1,384], index: 2, kind: input, shape index: {}]
  %s3 = inlined_call_operand.vmem [shape: f32[2,32,384], index: 3, kind: output, shape index: {}]
  %s4 = sld [smem:[#allocation0]]
  $region45: #{relu_ins_conv2d.1} parent=0
    _
  %s6 = ssub.s32 1, %s4
  %s7 = scalar_select 0, %s6, %s4
  loop: start=0, step=1, limit=4
  $region2: #{relu_ins_conv2d.1} parent=0 // loop_pre_header
    _
  $region3: #{relu_ins_conv2d.1} parent=0 // loop_header
    %s9 = sphi 0, %s13
    %p10 = scmp.ge.s32.totalorder %s9, 4
    %s19 = sphi 0, %s21
    %s22 = sphi 0, %s19
    %s23 = sphi 0, %s22
    %s39 = sphi 0, %s23
    %s43 = sphi 0, %s43
    %s45 = sphi 0, %s43
    %s46 = sphi 0, %s45
    %s60 = sphi 0, %s46
    %s64 = sphi 0, %s64
    %s66 = sphi 0, %s64
    %s67 = sphi 0, %s66
    %s81 = sphi 0, %s67
    %s87 = sphi 0, %s89
    %s90 = sphi 0, %s87
    %s91 = sphi 0, %s90
    %s107 = sphi 0, %s91
  $region4: #{relu_ins_conv2d.1} parent=0 // loop_header_branch
    %12 = sbr.rel (%p10) target = $region8
  $region5: #{relu_ins_conv2d.1} parent=0 // loop_body
    %s14 = ssub.s32 %s9, 1
    %s15 = ssub.s32 %s9, 2
    %s16 = sadd.s32 %s9, 1
    %s17 = ssub.s32 %s9, %s16
    %p18 = scmp.eq.s32.totalorder %s17, 0
    %s20 = sadd.s32 %s19, 1
    %s21 = scalar_select %p18, %s19, %s20
    %p24 = pneg %p18
    %p25 = scmp.eq.s32.totalorder %s9, 1
    %p26 = por %p24, %p25
    %p27 = scmp.ne.s32.totalorder %s19, %s22
    %p28 = scmp.eq.s32.totalorder %s9, 0
    %p29 = por %p27, %p28
    %p30 = scmp.ne.s32.totalorder %s19, %s22
    %p31 = scmp.eq.s32.totalorder %s14, 1
    %p32 = por %p30, %p31
    %p33 = scmp.ne.s32.totalorder %s22, %s23
    %p34 = scmp.eq.s32.totalorder %s14, 0
    %p35 = por %p33, %p34
    %p36 = scmp.ne.s32.totalorder %s22, %s23
    %p37 = scmp.eq.s32.totalorder %s15, 1
    %p38 = por %p36, %p37
    %p40 = scmp.ne.s32.totalorder %s23, %s39
    %p41 = scmp.eq.s32.totalorder %s15, 0
    %p42 = por %p40, %p41
    %s44 = sadd.s32 %s43, 1
    %p47 = scmp.eq.s32.totalorder %s9, 1
    %p48 = scmp.ne.s32.totalorder %s43, %s45
    %p49 = scmp.eq.s32.totalorder %s9, 0
    %p50 = por %p48, %p49
    %p51 = scmp.ne.s32.totalorder %s43, %s45
    %p52 = scmp.eq.s32.totalorder %s14, 1
    %p53 = por %p51, %p52
    %p54 = scmp.ne.s32.totalorder %s45, %s46
    %p55 = scmp.eq.s32.totalorder %s14, 0
    %p56 = por %p54, %p55
    %p57 = scmp.ne.s32.totalorder %s45, %s46
    %p58 = scmp.eq.s32.totalorder %s15, 1
    %p59 = por %p57, %p58
    %p61 = scmp.ne.s32.totalorder %s46, %s60
    %p62 = scmp.eq.s32.totalorder %s15, 0
    %p63 = por %p61, %p62
    %s65 = sadd.s32 %s64, 1
    %p68 = scmp.eq.s32.totalorder %s9, 1
    %p69 = scmp.ne.s32.totalorder %s64, %s66
    %p70 = scmp.eq.s32.totalorder %s9, 0
    %p71 = por %p69, %p70
    %p72 = scmp.ne.s32.totalorder %s64, %s66
    %p73 = scmp.eq.s32.totalorder %s14, 1
    %p74 = por %p72, %p73
    %p75 = scmp.ne.s32.totalorder %s66, %s67
    %p76 = scmp.eq.s32.totalorder %s14, 0
    %p77 = por %p75, %p76
    %p78 = scmp.ne.s32.totalorder %s66, %s67
    %p79 = scmp.eq.s32.totalorder %s15, 1
    %p80 = por %p78, %p79
    %p82 = scmp.ne.s32.totalorder %s67, %s81
    %p83 = scmp.eq.s32.totalorder %s15, 0
    %p84 = por %p82, %p83
    %s85 = ssub.s32 %s9, %s16
    %p86 = scmp.eq.s32.totalorder %s85, 0
    %s88 = sadd.s32 %s87, 1
    %s89 = scalar_select %p86, %s87, %s88
    %p92 = pneg %p86
    %p93 = scmp.eq.s32.totalorder %s9, 1
    %p94 = por %p92, %p93
    %p95 = scmp.ne.s32.totalorder %s87, %s90
    %p96 = scmp.eq.s32.totalorder %s9, 0
    %p97 = por %p95, %p96
    %p98 = scmp.ne.s32.totalorder %s87, %s90
    %p99 = scmp.eq.s32.totalorder %s14, 1
    %p100 = por %p98, %p99
    %p101 = scmp.ne.s32.totalorder %s90, %s91
    %p102 = scmp.eq.s32.totalorder %s14, 0
    %p103 = por %p101, %p102
    %p104 = scmp.ne.s32.totalorder %s90, %s91
    %p105 = scmp.eq.s32.totalorder %s15, 1
    %p106 = por %p104, %p105
    %p108 = scmp.ne.s32.totalorder %s91, %s107
    %p109 = scmp.eq.s32.totalorder %s15, 0
    %p110 = por %p108, %p109
    %p111 = scmp.le.s32.totalorder 1, %s9
    %p112 = scmp.lt.s32.totalorder %s9, 3
    %p113 = pnand %p111, %p112
    %p114 = pneg %p113
    // Predicated region
    $region9: #{relu_ins_conv2d.1} parent=5 // pred_check
      _
    $region10: #{relu_ins_conv2d.1} parent=5 // pred_check_branch
      %116 = sbr.rel (%p113) target = $region12
    $region11: #{relu_ins_conv2d.1} parent=5 // pred_region
      %s117 = ssub.s32 %s9, 1
      // Predicated region
      $region13: #{relu_ins_conv2d.1} parent=11 // pred_check
        %p118 = pneg %p56
      $region14: #{relu_ins_conv2d.1} parent=11 // pred_check_branch
        %120 = sbr.rel (%p118) target = $region16
      $region15: #{relu_ins_conv2d.1} parent=11 // pred_region
        _
      $region16: #{relu_ins_conv2d.1} parent=11 // pred_fallthru
        _
      // Predicated region
      $region17: #{relu_ins_conv2d.1} parent=11 // pred_check
        %p121 = pneg %p77
      $region18: #{relu_ins_conv2d.1} parent=11 // pred_check_branch
        %123 = sbr.rel (%p121) target = $region20
      $region19: #{relu_ins_conv2d.1} parent=11 // pred_region
        _
      $region20: #{relu_ins_conv2d.1} parent=11 // pred_fallthru
        _
    $region12: #{relu_ins_conv2d.1} parent=5 // pred_fallthru
      _
    %p124 = scmp.lt.s32.totalorder %s9, 2
    // Predicated region
    $region21: #{relu_ins_conv2d.1} parent=5 // pred_check
      %p125 = pneg %p124
    $region22: #{relu_ins_conv2d.1} parent=5 // pred_check_branch
      %127 = sbr.rel (%p125) target = $region24
    $region23: #{relu_ins_conv2d.1} parent=5 // pred_region
      // Predicated region
      $region25: #{relu_ins_conv2d.1} parent=23 // pred_check
        %p128 = pneg %p29
      $region26: #{relu_ins_conv2d.1} parent=23 // pred_check_branch
        %130 = sbr.rel (%p128) target = $region28
      $region27: #{relu_ins_conv2d.1} parent=23 // pred_region
        %p131 = scmp.lt.s32.totalorder %s9, 1
        %s132 = scalar_select %p131, %s9, 1
        %s133 = smul.addr %s132, 53
        %s134 = smul.addr %s133, 8
        %s135 = scalar_lea.vmem %s0, %s134
      $region28: #{relu_ins_conv2d.1} parent=23 // pred_fallthru
        _
    $region24: #{relu_ins_conv2d.1} parent=5 // pred_fallthru
      _
    %p136 = scmp.le.s32.totalorder 1, %s9
    %p137 = scmp.lt.s32.totalorder %s9, 3
    %p138 = pnand %p136, %p137
    %p139 = pneg %p138
    // Predicated region
    $region29: #{relu_ins_conv2d.1} parent=5 // pred_check
      _
    $region30: #{relu_ins_conv2d.1} parent=5 // pred_check_branch
      %141 = sbr.rel (%p138) target = $region32
    $region31: #{relu_ins_conv2d.1} parent=5 // pred_region
      %s142 = ssub.s32 %s9, 1
      %p143 = scmp.lt.s32.totalorder %s14, 1
      %s144 = scalar_select %p143, %s14, 1
      %s145 = smul.addr %s144, 53
      %s146 = smul.addr %s145, 8
      %s147 = scalar_lea.vmem %s0, %s146
      %p148 = pneg %p35
      %p149 = pneg %p32
      %p150 = pneg %p56
      %p151 = pneg %p53
      %p152 = pneg %p77
      %p153 = pneg %p74
      %p154 = pneg %p103
      %p155 = pneg %p100
      %p156 = scmp.lt.s32.totalorder %s14, 1
      %s157 = scalar_select %p156, %s14, 1
      %s158 = smul.addr %s157, 12
      %s159 = smul.addr %s158, 8
      %s160 = scalar_lea.vmem %s3, %s159
      %p161 = scmp.lt.s32.totalorder %s14, 1
      %s162 = scalar_select %p161, %s14, 1
      %s163 = smul.addr %s162, 53
      %s164 = smul.addr %s163, 8
      %s165 = scalar_lea.vmem %s0, %s164
      %p166 = scmp.lt.s32.totalorder %s14, 1
      %s167 = scalar_select %p166, %s14, 1
      %s168 = smul.addr %s167, 12
      %s169 = smul.addr %s168, 8
      %s170 = scalar_lea.vmem %s3, %s169
      %v171 = vld [vmem:[%s165] sm:$0xff]
      %v172 = vld [vmem:[%s165 + $0x8] sm:$0xff]
      %v173 = vld [vmem:[%s165 + $0x10] sm:$0xff]
      %v174 = vld [vmem:[%s165 + $0x18] sm:$0xff]
      %v175 = vld [vmem:[%s165 + $0x20] sm:$0xff]
      %v176 = vld [vmem:[%s165 + $0x28] sm:$0xff]
      %v177 = vld [vmem:[%s165 + $0x30] sm:$0xff]
      %v178 = vld [vmem:[%s165 + $0x38] sm:$0xff]
      %v179 = vld [vmem:[%s165 + $0x40] sm:$0xff]
      %v180 = vld [vmem:[%s165 + $0x48] sm:$0xff]
      %v181 = vld [vmem:[%s165 + $0x50] sm:$0xff]
      %v182 = vld [vmem:[%s165 + $0x58] sm:$0xff]
      %v183 = vld [vmem:[%s165 + $0x60] sm:$0xff]
      %v184 = vld [vmem:[%s165 + $0x68] sm:$0xff]
      %v185 = vld [vmem:[%s165 + $0x70] sm:$0xff]
      %v186 = vld [vmem:[%s165 + $0x78] sm:$0xff]
      %v187 = vld [vmem:[%s165 + $0x80] sm:$0xff]
      %v188 = vld [vmem:[%s165 + $0x88] sm:$0xff]
      %v189 = vld [vmem:[%s165 + $0x90] sm:$0xff]
      %v190 = vld [vmem:[%s165 + $0x98] sm:$0xff]
      %v191 = vld [vmem:[%s165 + $0xa0] sm:$0xff]
      %v192 = vld [vmem:[%s165 + $0xa8] sm:$0xff]
      %v193 = vld [vmem:[%s165 + $0xb0] sm:$0xff]
      %v194 = vld [vmem:[%s165 + $0xb8] sm:$0xff]
      %v195 = vld [vmem:[%s165 + $0xc0] sm:$0xff]
      %v196 = vld [vmem:[%s165 + $0xc8] sm:$0xff]
      %v197 = vld [vmem:[%s165 + $0xd0] sm:$0xff]
      %v198 = vld [vmem:[%s165 + $0xd8] sm:$0xff]
      %v199 = vld [vmem:[%s165 + $0xe0] sm:$0xff]
      %v200 = vld [vmem:[%s165 + $0xe8] sm:$0xff]
      %v201 = vld [vmem:[%s165 + $0xf0] sm:$0xff]
      %v202 = vld [vmem:[%s165 + $0xf8] sm:$0xff]
      %v203 = vld [vmem:[%s165 + $0x100] sm:$0xff]
      %v204 = vld [vmem:[%s165 + $0x108] sm:$0xff]
      %v205 = vld [vmem:[%s165 + $0x110] sm:$0xff]
      %v206 = vld [vmem:[%s165 + $0x118] sm:$0xff]
      %v207 = vld [vmem:[%s165 + $0x120] sm:$0xff]
      %v208 = vld [vmem:[%s165 + $0x128] sm:$0xff]
      %v209 = vld [vmem:[%s165 + $0x130] sm:$0xff]
      %v210 = vld [vmem:[%s165 + $0x138] sm:$0xff]
      %v211 = vld [vmem:[%s165 + $0x140] sm:$0xff]
      %v212 = vld [vmem:[%s165 + $0x148] sm:$0xff]
      %v213 = vld [vmem:[%s165 + $0x150] sm:$0xff]
      %v214 = vld [vmem:[%s165 + $0x158] sm:$0xff]
      %v215 = vld [vmem:[%s165 + $0x160] sm:$0xff]
      %v216 = vld [vmem:[%s165 + $0x168] sm:$0xff]
      %v217 = vld [vmem:[%s165 + $0x170] sm:$0xff]
      %v218 = vld [vmem:[%s165 + $0x178] sm:$0xff]
      %v219 = vld [vmem:[%s1] sm:$0xff]
      %v220 = vld [vmem:[%s1 + $0x8] sm:$0xff]
      %v221 = vld [vmem:[%s1 + $0x10] sm:$0xff]
      %v222 = vld [vmem:[%s1 + $0x18] sm:$0xff]
      %v223 = vld [vmem:[%s165 + $0x1] sm:$0xff]
      %v224 = vld [vmem:[%s165 + $0x9] sm:$0xff]
      %v225 = vld [vmem:[%s165 + $0x11] sm:$0xff]
      %v226 = vld [vmem:[%s165 + $0x19] sm:$0xff]
      %v227 = vld [vmem:[%s165 + $0x21] sm:$0xff]
      %v228 = vld [vmem:[%s165 + $0x29] sm:$0xff]
      %v229 = vld [vmem:[%s165 + $0x31] sm:$0xff]
      %v230 = vld [vmem:[%s165 + $0x39] sm:$0xff]
      %v231 = vld [vmem:[%s165 + $0x41] sm:$0xff]
      %v232 = vld [vmem:[%s165 + $0x49] sm:$0xff]
      %v233 = vld [vmem:[%s165 + $0x51] sm:$0xff]
      %v234 = vld [vmem:[%s165 + $0x59] sm:$0xff]
      %v235 = vld [vmem:[%s165 + $0x61] sm:$0xff]
      %v236 = vld [vmem:[%s165 + $0x69] sm:$0xff]
      %v237 = vld [vmem:[%s165 + $0x71] sm:$0xff]
      %v238 = vld [vmem:[%s165 + $0x79] sm:$0xff]
      %v239 = vld [vmem:[%s165 + $0x81] sm:$0xff]
      %v240 = vld [vmem:[%s165 + $0x89] sm:$0xff]
      %v241 = vld [vmem:[%s165 + $0x91] sm:$0xff]
      %v242 = vld [vmem:[%s165 + $0x99] sm:$0xff]
      %v243 = vld [vmem:[%s165 + $0xa1] sm:$0xff]
      %v244 = vld [vmem:[%s165 + $0xa9] sm:$0xff]
      %v245 = vld [vmem:[%s165 + $0xb1] sm:$0xff]
      %v246 = vld [vmem:[%s165 + $0xb9] sm:$0xff]
      %v247 = vld [vmem:[%s165 + $0xc1] sm:$0xff]
      %v248 = vld [vmem:[%s165 + $0xc9] sm:$0xff]
      %v249 = vld [vmem:[%s165 + $0xd1] sm:$0xff]
      %v250 = vld [vmem:[%s165 + $0xd9] sm:$0xff]
      %v251 = vld [vmem:[%s165 + $0xe1] sm:$0xff]
      %v252 = vld [vmem:[%s165 + $0xe9] sm:$0xff]
      %v253 = vld [vmem:[%s165 + $0xf1] sm:$0xff]
      %v254 = vld [vmem:[%s165 + $0xf9] sm:$0xff]
      %v255 = vld [vmem:[%s165 + $0x101] sm:$0xff]
      %v256 = vld [vmem:[%s165 + $0x109] sm:$0xff]
      %v257 = vld [vmem:[%s165 + $0x111] sm:$0xff]
      %v258 = vld [vmem:[%s165 + $0x119] sm:$0xff]
      %v259 = vld [vmem:[%s165 + $0x121] sm:$0xff]
      %v260 = vld [vmem:[%s165 + $0x129] sm:$0xff]
      %v261 = vld [vmem:[%s165 + $0x131] sm:$0xff]
      %v262 = vld [vmem:[%s165 + $0x139] sm:$0xff]
      %v263 = vld [vmem:[%s165 + $0x141] sm:$0xff]
      %v264 = vld [vmem:[%s165 + $0x149] sm:$0xff]
      %v265 = vld [vmem:[%s165 + $0x151] sm:$0xff]
      %v266 = vld [vmem:[%s165 + $0x159] sm:$0xff]
      %v267 = vld [vmem:[%s165 + $0x161] sm:$0xff]
      %v268 = vld [vmem:[%s165 + $0x169] sm:$0xff]
      %v269 = vld [vmem:[%s165 + $0x171] sm:$0xff]
      %v270 = vld [vmem:[%s165 + $0x179] sm:$0xff]
      %s271 = scalar_lea.vmem %s1, 32
      %v272 = vld [vmem:[%s271] sm:$0xff]
      %v273 = vld [vmem:[%s271 + $0x8] sm:$0xff]
      %v274 = vld [vmem:[%s271 + $0x10] sm:$0xff]
      %v275 = vld [vmem:[%s271 + $0x18] sm:$0xff]
      %vm276 = vcmask 31744
      %v278 = vsel %vm276, %v272, 0
      %v281 = vsel %vm276, %v273, 0
      %v284 = vsel %vm276, %v274, 0
      %v287 = vsel %vm276, %v275, 0
      %v290 = vsel %vm276, %v223, 0
      %v293 = vsel %vm276, %v224, 0
      %v296 = vsel %vm276, %v225, 0
      %v299 = vsel %vm276, %v226, 0
      %v302 = vsel %vm276, %v227, 0
      %v305 = vsel %vm276, %v228, 0
      %v308 = vsel %vm276, %v229, 0
      %v311 = vsel %vm276, %v230, 0
      %v314 = vsel %vm276, %v231, 0
      %v317 = vsel %vm276, %v232, 0
      %v320 = vsel %vm276, %v233, 0
      %v323 = vsel %vm276, %v234, 0
      %v326 = vsel %vm276, %v235, 0
      %v329 = vsel %vm276, %v236, 0
      %v332 = vsel %vm276, %v237, 0
      %v335 = vsel %vm276, %v238, 0
      %v338 = vsel %vm276, %v239, 0
      %v341 = vsel %vm276, %v240, 0
      %v344 = vsel %vm276, %v241, 0
      %v347 = vsel %vm276, %v242, 0
      %v350 = vsel %vm276, %v243, 0
      %v353 = vsel %vm276, %v244, 0
      %v356 = vsel %vm276, %v245, 0
      %v359 = vsel %vm276, %v246, 0
      %v362 = vsel %vm276, %v247, 0
      %v365 = vsel %vm276, %v248, 0
      %v368 = vsel %vm276, %v249, 0
      %v371 = vsel %vm276, %v250, 0
      %v374 = vsel %vm276, %v251, 0
      %v377 = vsel %vm276, %v252, 0
      %v380 = vsel %vm276, %v253, 0
      %v383 = vsel %vm276, %v254, 0
      %v386 = vsel %vm276, %v255, 0
      %v389 = vsel %vm276, %v256, 0
      %v392 = vsel %vm276, %v257, 0
      %v395 = vsel %vm276, %v258, 0
      %v398 = vsel %vm276, %v259, 0
      %v401 = vsel %vm276, %v260, 0
      %v404 = vsel %vm276, %v261, 0
      %v407 = vsel %vm276, %v262, 0
      %v410 = vsel %vm276, %v263, 0
      %v413 = vsel %vm276, %v264, 0
      %v416 = vsel %vm276, %v265, 0
      %v419 = vsel %vm276, %v266, 0
      %v422 = vsel %vm276, %v267, 0
      %v425 = vsel %vm276, %v268, 0
      %v428 = vsel %vm276, %v269, 0
      %v431 = vsel %vm276, %v270, 0
      %433 = vmatprep.subr.mxu0 0.0
      %434 = vmatpush1.xpose.msra.mxu0 %v335
      %435 = vmatprep.subr.mxu0 0.0
      %436 = vmatpush1.xpose.msra.mxu0 %v332
      %437 = vmatprep.subr.mxu0 0.0
      %438 = vmatpush1.xpose.msra.mxu0 %v329
      %439 = vmatprep.subr.mxu0 0.0
      %440 = vmatpush1.xpose.msra.mxu0 %v326
      %441 = vmatprep.subr.mxu0 0.0
      %442 = vmatpush1.xpose.msra.mxu0 %v323
      %443 = vmatprep.subr.mxu0 0.0
      %444 = vmatpush1.xpose.msra.mxu0 %v320
      %445 = vmatprep.subr.mxu0 0.0
      %446 = vmatpush1.xpose.msra.mxu0 %v317
      %447 = vmatprep.subr.mxu0 0.0
      %448 = vmatpush1.xpose.msra.mxu0 %v314
      %449 = vmatprep.subr.mxu0 0.0
      %450 = vmatpush1.xpose.msra.mxu0 %v311
      %451 = vmatprep.subr.mxu0 0.0
      %452 = vmatpush1.xpose.msra.mxu0 %v308
      %453 = vmatprep.subr.mxu0 0.0
      %454 = vmatpush1.xpose.msra.mxu0 %v305
      %455 = vmatprep.subr.mxu0 0.0
      %456 = vmatpush1.xpose.msra.mxu0 %v302
      %457 = vmatprep.subr.mxu0 0.0
      %458 = vmatpush1.xpose.msra.mxu0 %v299
      %459 = vmatprep.subr.mxu0 0.0
      %460 = vmatpush1.xpose.msra.mxu0 %v296
      %461 = vmatprep.subr.mxu0 0.0
      %462 = vmatpush1.xpose.msra.mxu0 %v293
      %463 = vmatprep.subr.mxu0 0.0
      %464 = vmatpush1.xpose.msra.mxu0 %v290
      %465 = vmatprep.subr.mxu0 0.0
      %466 = vmatpush2.xpose.msra.mxu0 %v383
      %467 = vmatprep.subr.mxu0 0.0
      %468 = vmatpush2.xpose.msra.mxu0 %v380
      %469 = vmatprep.subr.mxu0 0.0
      %470 = vmatpush2.xpose.msra.mxu0 %v377
      %471 = vmatprep.subr.mxu0 0.0
      %472 = vmatpush2.xpose.msra.mxu0 %v374
      %473 = vmatprep.subr.mxu0 0.0
      %474 = vmatpush2.xpose.msra.mxu0 %v371
      %475 = vmatprep.subr.mxu0 0.0
      %476 = vmatpush2.xpose.msra.mxu0 %v368
      %477 = vmatprep.subr.mxu0 0.0
      %478 = vmatpush2.xpose.msra.mxu0 %v365
      %479 = vmatprep.subr.mxu0 0.0
      %480 = vmatpush2.xpose.msra.mxu0 %v362
      %481 = vmatprep.subr.mxu0 0.0
      %482 = vmatpush2.xpose.msra.mxu0 %v359
      %483 = vmatprep.subr.mxu0 0.0
      %484 = vmatpush2.xpose.msra.mxu0 %v356
      %485 = vmatprep.subr.mxu0 0.0
      %486 = vmatpush2.xpose.msra.mxu0 %v353
      %487 = vmatprep.subr.mxu0 0.0
      %488 = vmatpush2.xpose.msra.mxu0 %v350
      %489 = vmatprep.subr.mxu0 0.0
      %490 = vmatpush2.xpose.msra.mxu0 %v347
      %491 = vmatprep.subr.mxu0 0.0
      %492 = vmatpush2.xpose.msra.mxu0 %v344
      %493 = vmatprep.subr.mxu0 0.0
      %494 = vmatpush2.xpose.msra.mxu0 %v341
      %495 = vmatprep.subr.mxu0 0.0
      %496 = vmatpush2.xpose.msra.mxu0 %v338
      %497 = vmatprep.mubr.f32.mxu0 0.0
      %498 = vmatmul.mubr.f32.gmra.mxu0 %v278
      %v499 = vpop.f32.mrf.mxu0
      %v500 = vadd.f32 0.0, %v499
      %v501 = vpop.f32.mrf.mxu0
      %v502 = vadd.f32 0.0, %v501
      %503 = vmatprep.mubr.f32.mxu0 0.0
      %504 = vmatmul.mubr.f32.gmra.mxu0 %v281
      %v505 = vpop.f32.mrf.mxu0
      %v506 = vadd.f32 0.0, %v505
      %v507 = vpop.f32.mrf.mxu0
      %v508 = vadd.f32 0.0, %v507
      %509 = vmatprep.mubr.f32.mxu0 0.0
      %510 = vmatmul.mubr.f32.gmra.mxu0 %v284
      %v511 = vpop.f32.mrf.mxu0
      %v512 = vadd.f32 0.0, %v511
      %v513 = vpop.f32.mrf.mxu0
      %v514 = vadd.f32 0.0, %v513
      %515 = vmatprep.mubr.f32.mxu0 0.0
      %516 = vmatmul.mubr.f32.gmra.mxu0 %v287
      %v517 = vpop.f32.mrf.mxu0
      %v518 = vadd.f32 0.0, %v517
      %v519 = vpop.f32.mrf.mxu0
      %v520 = vadd.f32 0.0, %v519
      %521 = vdwg.mxu0
      %522 = vmatprep.subr.mxu0 0.0
      %523 = vmatpush1.xpose.msra.mxu0 %v431
      %524 = vmatprep.subr.mxu0 0.0
      %525 = vmatpush1.xpose.msra.mxu0 %v428
      %526 = vmatprep.subr.mxu0 0.0
      %527 = vmatpush1.xpose.msra.mxu0 %v425
      %528 = vmatprep.subr.mxu0 0.0
      %529 = vmatpush1.xpose.msra.mxu0 %v422
      %530 = vmatprep.subr.mxu0 0.0
      %531 = vmatpush1.xpose.msra.mxu0 %v419
      %532 = vmatprep.subr.mxu0 0.0
      %533 = vmatpush1.xpose.msra.mxu0 %v416
      %534 = vmatprep.subr.mxu0 0.0
      %535 = vmatpush1.xpose.msra.mxu0 %v413
      %536 = vmatprep.subr.mxu0 0.0
      %537 = vmatpush1.xpose.msra.mxu0 %v410
      %538 = vmatprep.subr.mxu0 0.0
      %539 = vmatpush1.xpose.msra.mxu0 %v407
      %540 = vmatprep.subr.mxu0 0.0
      %541 = vmatpush1.xpose.msra.mxu0 %v404
      %542 = vmatprep.subr.mxu0 0.0
      %543 = vmatpush1.xpose.msra.mxu0 %v401
      %544 = vmatprep.subr.mxu0 0.0
      %545 = vmatpush1.xpose.msra.mxu0 %v398
      %546 = vmatprep.subr.mxu0 0.0
      %547 = vmatpush1.xpose.msra.mxu0 %v395
      %548 = vmatprep.subr.mxu0 0.0
      %549 = vmatpush1.xpose.msra.mxu0 %v392
      %550 = vmatprep.subr.mxu0 0.0
      %551 = vmatpush1.xpose.msra.mxu0 %v389
      %552 = vmatprep.subr.mxu0 0.0
      %553 = vmatpush1.xpose.msra.mxu0 %v386
      %554 = vmatprep.subr.mxu0 0.0
      %555 = vmatpush2.xpose.msra.mxu0 0.0
      %556 = vmatprep.subr.mxu0 0.0
      %557 = vmatpush2.xpose.msra.mxu0 0.0
      %558 = vmatprep.subr.mxu0 0.0
      %559 = vmatpush2.xpose.msra.mxu0 0.0
      %560 = vmatprep.subr.mxu0 0.0
      %561 = vmatpush2.xpose.msra.mxu0 0.0
      %562 = vmatprep.subr.mxu0 0.0
      %563 = vmatpush2.xpose.msra.mxu0 0.0
      %564 = vmatprep.subr.mxu0 0.0
      %565 = vmatpush2.xpose.msra.mxu0 0.0
      %566 = vmatprep.subr.mxu0 0.0
      %567 = vmatpush2.xpose.msra.mxu0 0.0
      %568 = vmatprep.subr.mxu0 0.0
      %569 = vmatpush2.xpose.msra.mxu0 0.0
      %570 = vmatprep.subr.mxu0 0.0
      %571 = vmatpush2.xpose.msra.mxu0 0.0
      %572 = vmatprep.subr.mxu0 0.0
      %573 = vmatpush2.xpose.msra.mxu0 0.0
      %574 = vmatprep.subr.mxu0 0.0
      %575 = vmatpush2.xpose.msra.mxu0 0.0
      %576 = vmatprep.subr.mxu0 0.0
      %577 = vmatpush2.xpose.msra.mxu0 0.0
      %578 = vmatprep.subr.mxu0 0.0
      %579 = vmatpush2.xpose.msra.mxu0 0.0
      %580 = vmatprep.subr.mxu0 0.0
      %581 = vmatpush2.xpose.msra.mxu0 0.0
      %582 = vmatprep.subr.mxu0 0.0
      %583 = vmatpush2.xpose.msra.mxu0 0.0
      %584 = vmatprep.subr.mxu0 0.0
      %585 = vmatpush2.xpose.msra.mxu0 0.0
      %586 = vmatprep.mubr.f32.mxu0 0.0
      %587 = vmatmul.mubr.f32.gmra.mxu0 %v278
      %v588 = vpop.f32.mrf.mxu0
      %v589 = vadd.f32 0.0, %v588
      %v590 = vpop.f32.mrf.mxu0
      %591 = vmatprep.mubr.f32.mxu0 0.0
      %592 = vmatmul.mubr.f32.gmra.mxu0 %v281
      %v593 = vpop.f32.mrf.mxu0
      %v594 = vadd.f32 0.0, %v593
      %v595 = vpop.f32.mrf.mxu0
      %596 = vmatprep.mubr.f32.mxu0 0.0
      %597 = vmatmul.mubr.f32.gmra.mxu0 %v284
      %v598 = vpop.f32.mrf.mxu0
      %v599 = vadd.f32 0.0, %v598
      %v600 = vpop.f32.mrf.mxu0
      %601 = vmatprep.mubr.f32.mxu0 0.0
      %602 = vmatmul.mubr.f32.gmra.mxu0 %v287
      %v603 = vpop.f32.mrf.mxu0
      %v604 = vadd.f32 0.0, %v603
      %v605 = vpop.f32.mrf.mxu0
      %606 = vdwg.mxu0
      %v608 = vsel %vm276, %v219, 0
      %v611 = vsel %vm276, %v220, 0
      %v614 = vsel %vm276, %v221, 0
      %v617 = vsel %vm276, %v222, 0
      %v620 = vsel %vm276, %v171, 0
      %v623 = vsel %vm276, %v172, 0
      %v626 = vsel %vm276, %v173, 0
      %v629 = vsel %vm276, %v174, 0
      %v632 = vsel %vm276, %v175, 0
      %v635 = vsel %vm276, %v176, 0
      %v638 = vsel %vm276, %v177, 0
      %v641 = vsel %vm276, %v178, 0
      %v644 = vsel %vm276, %v179, 0
      %v647 = vsel %vm276, %v180, 0
      %v650 = vsel %vm276, %v181, 0
      %v653 = vsel %vm276, %v182, 0
      %v656 = vsel %vm276, %v183, 0
      %v659 = vsel %vm276, %v184, 0
      %v662 = vsel %vm276, %v185, 0
      %v665 = vsel %vm276, %v186, 0
      %v668 = vsel %vm276, %v187, 0
      %v671 = vsel %vm276, %v188, 0
      %v674 = vsel %vm276, %v189, 0
      %v677 = vsel %vm276, %v190, 0
      %v680 = vsel %vm276, %v191, 0
      %v683 = vsel %vm276, %v192, 0
      %v686 = vsel %vm276, %v193, 0
      %v689 = vsel %vm276, %v194, 0
      %v692 = vsel %vm276, %v195, 0
      %v695 = vsel %vm276, %v196, 0
      %v698 = vsel %vm276, %v197, 0
      %v701 = vsel %vm276, %v198, 0
      %v704 = vsel %vm276, %v199, 0
      %v707 = vsel %vm276, %v200, 0
      %v710 = vsel %vm276, %v201, 0
      %v713 = vsel %vm276, %v202, 0
      %v716 = vsel %vm276, %v203, 0
      %v719 = vsel %vm276, %v204, 0
      %v722 = vsel %vm276, %v205, 0
      %v725 = vsel %vm276, %v206, 0
      %v728 = vsel %vm276, %v207, 0
      %v731 = vsel %vm276, %v208, 0
      %v734 = vsel %vm276, %v209, 0
      %v737 = vsel %vm276, %v210, 0
      %v740 = vsel %vm276, %v211, 0
      %v743 = vsel %vm276, %v212, 0
      %v746 = vsel %vm276, %v213, 0
      %v749 = vsel %vm276, %v214, 0
      %v752 = vsel %vm276, %v215, 0
      %v755 = vsel %vm276, %v216, 0
      %v758 = vsel %vm276, %v217, 0
      %v761 = vsel %vm276, %v218, 0
      %763 = vmatprep.subr.mxu0 0.0
      %764 = vmatpush1.xpose.msra.mxu0 %v665
      %765 = vmatprep.subr.mxu0 0.0
      %766 = vmatpush1.xpose.msra.mxu0 %v662
      %767 = vmatprep.subr.mxu0 0.0
      %768 = vmatpush1.xpose.msra.mxu0 %v659
      %769 = vmatprep.subr.mxu0 0.0
      %770 = vmatpush1.xpose.msra.mxu0 %v656
      %771 = vmatprep.subr.mxu0 0.0
      %772 = vmatpush1.xpose.msra.mxu0 %v653
      %773 = vmatprep.subr.mxu0 0.0
      %774 = vmatpush1.xpose.msra.mxu0 %v650
      %775 = vmatprep.subr.mxu0 0.0
      %776 = vmatpush1.xpose.msra.mxu0 %v647
      %777 = vmatprep.subr.mxu0 0.0
      %778 = vmatpush1.xpose.msra.mxu0 %v644
      %779 = vmatprep.subr.mxu0 0.0
      %780 = vmatpush1.xpose.msra.mxu0 %v641
      %781 = vmatprep.subr.mxu0 0.0
      %782 = vmatpush1.xpose.msra.mxu0 %v638
      %783 = vmatprep.subr.mxu0 0.0
      %784 = vmatpush1.xpose.msra.mxu0 %v635
      %785 = vmatprep.subr.mxu0 0.0
      %786 = vmatpush1.xpose.msra.mxu0 %v632
      %787 = vmatprep.subr.mxu0 0.0
      %788 = vmatpush1.xpose.msra.mxu0 %v629
      %789 = vmatprep.subr.mxu0 0.0
      %790 = vmatpush1.xpose.msra.mxu0 %v626
      %791 = vmatprep.subr.mxu0 0.0
      %792 = vmatpush1.xpose.msra.mxu0 %v623
      %793 = vmatprep.subr.mxu0 0.0
      %794 = vmatpush1.xpose.msra.mxu0 %v620
      %795 = vmatprep.subr.mxu0 0.0
      %796 = vmatpush2.xpose.msra.mxu0 %v713
      %797 = vmatprep.subr.mxu0 0.0
      %798 = vmatpush2.xpose.msra.mxu0 %v710
      %799 = vmatprep.subr.mxu0 0.0
      %800 = vmatpush2.xpose.msra.mxu0 %v707
      %801 = vmatprep.subr.mxu0 0.0
      %802 = vmatpush2.xpose.msra.mxu0 %v704
      %803 = vmatprep.subr.mxu0 0.0
      %804 = vmatpush2.xpose.msra.mxu0 %v701
      %805 = vmatprep.subr.mxu0 0.0
      %806 = vmatpush2.xpose.msra.mxu0 %v698
      %807 = vmatprep.subr.mxu0 0.0
      %808 = vmatpush2.xpose.msra.mxu0 %v695
      %809 = vmatprep.subr.mxu0 0.0
      %810 = vmatpush2.xpose.msra.mxu0 %v692
      %811 = vmatprep.subr.mxu0 0.0
      %812 = vmatpush2.xpose.msra.mxu0 %v689
      %813 = vmatprep.subr.mxu0 0.0
      %814 = vmatpush2.xpose.msra.mxu0 %v686
      %815 = vmatprep.subr.mxu0 0.0
      %816 = vmatpush2.xpose.msra.mxu0 %v683
      %817 = vmatprep.subr.mxu0 0.0
      %818 = vmatpush2.xpose.msra.mxu0 %v680
      %819 = vmatprep.subr.mxu0 0.0
      %820 = vmatpush2.xpose.msra.mxu0 %v677
      %821 = vmatprep.subr.mxu0 0.0
      %822 = vmatpush2.xpose.msra.mxu0 %v674
      %823 = vmatprep.subr.mxu0 0.0
      %824 = vmatpush2.xpose.msra.mxu0 %v671
      %825 = vmatprep.subr.mxu0 0.0
      %826 = vmatpush2.xpose.msra.mxu0 %v668
      %827 = vmatprep.mubr.f32.mxu0 0.0
      %828 = vmatmul.mubr.f32.gmra.mxu0 %v608
      %v829 = vpop.f32.mrf.mxu0
      %v830 = vadd.f32 %v500, %v829
      %v831 = vpop.f32.mrf.mxu0
      %v832 = vadd.f32 %v502, %v831
      %833 = vmatprep.mubr.f32.mxu0 0.0
      %834 = vmatmul.mubr.f32.gmra.mxu0 %v611
      %v835 = vpop.f32.mrf.mxu0
      %v836 = vadd.f32 %v506, %v835
      %v837 = vpop.f32.mrf.mxu0
      %v838 = vadd.f32 %v508, %v837
      %839 = vmatprep.mubr.f32.mxu0 0.0
      %840 = vmatmul.mubr.f32.gmra.mxu0 %v614
      %v841 = vpop.f32.mrf.mxu0
      %v842 = vadd.f32 %v512, %v841
      %v843 = vpop.f32.mrf.mxu0
      %v844 = vadd.f32 %v514, %v843
      %845 = vmatprep.mubr.f32.mxu0 0.0
      %846 = vmatmul.mubr.f32.gmra.mxu0 %v617
      %v847 = vpop.f32.mrf.mxu0
      %v848 = vadd.f32 %v518, %v847
      %v849 = vpop.f32.mrf.mxu0
      %v850 = vadd.f32 %v520, %v849
      %851 = vdwg.mxu0
      %852 = vmatprep.subr.mxu0 0.0
      %853 = vmatpush1.xpose.msra.mxu0 %v761
      %854 = vmatprep.subr.mxu0 0.0
      %855 = vmatpush1.xpose.msra.mxu0 %v758
      %856 = vmatprep.subr.mxu0 0.0
      %857 = vmatpush1.xpose.msra.mxu0 %v755
      %858 = vmatprep.subr.mxu0 0.0
      %859 = vmatpush1.xpose.msra.mxu0 %v752
      %860 = vmatprep.subr.mxu0 0.0
      %861 = vmatpush1.xpose.msra.mxu0 %v749
      %862 = vmatprep.subr.mxu0 0.0
      %863 = vmatpush1.xpose.msra.mxu0 %v746
      %864 = vmatprep.subr.mxu0 0.0
      %865 = vmatpush1.xpose.msra.mxu0 %v743
      %866 = vmatprep.subr.mxu0 0.0
      %867 = vmatpush1.xpose.msra.mxu0 %v740
      %868 = vmatprep.subr.mxu0 0.0
      %869 = vmatpush1.xpose.msra.mxu0 %v737
      %870 = vmatprep.subr.mxu0 0.0
      %871 = vmatpush1.xpose.msra.mxu0 %v734
      %872 = vmatprep.subr.mxu0 0.0
      %873 = vmatpush1.xpose.msra.mxu0 %v731
      %874 = vmatprep.subr.mxu0 0.0
      %875 = vmatpush1.xpose.msra.mxu0 %v728
      %876 = vmatprep.subr.mxu0 0.0
      %877 = vmatpush1.xpose.msra.mxu0 %v725
      %878 = vmatprep.subr.mxu0 0.0
      %879 = vmatpush1.xpose.msra.mxu0 %v722
      %880 = vmatprep.subr.mxu0 0.0
      %881 = vmatpush1.xpose.msra.mxu0 %v719
      %882 = vmatprep.subr.mxu0 0.0
      %883 = vmatpush1.xpose.msra.mxu0 %v716
      %884 = vmatprep.subr.mxu0 0.0
      %885 = vmatpush2.xpose.msra.mxu0 0.0
      %886 = vmatprep.subr.mxu0 0.0
      %887 = vmatpush2.xpose.msra.mxu0 0.0
      %888 = vmatprep.subr.mxu0 0.0
      %889 = vmatpush2.xpose.msra.mxu0 0.0
      %890 = vmatprep.subr.mxu0 0.0
      %891 = vmatpush2.xpose.msra.mxu0 0.0
      %892 = vmatprep.subr.mxu0 0.0
      %893 = vmatpush2.xpose.msra.mxu0 0.0
      %894 = vmatprep.subr.mxu0 0.0
      %895 = vmatpush2.xpose.msra.mxu0 0.0
      %896 = vmatprep.subr.mxu0 0.0
      %897 = vmatpush2.xpose.msra.mxu0 0.0
      %898 = vmatprep.subr.mxu0 0.0
      %899 = vmatpush2.xpose.msra.mxu0 0.0
      %900 = vmatprep.subr.mxu0 0.0
      %901 = vmatpush2.xpose.msra.mxu0 0.0
      %902 = vmatprep.subr.mxu0 0.0
      %903 = vmatpush2.xpose.msra.mxu0 0.0
      %904 = vmatprep.subr.mxu0 0.0
      %905 = vmatpush2.xpose.msra.mxu0 0.0
      %906 = vmatprep.subr.mxu0 0.0
      %907 = vmatpush2.xpose.msra.mxu0 0.0
      %908 = vmatprep.subr.mxu0 0.0
      %909 = vmatpush2.xpose.msra.mxu0 0.0
      %910 = vmatprep.subr.mxu0 0.0
      %911 = vmatpush2.xpose.msra.mxu0 0.0
      %912 = vmatprep.subr.mxu0 0.0
      %913 = vmatpush2.xpose.msra.mxu0 0.0
      %914 = vmatprep.subr.mxu0 0.0
      %915 = vmatpush2.xpose.msra.mxu0 0.0
      %916 = vmatprep.mubr.f32.mxu0 0.0
      %917 = vmatmul.mubr.f32.gmra.mxu0 %v608
      %v918 = vpop.f32.mrf.mxu0
      %v919 = vadd.f32 %v589, %v918
      %v920 = vpop.f32.mrf.mxu0
      %921 = vmatprep.mubr.f32.mxu0 0.0
      %922 = vmatmul.mubr.f32.gmra.mxu0 %v611
      %v923 = vpop.f32.mrf.mxu0
      %v924 = vadd.f32 %v594, %v923
      %v925 = vpop.f32.mrf.mxu0
      %926 = vmatprep.mubr.f32.mxu0 0.0
      %927 = vmatmul.mubr.f32.gmra.mxu0 %v614
      %v928 = vpop.f32.mrf.mxu0
      %v929 = vadd.f32 %v599, %v928
      %v930 = vpop.f32.mrf.mxu0
      %931 = vmatprep.mubr.f32.mxu0 0.0
      %932 = vmatmul.mubr.f32.gmra.mxu0 %v617
      %v933 = vpop.f32.mrf.mxu0
      %v934 = vadd.f32 %v604, %v933
      %v935 = vpop.f32.mrf.mxu0
      %936 = vdwg.mxu0
      %v937 = vld [vmem:[%s165 + $0x2] sm:$0xff]
      %v938 = vld [vmem:[%s165 + $0xa] sm:$0xff]
      %v939 = vld [vmem:[%s165 + $0x12] sm:$0xff]
      %v940 = vld [vmem:[%s165 + $0x1a] sm:$0xff]
      %v941 = vld [vmem:[%s165 + $0x22] sm:$0xff]
      %v942 = vld [vmem:[%s165 + $0x2a] sm:$0xff]
      %v943 = vld [vmem:[%s165 + $0x32] sm:$0xff]
      %v944 = vld [vmem:[%s165 + $0x3a] sm:$0xff]
      %v945 = vld [vmem:[%s165 + $0x42] sm:$0xff]
      %v946 = vld [vmem:[%s165 + $0x4a] sm:$0xff]
      %v947 = vld [vmem:[%s165 + $0x52] sm:$0xff]
      %v948 = vld [vmem:[%s165 + $0x5a] sm:$0xff]
      %v949 = vld [vmem:[%s165 + $0x62] sm:$0xff]
      %v950 = vld [vmem:[%s165 + $0x6a] sm:$0xff]
      %v951 = vld [vmem:[%s165 + $0x72] sm:$0xff]
      %v952 = vld [vmem:[%s165 + $0x7a] sm:$0xff]
      %v953 = vld [vmem:[%s165 + $0x82] sm:$0xff]
      %v954 = vld [vmem:[%s165 + $0x8a] sm:$0xff]
      %v955 = vld [vmem:[%s165 + $0x92] sm:$0xff]
      %v956 = vld [vmem:[%s165 + $0x9a] sm:$0xff]
      %v957 = vld [vmem:[%s165 + $0xa2] sm:$0xff]
      %v958 = vld [vmem:[%s165 + $0xaa] sm:$0xff]
      %v959 = vld [vmem:[%s165 + $0xb2] sm:$0xff]
      %v960 = vld [vmem:[%s165 + $0xba] sm:$0xff]
      %v961 = vld [vmem:[%s165 + $0xc2] sm:$0xff]
      %v962 = vld [vmem:[%s165 + $0xca] sm:$0xff]
      %v963 = vld [vmem:[%s165 + $0xd2] sm:$0xff]
      %v964 = vld [vmem:[%s165 + $0xda] sm:$0xff]
      %v965 = vld [vmem:[%s165 + $0xe2] sm:$0xff]
      %v966 = vld [vmem:[%s165 + $0xea] sm:$0xff]
      %v967 = vld [vmem:[%s165 + $0xf2] sm:$0xff]
      %v968 = vld [vmem:[%s165 + $0xfa] sm:$0xff]
      %v969 = vld [vmem:[%s165 + $0x102] sm:$0xff]
      %v970 = vld [vmem:[%s165 + $0x10a] sm:$0xff]
      %v971 = vld [vmem:[%s165 + $0x112] sm:$0xff]
      %v972 = vld [vmem:[%s165 + $0x11a] sm:$0xff]
      %v973 = vld [vmem:[%s165 + $0x122] sm:$0xff]
      %v974 = vld [vmem:[%s165 + $0x12a] sm:$0xff]
      %v975 = vld [vmem:[%s165 + $0x132] sm:$0xff]
      %v976 = vld [vmem:[%s165 + $0x13a] sm:$0xff]
      %v977 = vld [vmem:[%s165 + $0x142] sm:$0xff]
      %v978 = vld [vmem:[%s165 + $0x14a] sm:$0xff]
      %v979 = vld [vmem:[%s165 + $0x152] sm:$0xff]
      %v980 = vld [vmem:[%s165 + $0x15a] sm:$0xff]
      %v981 = vld [vmem:[%s165 + $0x162] sm:$0xff]
      %v982 = vld [vmem:[%s165 + $0x16a] sm:$0xff]
      %v983 = vld [vmem:[%s165 + $0x172] sm:$0xff]
      %v984 = vld [vmem:[%s165 + $0x17a] sm:$0xff]
      %s985 = scalar_lea.vmem %s1, 64
      %v986 = vld [vmem:[%s985] sm:$0xff]
      %v987 = vld [vmem:[%s985 + $0x8] sm:$0xff]
      %v988 = vld [vmem:[%s985 + $0x10] sm:$0xff]
      %v989 = vld [vmem:[%s985 + $0x18] sm:$0xff]
      %v991 = vsel %vm276, %v986, 0
      %v994 = vsel %vm276, %v987, 0
      %v997 = vsel %vm276, %v988, 0
      %v1000 = vsel %vm276, %v989, 0
      %v1003 = vsel %vm276, %v937, 0
      %v1006 = vsel %vm276, %v938, 0
      %v1009 = vsel %vm276, %v939, 0
      %v1012 = vsel %vm276, %v940, 0
      %v1015 = vsel %vm276, %v941, 0
      %v1018 = vsel %vm276, %v942, 0
      %v1021 = vsel %vm276, %v943, 0
      %v1024 = vsel %vm276, %v944, 0
      %v1027 = vsel %vm276, %v945, 0
      %v1030 = vsel %vm276, %v946, 0
      %v1033 = vsel %vm276, %v947, 0
      %v1036 = vsel %vm276, %v948, 0
      %v1039 = vsel %vm276, %v949, 0
      %v1042 = vsel %vm276, %v950, 0
      %v1045 = vsel %vm276, %v951, 0
      %v1048 = vsel %vm276, %v952, 0
      %v1051 = vsel %vm276, %v953, 0
      %v1054 = vsel %vm276, %v954, 0
      %v1057 = vsel %vm276, %v955, 0
      %v1060 = vsel %vm276, %v956, 0
      %v1063 = vsel %vm276, %v957, 0
      %v1066 = vsel %vm276, %v958, 0
      %v1069 = vsel %vm276, %v959, 0
      %v1072 = vsel %vm276, %v960, 0
      %v1075 = vsel %vm276, %v961, 0
      %v1078 = vsel %vm276, %v962, 0
      %v1081 = vsel %vm276, %v963, 0
      %v1084 = vsel %vm276, %v964, 0
      %v1087 = vsel %vm276, %v965, 0
      %v1090 = vsel %vm276, %v966, 0
      %v1093 = vsel %vm276, %v967, 0
      %v1096 = vsel %vm276, %v968, 0
      %v1099 = vsel %vm276, %v969, 0
      %v1102 = vsel %vm276, %v970, 0
      %v1105 = vsel %vm276, %v971, 0
      %v1108 = vsel %vm276, %v972, 0
      %v1111 = vsel %vm276, %v973, 0
      %v1114 = vsel %vm276, %v974, 0
      %v1117 = vsel %vm276, %v975, 0
      %v1120 = vsel %vm276, %v976, 0
      %v1123 = vsel %vm276, %v977, 0
      %v1126 = vsel %vm276, %v978, 0
      %v1129 = vsel %vm276, %v979, 0
      %v1132 = vsel %vm276, %v980, 0
      %v1135 = vsel %vm276, %v981, 0
      %v1138 = vsel %vm276, %v982, 0
      %v1141 = vsel %vm276, %v983, 0
      %v1144 = vsel %vm276, %v984, 0
      %1146 = vmatprep.subr.mxu0 0.0
      %1147 = vmatpush1.xpose.msra.mxu0 %v1048
      %1148 = vmatprep.subr.mxu0 0.0
      %1149 = vmatpush1.xpose.msra.mxu0 %v1045
      %1150 = vmatprep.subr.mxu0 0.0
      %1151 = vmatpush1.xpose.msra.mxu0 %v1042
      %1152 = vmatprep.subr.mxu0 0.0
      %1153 = vmatpush1.xpose.msra.mxu0 %v1039
      %1154 = vmatprep.subr.mxu0 0.0
      %1155 = vmatpush1.xpose.msra.mxu0 %v1036
      %1156 = vmatprep.subr.mxu0 0.0
      %1157 = vmatpush1.xpose.msra.mxu0 %v1033
      %1158 = vmatprep.subr.mxu0 0.0
      %1159 = vmatpush1.xpose.msra.mxu0 %v1030
      %1160 = vmatprep.subr.mxu0 0.0
      %1161 = vmatpush1.xpose.msra.mxu0 %v1027
      %1162 = vmatprep.subr.mxu0 0.0
      %1163 = vmatpush1.xpose.msra.mxu0 %v1024
      %1164 = vmatprep.subr.mxu0 0.0
      %1165 = vmatpush1.xpose.msra.mxu0 %v1021
      %1166 = vmatprep.subr.mxu0 0.0
      %1167 = vmatpush1.xpose.msra.mxu0 %v1018
      %1168 = vmatprep.subr.mxu0 0.0
      %1169 = vmatpush1.xpose.msra.mxu0 %v1015
      %1170 = vmatprep.subr.mxu0 0.0
      %1171 = vmatpush1.xpose.msra.mxu0 %v1012
      %1172 = vmatprep.subr.mxu0 0.0
      %1173 = vmatpush1.xpose.msra.mxu0 %v1009
      %1174 = vmatprep.subr.mxu0 0.0
      %1175 = vmatpush1.xpose.msra.mxu0 %v1006
      %1176 = vmatprep.subr.mxu0 0.0
      %1177 = vmatpush1.xpose.msra.mxu0 %v1003
      %1178 = vmatprep.subr.mxu0 0.0
      %1179 = vmatpush2.xpose.msra.mxu0 %v1096
      %1180 = vmatprep.subr.mxu0 0.0
      %1181 = vmatpush2.xpose.msra.mxu0 %v1093
      %1182 = vmatprep.subr.mxu0 0.0
      %1183 = vmatpush2.xpose.msra.mxu0 %v1090
      %1184 = vmatprep.subr.mxu0 0.0
      %1185 = vmatpush2.xpose.msra.mxu0 %v1087
      %1186 = vmatprep.subr.mxu0 0.0
      %1187 = vmatpush2.xpose.msra.mxu0 %v1084
      %1188 = vmatprep.subr.mxu0 0.0
      %1189 = vmatpush2.xpose.msra.mxu0 %v1081
      %1190 = vmatprep.subr.mxu0 0.0
      %1191 = vmatpush2.xpose.msra.mxu0 %v1078
      %1192 = vmatprep.subr.mxu0 0.0
      %1193 = vmatpush2.xpose.msra.mxu0 %v1075
      %1194 = vmatprep.subr.mxu0 0.0
      %1195 = vmatpush2.xpose.msra.mxu0 %v1072
      %1196 = vmatprep.subr.mxu0 0.0
      %1197 = vmatpush2.xpose.msra.mxu0 %v1069
      %1198 = vmatprep.subr.mxu0 0.0
      %1199 = vmatpush2.xpose.msra.mxu0 %v1066
      %1200 = vmatprep.subr.mxu0 0.0
      %1201 = vmatpush2.xpose.msra.mxu0 %v1063
      %1202 = vmatprep.subr.mxu0 0.0
      %1203 = vmatpush2.xpose.msra.mxu0 %v1060
      %1204 = vmatprep.subr.mxu0 0.0
      %1205 = vmatpush2.xpose.msra.mxu0 %v1057
      %1206 = vmatprep.subr.mxu0 0.0
      %1207 = vmatpush2.xpose.msra.mxu0 %v1054
      %1208 = vmatprep.subr.mxu0 0.0
      %1209 = vmatpush2.xpose.msra.mxu0 %v1051
      %1210 = vmatprep.mubr.f32.mxu0 0.0
      %1211 = vmatmul.mubr.f32.gmra.mxu0 %v991
      %v1212 = vpop.f32.mrf.mxu0
      %v1213 = vadd.f32 0.0, %v1212
      %v1214 = vpop.f32.mrf.mxu0
      %v1215 = vadd.f32 0.0, %v1214
      %1216 = vmatprep.mubr.f32.mxu0 0.0
      %1217 = vmatmul.mubr.f32.gmra.mxu0 %v994
      %v1218 = vpop.f32.mrf.mxu0
      %v1219 = vadd.f32 0.0, %v1218
      %v1220 = vpop.f32.mrf.mxu0
      %v1221 = vadd.f32 0.0, %v1220
      %1222 = vmatprep.mubr.f32.mxu0 0.0
      %1223 = vmatmul.mubr.f32.gmra.mxu0 %v997
      %v1224 = vpop.f32.mrf.mxu0
      %v1225 = vadd.f32 0.0, %v1224
      %v1226 = vpop.f32.mrf.mxu0
      %v1227 = vadd.f32 0.0, %v1226
      %1228 = vmatprep.mubr.f32.mxu0 0.0
      %1229 = vmatmul.mubr.f32.gmra.mxu0 %v1000
      %v1230 = vpop.f32.mrf.mxu0
      %v1231 = vadd.f32 0.0, %v1230
      %v1232 = vpop.f32.mrf.mxu0
      %v1233 = vadd.f32 0.0, %v1232
      %1234 = vdwg.mxu0
      %1235 = vmatprep.subr.mxu0 0.0
      %1236 = vmatpush1.xpose.msra.mxu0 %v1144
      %1237 = vmatprep.subr.mxu0 0.0
      %1238 = vmatpush1.xpose.msra.mxu0 %v1141
      %1239 = vmatprep.subr.mxu0 0.0
      %1240 = vmatpush1.xpose.msra.mxu0 %v1138
      %1241 = vmatprep.subr.mxu0 0.0
      %1242 = vmatpush1.xpose.msra.mxu0 %v1135
      %1243 = vmatprep.subr.mxu0 0.0
      %1244 = vmatpush1.xpose.msra.mxu0 %v1132
      %1245 = vmatprep.subr.mxu0 0.0
      %1246 = vmatpush1.xpose.msra.mxu0 %v1129
      %1247 = vmatprep.subr.mxu0 0.0
      %1248 = vmatpush1.xpose.msra.mxu0 %v1126
      %1249 = vmatprep.subr.mxu0 0.0
      %1250 = vmatpush1.xpose.msra.mxu0 %v1123
      %1251 = vmatprep.subr.mxu0 0.0
      %1252 = vmatpush1.xpose.msra.mxu0 %v1120
      %1253 = vmatprep.subr.mxu0 0.0
      %1254 = vmatpush1.xpose.msra.mxu0 %v1117
      %1255 = vmatprep.subr.mxu0 0.0
      %1256 = vmatpush1.xpose.msra.mxu0 %v1114
      %1257 = vmatprep.subr.mxu0 0.0
      %1258 = vmatpush1.xpose.msra.mxu0 %v1111
      %1259 = vmatprep.subr.mxu0 0.0
      %1260 = vmatpush1.xpose.msra.mxu0 %v1108
      %1261 = vmatprep.subr.mxu0 0.0
      %1262 = vmatpush1.xpose.msra.mxu0 %v1105
      %1263 = vmatprep.subr.mxu0 0.0
      %1264 = vmatpush1.xpose.msra.mxu0 %v1102
      %1265 = vmatprep.subr.mxu0 0.0
      %1266 = vmatpush1.xpose.msra.mxu0 %v1099
      %1267 = vmatprep.subr.mxu0 0.0
      %1268 = vmatpush2.xpose.msra.mxu0 0.0
      %1269 = vmatprep.subr.mxu0 0.0
      %1270 = vmatpush2.xpose.msra.mxu0 0.0
      %1271 = vmatprep.subr.mxu0 0.0
      %1272 = vmatpush2.xpose.msra.mxu0 0.0
      %1273 = vmatprep.subr.mxu0 0.0
      %1274 = vmatpush2.xpose.msra.mxu0 0.0
      %1275 = vmatprep.subr.mxu0 0.0
      %1276 = vmatpush2.xpose.msra.mxu0 0.0
      %1277 = vmatprep.subr.mxu0 0.0
      %1278 = vmatpush2.xpose.msra.mxu0 0.0
      %1279 = vmatprep.subr.mxu0 0.0
      %1280 = vmatpush2.xpose.msra.mxu0 0.0
      %1281 = vmatprep.subr.mxu0 0.0
      %1282 = vmatpush2.xpose.msra.mxu0 0.0
      %1283 = vmatprep.subr.mxu0 0.0
      %1284 = vmatpush2.xpose.msra.mxu0 0.0
      %1285 = vmatprep.subr.mxu0 0.0
      %1286 = vmatpush2.xpose.msra.mxu0 0.0
      %1287 = vmatprep.subr.mxu0 0.0
      %1288 = vmatpush2.xpose.msra.mxu0 0.0
      %1289 = vmatprep.subr.mxu0 0.0
      %1290 = vmatpush2.xpose.msra.mxu0 0.0
      %1291 = vmatprep.subr.mxu0 0.0
      %1292 = vmatpush2.xpose.msra.mxu0 0.0
      %1293 = vmatprep.subr.mxu0 0.0
      %1294 = vmatpush2.xpose.msra.mxu0 0.0
      %1295 = vmatprep.subr.mxu0 0.0
      %1296 = vmatpush2.xpose.msra.mxu0 0.0
      %1297 = vmatprep.subr.mxu0 0.0
      %1298 = vmatpush2.xpose.msra.mxu0 0.0
      %1299 = vmatprep.mubr.f32.mxu0 0.0
      %1300 = vmatmul.mubr.f32.gmra.mxu0 %v991
      %v1301 = vpop.f32.mrf.mxu0
      %v1302 = vadd.f32 0.0, %v1301
      %v1303 = vpop.f32.mrf.mxu0
      %1304 = vmatprep.mubr.f32.mxu0 0.0
      %1305 = vmatmul.mubr.f32.gmra.mxu0 %v994
      %v1306 = vpop.f32.mrf.mxu0
      %v1307 = vadd.f32 0.0, %v1306
      %v1308 = vpop.f32.mrf.mxu0
      %1309 = vmatprep.mubr.f32.mxu0 0.0
      %1310 = vmatmul.mubr.f32.gmra.mxu0 %v997
      %v1311 = vpop.f32.mrf.mxu0
      %v1312 = vadd.f32 0.0, %v1311
      %v1313 = vpop.f32.mrf.mxu0
      %1314 = vmatprep.mubr.f32.mxu0 0.0
      %1315 = vmatmul.mubr.f32.gmra.mxu0 %v1000
      %v1316 = vpop.f32.mrf.mxu0
      %v1317 = vadd.f32 0.0, %v1316
      %v1318 = vpop.f32.mrf.mxu0
      %1319 = vdwg.mxu0
      %v1320 = vadd.f32 %v830, %v1213
      %v1321 = vadd.f32 %v832, %v1215
      %v1322 = vadd.f32 %v919, %v1302
      %v1323 = vadd.f32 %v836, %v1219
      %v1324 = vadd.f32 %v838, %v1221
      %v1325 = vadd.f32 %v924, %v1307
      %v1326 = vadd.f32 %v842, %v1225
      %v1327 = vadd.f32 %v844, %v1227
      %v1328 = vadd.f32 %v929, %v1312
      %v1329 = vadd.f32 %v848, %v1231
      %v1330 = vadd.f32 %v850, %v1233
      %v1331 = vadd.f32 %v934, %v1317
      %v1332 = vld [vmem:[%s165 + $0x12] sm:$0xff]
      %v1333 = vld [vmem:[%s165 + $0x1a] sm:$0xff]
      %v1334 = vld [vmem:[%s165 + $0x22] sm:$0xff]
      %v1335 = vld [vmem:[%s165 + $0x2a] sm:$0xff]
      %v1336 = vld [vmem:[%s165 + $0x32] sm:$0xff]
      %v1337 = vld [vmem:[%s165 + $0x3a] sm:$0xff]
      %v1338 = vld [vmem:[%s165 + $0x42] sm:$0xff]
      %v1339 = vld [vmem:[%s165 + $0x4a] sm:$0xff]
      %v1340 = vld [vmem:[%s165 + $0x52] sm:$0xff]
      %v1341 = vld [vmem:[%s165 + $0x5a] sm:$0xff]
      %v1342 = vld [vmem:[%s165 + $0x62] sm:$0xff]
      %v1343 = vld [vmem:[%s165 + $0x6a] sm:$0xff]
      %v1344 = vld [vmem:[%s165 + $0x72] sm:$0xff]
      %v1345 = vld [vmem:[%s165 + $0x7a] sm:$0xff]
      %v1346 = vld [vmem:[%s165 + $0x82] sm:$0xff]
      %v1347 = vld [vmem:[%s165 + $0x8a] sm:$0xff]
      %v1348 = vld [vmem:[%s165 + $0x92] sm:$0xff]
      %v1349 = vld [vmem:[%s165 + $0x9a] sm:$0xff]
      %v1350 = vld [vmem:[%s165 + $0xa2] sm:$0xff]
      %v1351 = vld [vmem:[%s165 + $0xaa] sm:$0xff]
      %v1352 = vld [vmem:[%s165 + $0xb2] sm:$0xff]
      %v1353 = vld [vmem:[%s165 + $0xba] sm:$0xff]
      %v1354 = vld [vmem:[%s165 + $0xc2] sm:$0xff]
      %v1355 = vld [vmem:[%s165 + $0xca] sm:$0xff]
      %v1356 = vld [vmem:[%s165 + $0xd2] sm:$0xff]
      %v1357 = vld [vmem:[%s165 + $0xda] sm:$0xff]
      %v1358 = vld [vmem:[%s165 + $0xe2] sm:$0xff]
      %v1359 = vld [vmem:[%s165 + $0xea] sm:$0xff]
      %v1360 = vld [vmem:[%s165 + $0xf2] sm:$0xff]
      %v1361 = vld [vmem:[%s165 + $0xfa] sm:$0xff]
      %v1362 = vld [vmem:[%s165 + $0x102] sm:$0xff]
      %v1363 = vld [vmem:[%s165 + $0x10a] sm:$0xff]
      %v1364 = vld [vmem:[%s165 + $0x112] sm:$0xff]
      %v1365 = vld [vmem:[%s165 + $0x11a] sm:$0xff]
      %v1366 = vld [vmem:[%s165 + $0x122] sm:$0xff]
      %v1367 = vld [vmem:[%s165 + $0x12a] sm:$0xff]
      %v1368 = vld [vmem:[%s165 + $0x132] sm:$0xff]
      %v1369 = vld [vmem:[%s165 + $0x13a] sm:$0xff]
      %v1370 = vld [vmem:[%s165 + $0x142] sm:$0xff]
      %v1371 = vld [vmem:[%s165 + $0x14a] sm:$0xff]
      %v1372 = vld [vmem:[%s165 + $0x152] sm:$0xff]
      %v1373 = vld [vmem:[%s165 + $0x15a] sm:$0xff]
      %v1374 = vld [vmem:[%s165 + $0x162] sm:$0xff]
      %v1375 = vld [vmem:[%s165 + $0x16a] sm:$0xff]
      %v1376 = vld [vmem:[%s165 + $0x172] sm:$0xff]
      %v1377 = vld [vmem:[%s165 + $0x17a] sm:$0xff]
      %v1378 = vld [vmem:[%s165 + $0x182] sm:$0xff]
      %v1379 = vld [vmem:[%s165 + $0x18a] sm:$0xff]
      %s1380 = scalar_lea.vmem %s1, 96
      %v1381 = vld [vmem:[%s1380] sm:$0xff]
      %v1382 = vld [vmem:[%s1380 + $0x8] sm:$0xff]
      %v1383 = vld [vmem:[%s1380 + $0x10] sm:$0xff]
      %v1384 = vld [vmem:[%s1380 + $0x18] sm:$0xff]
      %v1386 = vsel %vm276, %v1381, 0
      %v1389 = vsel %vm276, %v1382, 0
      %v1392 = vsel %vm276, %v1383, 0
      %v1395 = vsel %vm276, %v1384, 0
      %v1398 = vsel %vm276, %v1332, 0
      %v1401 = vsel %vm276, %v1333, 0
      %v1404 = vsel %vm276, %v1334, 0
      %v1407 = vsel %vm276, %v1335, 0
      %v1410 = vsel %vm276, %v1336, 0
      %v1413 = vsel %vm276, %v1337, 0
      %v1416 = vsel %vm276, %v1338, 0
      %v1419 = vsel %vm276, %v1339, 0
      %v1422 = vsel %vm276, %v1340, 0
      %v1425 = vsel %vm276, %v1341, 0
      %v1428 = vsel %vm276, %v1342, 0
      %v1431 = vsel %vm276, %v1343, 0
      %v1434 = vsel %vm276, %v1344, 0
      %v1437 = vsel %vm276, %v1345, 0
      %v1440 = vsel %vm276, %v1346, 0
      %v1443 = vsel %vm276, %v1347, 0
      %v1446 = vsel %vm276, %v1348, 0
      %v1449 = vsel %vm276, %v1349, 0
      %v1452 = vsel %vm276, %v1350, 0
      %v1455 = vsel %vm276, %v1351, 0
      %v1458 = vsel %vm276, %v1352, 0
      %v1461 = vsel %vm276, %v1353, 0
      %v1464 = vsel %vm276, %v1354, 0
      %v1467 = vsel %vm276, %v1355, 0
      %v1470 = vsel %vm276, %v1356, 0
      %v1473 = vsel %vm276, %v1357, 0
      %v1476 = vsel %vm276, %v1358, 0
      %v1479 = vsel %vm276, %v1359, 0
      %v1482 = vsel %vm276, %v1360, 0
      %v1485 = vsel %vm276, %v1361, 0
      %v1488 = vsel %vm276, %v1362, 0
      %v1491 = vsel %vm276, %v1363, 0
      %v1494 = vsel %vm276, %v1364, 0
      %v1497 = vsel %vm276, %v1365, 0
      %v1500 = vsel %vm276, %v1366, 0
      %v1503 = vsel %vm276, %v1367, 0
      %v1506 = vsel %vm276, %v1368, 0
      %v1509 = vsel %vm276, %v1369, 0
      %v1512 = vsel %vm276, %v1370, 0
      %v1515 = vsel %vm276, %v1371, 0
      %v1518 = vsel %vm276, %v1372, 0
      %v1521 = vsel %vm276, %v1373, 0
      %v1524 = vsel %vm276, %v1374, 0
      %v1527 = vsel %vm276, %v1375, 0
      %v1530 = vsel %vm276, %v1376, 0
      %v1533 = vsel %vm276, %v1377, 0
      %v1536 = vsel %vm276, %v1378, 0
      %v1539 = vsel %vm276, %v1379, 0
      %1541 = vmatprep.subr.mxu0 0.0
      %1542 = vmatpush1.xpose.msra.mxu0 %v1443
      %1543 = vmatprep.subr.mxu0 0.0
      %1544 = vmatpush1.xpose.msra.mxu0 %v1440
      %1545 = vmatprep.subr.mxu0 0.0
      %1546 = vmatpush1.xpose.msra.mxu0 %v1437
      %1547 = vmatprep.subr.mxu0 0.0
      %1548 = vmatpush1.xpose.msra.mxu0 %v1434
      %1549 = vmatprep.subr.mxu0 0.0
      %1550 = vmatpush1.xpose.msra.mxu0 %v1431
      %1551 = vmatprep.subr.mxu0 0.0
      %1552 = vmatpush1.xpose.msra.mxu0 %v1428
      %1553 = vmatprep.subr.mxu0 0.0
      %1554 = vmatpush1.xpose.msra.mxu0 %v1425
      %1555 = vmatprep.subr.mxu0 0.0
      %1556 = vmatpush1.xpose.msra.mxu0 %v1422
      %1557 = vmatprep.subr.mxu0 0.0
      %1558 = vmatpush1.xpose.msra.mxu0 %v1419
      %1559 = vmatprep.subr.mxu0 0.0
      %1560 = vmatpush1.xpose.msra.mxu0 %v1416
      %1561 = vmatprep.subr.mxu0 0.0
      %1562 = vmatpush1.xpose.msra.mxu0 %v1413
      %1563 = vmatprep.subr.mxu0 0.0
      %1564 = vmatpush1.xpose.msra.mxu0 %v1410
      %1565 = vmatprep.subr.mxu0 0.0
      %1566 = vmatpush1.xpose.msra.mxu0 %v1407
      %1567 = vmatprep.subr.mxu0 0.0
      %1568 = vmatpush1.xpose.msra.mxu0 %v1404
      %1569 = vmatprep.subr.mxu0 0.0
      %1570 = vmatpush1.xpose.msra.mxu0 %v1401
      %1571 = vmatprep.subr.mxu0 0.0
      %1572 = vmatpush1.xpose.msra.mxu0 %v1398
      %1573 = vmatprep.subr.mxu0 0.0
      %1574 = vmatpush2.xpose.msra.mxu0 %v1491
      %1575 = vmatprep.subr.mxu0 0.0
      %1576 = vmatpush2.xpose.msra.mxu0 %v1488
      %1577 = vmatprep.subr.mxu0 0.0
      %1578 = vmatpush2.xpose.msra.mxu0 %v1485
      %1579 = vmatprep.subr.mxu0 0.0
      %1580 = vmatpush2.xpose.msra.mxu0 %v1482
      %1581 = vmatprep.subr.mxu0 0.0
      %1582 = vmatpush2.xpose.msra.mxu0 %v1479
      %1583 = vmatprep.subr.mxu0 0.0
      %1584 = vmatpush2.xpose.msra.mxu0 %v1476
      %1585 = vmatprep.subr.mxu0 0.0
      %1586 = vmatpush2.xpose.msra.mxu0 %v1473
      %1587 = vmatprep.subr.mxu0 0.0
      %1588 = vmatpush2.xpose.msra.mxu0 %v1470
      %1589 = vmatprep.subr.mxu0 0.0
      %1590 = vmatpush2.xpose.msra.mxu0 %v1467
      %1591 = vmatprep.subr.mxu0 0.0
      %1592 = vmatpush2.xpose.msra.mxu0 %v1464
      %1593 = vmatprep.subr.mxu0 0.0
      %1594 = vmatpush2.xpose.msra.mxu0 %v1461
      %1595 = vmatprep.subr.mxu0 0.0
      %1596 = vmatpush2.xpose.msra.mxu0 %v1458
      %1597 = vmatprep.subr.mxu0 0.0
      %1598 = vmatpush2.xpose.msra.mxu0 %v1455
      %1599 = vmatprep.subr.mxu0 0.0
      %1600 = vmatpush2.xpose.msra.mxu0 %v1452
      %1601 = vmatprep.subr.mxu0 0.0
      %1602 = vmatpush2.xpose.msra.mxu0 %v1449
      %1603 = vmatprep.subr.mxu0 0.0
      %1604 = vmatpush2.xpose.msra.mxu0 %v1446
      %1605 = vmatprep.mubr.f32.mxu0 0.0
      %1606 = vmatmul.mubr.f32.gmra.mxu0 %v1386
      %v1607 = vpop.f32.mrf.mxu0
      %v1608 = vadd.f32 0.0, %v1607
      %v1609 = vpop.f32.mrf.mxu0
      %v1610 = vadd.f32 0.0, %v1609
      %1611 = vmatprep.mubr.f32.mxu0 0.0
      %1612 = vmatmul.mubr.f32.gmra.mxu0 %v1389
      %v1613 = vpop.f32.mrf.mxu0
      %v1614 = vadd.f32 0.0, %v1613
      %v1615 = vpop.f32.mrf.mxu0
      %v1616 = vadd.f32 0.0, %v1615
      %1617 = vmatprep.mubr.f32.mxu0 0.0
      %1618 = vmatmul.mubr.f32.gmra.mxu0 %v1392
      %v1619 = vpop.f32.mrf.mxu0
      %v1620 = vadd.f32 0.0, %v1619
      %v1621 = vpop.f32.mrf.mxu0
      %v1622 = vadd.f32 0.0, %v1621
      %1623 = vmatprep.mubr.f32.mxu0 0.0
      %1624 = vmatmul.mubr.f32.gmra.mxu0 %v1395
      %v1625 = vpop.f32.mrf.mxu0
      %v1626 = vadd.f32 0.0, %v1625
      %v1627 = vpop.f32.mrf.mxu0
      %v1628 = vadd.f32 0.0, %v1627
      %1629 = vdwg.mxu0
      %1630 = vmatprep.subr.mxu0 0.0
      %1631 = vmatpush1.xpose.msra.mxu0 %v1539
      %1632 = vmatprep.subr.mxu0 0.0
      %1633 = vmatpush1.xpose.msra.mxu0 %v1536
      %1634 = vmatprep.subr.mxu0 0.0
      %1635 = vmatpush1.xpose.msra.mxu0 %v1533
      %1636 = vmatprep.subr.mxu0 0.0
      %1637 = vmatpush1.xpose.msra.mxu0 %v1530
      %1638 = vmatprep.subr.mxu0 0.0
      %1639 = vmatpush1.xpose.msra.mxu0 %v1527
      %1640 = vmatprep.subr.mxu0 0.0
      %1641 = vmatpush1.xpose.msra.mxu0 %v1524
      %1642 = vmatprep.subr.mxu0 0.0
      %1643 = vmatpush1.xpose.msra.mxu0 %v1521
      %1644 = vmatprep.subr.mxu0 0.0
      %1645 = vmatpush1.xpose.msra.mxu0 %v1518
      %1646 = vmatprep.subr.mxu0 0.0
      %1647 = vmatpush1.xpose.msra.mxu0 %v1515
      %1648 = vmatprep.subr.mxu0 0.0
      %1649 = vmatpush1.xpose.msra.mxu0 %v1512
      %1650 = vmatprep.subr.mxu0 0.0
      %1651 = vmatpush1.xpose.msra.mxu0 %v1509
      %1652 = vmatprep.subr.mxu0 0.0
      %1653 = vmatpush1.xpose.msra.mxu0 %v1506
      %1654 = vmatprep.subr.mxu0 0.0
      %1655 = vmatpush1.xpose.msra.mxu0 %v1503
      %1656 = vmatprep.subr.mxu0 0.0
      %1657 = vmatpush1.xpose.msra.mxu0 %v1500
      %1658 = vmatprep.subr.mxu0 0.0
      %1659 = vmatpush1.xpose.msra.mxu0 %v1497
      %1660 = vmatprep.subr.mxu0 0.0
      %1661 = vmatpush1.xpose.msra.mxu0 %v1494
      %1662 = vmatprep.subr.mxu0 0.0
      %1663 = vmatpush2.xpose.msra.mxu0 0.0
      %1664 = vmatprep.subr.mxu0 0.0
      %1665 = vmatpush2.xpose.msra.mxu0 0.0
      %1666 = vmatprep.subr.mxu0 0.0
      %1667 = vmatpush2.xpose.msra.mxu0 0.0
      %1668 = vmatprep.subr.mxu0 0.0
      %1669 = vmatpush2.xpose.msra.mxu0 0.0
      %1670 = vmatprep.subr.mxu0 0.0
      %1671 = vmatpush2.xpose.msra.mxu0 0.0
      %1672 = vmatprep.subr.mxu0 0.0
      %1673 = vmatpush2.xpose.msra.mxu0 0.0
      %1674 = vmatprep.subr.mxu0 0.0
      %1675 = vmatpush2.xpose.msra.mxu0 0.0
      %1676 = vmatprep.subr.mxu0 0.0
      %1677 = vmatpush2.xpose.msra.mxu0 0.0
      %1678 = vmatprep.subr.mxu0 0.0
      %1679 = vmatpush2.xpose.msra.mxu0 0.0
      %1680 = vmatprep.subr.mxu0 0.0
      %1681 = vmatpush2.xpose.msra.mxu0 0.0
      %1682 = vmatprep.subr.mxu0 0.0
      %1683 = vmatpush2.xpose.msra.mxu0 0.0
      %1684 = vmatprep.subr.mxu0 0.0
      %1685 = vmatpush2.xpose.msra.mxu0 0.0
      %1686 = vmatprep.subr.mxu0 0.0
      %1687 = vmatpush2.xpose.msra.mxu0 0.0
      %1688 = vmatprep.subr.mxu0 0.0
      %1689 = vmatpush2.xpose.msra.mxu0 0.0
      %1690 = vmatprep.subr.mxu0 0.0
      %1691 = vmatpush2.xpose.msra.mxu0 0.0
      %1692 = vmatprep.subr.mxu0 0.0
      %1693 = vmatpush2.xpose.msra.mxu0 0.0
      %1694 = vmatprep.mubr.f32.mxu0 0.0
      %1695 = vmatmul.mubr.f32.gmra.mxu0 %v1386
      %v1696 = vpop.f32.mrf.mxu0
      %v1697 = vadd.f32 0.0, %v1696
      %v1698 = vpop.f32.mrf.mxu0
      %1699 = vmatprep.mubr.f32.mxu0 0.0
      %1700 = vmatmul.mubr.f32.gmra.mxu0 %v1389
      %v1701 = vpop.f32.mrf.mxu0
      %v1702 = vadd.f32 0.0, %v1701
      %v1703 = vpop.f32.mrf.mxu0
      %1704 = vmatprep.mubr.f32.mxu0 0.0
      %1705 = vmatmul.mubr.f32.gmra.mxu0 %v1392
      %v1706 = vpop.f32.mrf.mxu0
      %v1707 = vadd.f32 0.0, %v1706
      %v1708 = vpop.f32.mrf.mxu0
      %1709 = vmatprep.mubr.f32.mxu0 0.0
      %1710 = vmatmul.mubr.f32.gmra.mxu0 %v1395
      %v1711 = vpop.f32.mrf.mxu0
      %v1712 = vadd.f32 0.0, %v1711
      %v1713 = vpop.f32.mrf.mxu0
      %1714 = vdwg.mxu0
      %v1715 = vadd.f32 %v1320, %v1608
      %v1716 = vadd.f32 %v1321, %v1610
      %v1717 = vadd.f32 %v1322, %v1697
      %v1718 = vadd.f32 %v1323, %v1614
      %v1719 = vadd.f32 %v1324, %v1616
      %v1720 = vadd.f32 %v1325, %v1702
      %v1721 = vadd.f32 %v1326, %v1620
      %v1722 = vadd.f32 %v1327, %v1622
      %v1723 = vadd.f32 %v1328, %v1707
      %v1724 = vadd.f32 %v1329, %v1626
      %v1725 = vadd.f32 %v1330, %v1628
      %v1726 = vadd.f32 %v1331, %v1712
      %v1727 = vld [vmem:[%s165 + $0x13] sm:$0xff]
      %v1728 = vld [vmem:[%s165 + $0x1b] sm:$0xff]
      %v1729 = vld [vmem:[%s165 + $0x23] sm:$0xff]
      %v1730 = vld [vmem:[%s165 + $0x2b] sm:$0xff]
      %v1731 = vld [vmem:[%s165 + $0x33] sm:$0xff]
      %v1732 = vld [vmem:[%s165 + $0x3b] sm:$0xff]
      %v1733 = vld [vmem:[%s165 + $0x43] sm:$0xff]
      %v1734 = vld [vmem:[%s165 + $0x4b] sm:$0xff]
      %v1735 = vld [vmem:[%s165 + $0x53] sm:$0xff]
      %v1736 = vld [vmem:[%s165 + $0x5b] sm:$0xff]
      %v1737 = vld [vmem:[%s165 + $0x63] sm:$0xff]
      %v1738 = vld [vmem:[%s165 + $0x6b] sm:$0xff]
      %v1739 = vld [vmem:[%s165 + $0x73] sm:$0xff]
      %v1740 = vld [vmem:[%s165 + $0x7b] sm:$0xff]
      %v1741 = vld [vmem:[%s165 + $0x83] sm:$0xff]
      %v1742 = vld [vmem:[%s165 + $0x8b] sm:$0xff]
      %v1743 = vld [vmem:[%s165 + $0x93] sm:$0xff]
      %v1744 = vld [vmem:[%s165 + $0x9b] sm:$0xff]
      %v1745 = vld [vmem:[%s165 + $0xa3] sm:$0xff]
      %v1746 = vld [vmem:[%s165 + $0xab] sm:$0xff]
      %v1747 = vld [vmem:[%s165 + $0xb3] sm:$0xff]
      %v1748 = vld [vmem:[%s165 + $0xbb] sm:$0xff]
      %v1749 = vld [vmem:[%s165 + $0xc3] sm:$0xff]
      %v1750 = vld [vmem:[%s165 + $0xcb] sm:$0xff]
      %v1751 = vld [vmem:[%s165 + $0xd3] sm:$0xff]
      %v1752 = vld [vmem:[%s165 + $0xdb] sm:$0xff]
      %v1753 = vld [vmem:[%s165 + $0xe3] sm:$0xff]
      %v1754 = vld [vmem:[%s165 + $0xeb] sm:$0xff]
      %v1755 = vld [vmem:[%s165 + $0xf3] sm:$0xff]
      %v1756 = vld [vmem:[%s165 + $0xfb] sm:$0xff]
      %v1757 = vld [vmem:[%s165 + $0x103] sm:$0xff]
      %v1758 = vld [vmem:[%s165 + $0x10b] sm:$0xff]
      %v1759 = vld [vmem:[%s165 + $0x113] sm:$0xff]
      %v1760 = vld [vmem:[%s165 + $0x11b] sm:$0xff]
      %v1761 = vld [vmem:[%s165 + $0x123] sm:$0xff]
      %v1762 = vld [vmem:[%s165 + $0x12b] sm:$0xff]
      %v1763 = vld [vmem:[%s165 + $0x133] sm:$0xff]
      %v1764 = vld [vmem:[%s165 + $0x13b] sm:$0xff]
      %v1765 = vld [vmem:[%s165 + $0x143] sm:$0xff]
      %v1766 = vld [vmem:[%s165 + $0x14b] sm:$0xff]
      %v1767 = vld [vmem:[%s165 + $0x153] sm:$0xff]
      %v1768 = vld [vmem:[%s165 + $0x15b] sm:$0xff]
      %v1769 = vld [vmem:[%s165 + $0x163] sm:$0xff]
      %v1770 = vld [vmem:[%s165 + $0x16b] sm:$0xff]
      %v1771 = vld [vmem:[%s165 + $0x173] sm:$0xff]
      %v1772 = vld [vmem:[%s165 + $0x17b] sm:$0xff]
      %v1773 = vld [vmem:[%s165 + $0x183] sm:$0xff]
      %v1774 = vld [vmem:[%s165 + $0x18b] sm:$0xff]
      %s1775 = scalar_lea.vmem %s1, 128
      %v1776 = vld [vmem:[%s1775] sm:$0xff]
      %v1777 = vld [vmem:[%s1775 + $0x8] sm:$0xff]
      %v1778 = vld [vmem:[%s1775 + $0x10] sm:$0xff]
      %v1779 = vld [vmem:[%s1775 + $0x18] sm:$0xff]
      %v1781 = vsel %vm276, %v1776, 0
      %v1784 = vsel %vm276, %v1777, 0
      %v1787 = vsel %vm276, %v1778, 0
      %v1790 = vsel %vm276, %v1779, 0
      %v1793 = vsel %vm276, %v1727, 0
      %v1796 = vsel %vm276, %v1728, 0
      %v1799 = vsel %vm276, %v1729, 0
      %v1802 = vsel %vm276, %v1730, 0
      %v1805 = vsel %vm276, %v1731, 0
      %v1808 = vsel %vm276, %v1732, 0
      %v1811 = vsel %vm276, %v1733, 0
      %v1814 = vsel %vm276, %v1734, 0
      %v1817 = vsel %vm276, %v1735, 0
      %v1820 = vsel %vm276, %v1736, 0
      %v1823 = vsel %vm276, %v1737, 0
      %v1826 = vsel %vm276, %v1738, 0
      %v1829 = vsel %vm276, %v1739, 0
      %v1832 = vsel %vm276, %v1740, 0
      %v1835 = vsel %vm276, %v1741, 0
      %v1838 = vsel %vm276, %v1742, 0
      %v1841 = vsel %vm276, %v1743, 0
      %v1844 = vsel %vm276, %v1744, 0
      %v1847 = vsel %vm276, %v1745, 0
      %v1850 = vsel %vm276, %v1746, 0
      %v1853 = vsel %vm276, %v1747, 0
      %v1856 = vsel %vm276, %v1748, 0
      %v1859 = vsel %vm276, %v1749, 0
      %v1862 = vsel %vm276, %v1750, 0
      %v1865 = vsel %vm276, %v1751, 0
      %v1868 = vsel %vm276, %v1752, 0
      %v1871 = vsel %vm276, %v1753, 0
      %v1874 = vsel %vm276, %v1754, 0
      %v1877 = vsel %vm276, %v1755, 0
      %v1880 = vsel %vm276, %v1756, 0
      %v1883 = vsel %vm276, %v1757, 0
      %v1886 = vsel %vm276, %v1758, 0
      %v1889 = vsel %vm276, %v1759, 0
      %v1892 = vsel %vm276, %v1760, 0
      %v1895 = vsel %vm276, %v1761, 0
      %v1898 = vsel %vm276, %v1762, 0
      %v1901 = vsel %vm276, %v1763, 0
      %v1904 = vsel %vm276, %v1764, 0
      %v1907 = vsel %vm276, %v1765, 0
      %v1910 = vsel %vm276, %v1766, 0
      %v1913 = vsel %vm276, %v1767, 0
      %v1916 = vsel %vm276, %v1768, 0
      %v1919 = vsel %vm276, %v1769, 0
      %v1922 = vsel %vm276, %v1770, 0
      %v1925 = vsel %vm276, %v1771, 0
      %v1928 = vsel %vm276, %v1772, 0
      %v1931 = vsel %vm276, %v1773, 0
      %v1934 = vsel %vm276, %v1774, 0
      %1936 = vmatprep.subr.mxu0 0.0
      %1937 = vmatpush1.xpose.msra.mxu0 %v1838
      %1938 = vmatprep.subr.mxu0 0.0
      %1939 = vmatpush1.xpose.msra.mxu0 %v1835
      %1940 = vmatprep.subr.mxu0 0.0
      %1941 = vmatpush1.xpose.msra.mxu0 %v1832
      %1942 = vmatprep.subr.mxu0 0.0
      %1943 = vmatpush1.xpose.msra.mxu0 %v1829
      %1944 = vmatprep.subr.mxu0 0.0
      %1945 = vmatpush1.xpose.msra.mxu0 %v1826
      %1946 = vmatprep.subr.mxu0 0.0
      %1947 = vmatpush1.xpose.msra.mxu0 %v1823
      %1948 = vmatprep.subr.mxu0 0.0
      %1949 = vmatpush1.xpose.msra.mxu0 %v1820
      %1950 = vmatprep.subr.mxu0 0.0
      %1951 = vmatpush1.xpose.msra.mxu0 %v1817
      %1952 = vmatprep.subr.mxu0 0.0
      %1953 = vmatpush1.xpose.msra.mxu0 %v1814
      %1954 = vmatprep.subr.mxu0 0.0
      %1955 = vmatpush1.xpose.msra.mxu0 %v1811
      %1956 = vmatprep.subr.mxu0 0.0
      %1957 = vmatpush1.xpose.msra.mxu0 %v1808
      %1958 = vmatprep.subr.mxu0 0.0
      %1959 = vmatpush1.xpose.msra.mxu0 %v1805
      %1960 = vmatprep.subr.mxu0 0.0
      %1961 = vmatpush1.xpose.msra.mxu0 %v1802
      %1962 = vmatprep.subr.mxu0 0.0
      %1963 = vmatpush1.xpose.msra.mxu0 %v1799
      %1964 = vmatprep.subr.mxu0 0.0
      %1965 = vmatpush1.xpose.msra.mxu0 %v1796
      %1966 = vmatprep.subr.mxu0 0.0
      %1967 = vmatpush1.xpose.msra.mxu0 %v1793
      %1968 = vmatprep.subr.mxu0 0.0
      %1969 = vmatpush2.xpose.msra.mxu0 %v1886
      %1970 = vmatprep.subr.mxu0 0.0
      %1971 = vmatpush2.xpose.msra.mxu0 %v1883
      %1972 = vmatprep.subr.mxu0 0.0
      %1973 = vmatpush2.xpose.msra.mxu0 %v1880
      %1974 = vmatprep.subr.mxu0 0.0
      %1975 = vmatpush2.xpose.msra.mxu0 %v1877
      %1976 = vmatprep.subr.mxu0 0.0
      %1977 = vmatpush2.xpose.msra.mxu0 %v1874
      %1978 = vmatprep.subr.mxu0 0.0
      %1979 = vmatpush2.xpose.msra.mxu0 %v1871
      %1980 = vmatprep.subr.mxu0 0.0
      %1981 = vmatpush2.xpose.msra.mxu0 %v1868
      %1982 = vmatprep.subr.mxu0 0.0
      %1983 = vmatpush2.xpose.msra.mxu0 %v1865
      %1984 = vmatprep.subr.mxu0 0.0
      %1985 = vmatpush2.xpose.msra.mxu0 %v1862
      %1986 = vmatprep.subr.mxu0 0.0
      %1987 = vmatpush2.xpose.msra.mxu0 %v1859
      %1988 = vmatprep.subr.mxu0 0.0
      %1989 = vmatpush2.xpose.msra.mxu0 %v1856
      %1990 = vmatprep.subr.mxu0 0.0
      %1991 = vmatpush2.xpose.msra.mxu0 %v1853
      %1992 = vmatprep.subr.mxu0 0.0
      %1993 = vmatpush2.xpose.msra.mxu0 %v1850
      %1994 = vmatprep.subr.mxu0 0.0
      %1995 = vmatpush2.xpose.msra.mxu0 %v1847
      %1996 = vmatprep.subr.mxu0 0.0
      %1997 = vmatpush2.xpose.msra.mxu0 %v1844
      %1998 = vmatprep.subr.mxu0 0.0
      %1999 = vmatpush2.xpose.msra.mxu0 %v1841
      %2000 = vmatprep.mubr.f32.mxu0 0.0
      %2001 = vmatmul.mubr.f32.gmra.mxu0 %v1781
      %v2002 = vpop.f32.mrf.mxu0
      %v2003 = vadd.f32 0.0, %v2002
      %v2004 = vpop.f32.mrf.mxu0
      %v2005 = vadd.f32 0.0, %v2004
      %2006 = vmatprep.mubr.f32.mxu0 0.0
      %2007 = vmatmul.mubr.f32.gmra.mxu0 %v1784
      %v2008 = vpop.f32.mrf.mxu0
      %v2009 = vadd.f32 0.0, %v2008
      %v2010 = vpop.f32.mrf.mxu0
      %v2011 = vadd.f32 0.0, %v2010
      %2012 = vmatprep.mubr.f32.mxu0 0.0
      %2013 = vmatmul.mubr.f32.gmra.mxu0 %v1787
      %v2014 = vpop.f32.mrf.mxu0
      %v2015 = vadd.f32 0.0, %v2014
      %v2016 = vpop.f32.mrf.mxu0
      %v2017 = vadd.f32 0.0, %v2016
      %2018 = vmatprep.mubr.f32.mxu0 0.0
      %2019 = vmatmul.mubr.f32.gmra.mxu0 %v1790
      %v2020 = vpop.f32.mrf.mxu0
      %v2021 = vadd.f32 0.0, %v2020
      %v2022 = vpop.f32.mrf.mxu0
      %v2023 = vadd.f32 0.0, %v2022
      %2024 = vdwg.mxu0
      %2025 = vmatprep.subr.mxu0 0.0
      %2026 = vmatpush1.xpose.msra.mxu0 %v1934
      %2027 = vmatprep.subr.mxu0 0.0
      %2028 = vmatpush1.xpose.msra.mxu0 %v1931
      %2029 = vmatprep.subr.mxu0 0.0
      %2030 = vmatpush1.xpose.msra.mxu0 %v1928
      %2031 = vmatprep.subr.mxu0 0.0
      %2032 = vmatpush1.xpose.msra.mxu0 %v1925
      %2033 = vmatprep.subr.mxu0 0.0
      %2034 = vmatpush1.xpose.msra.mxu0 %v1922
      %2035 = vmatprep.subr.mxu0 0.0
      %2036 = vmatpush1.xpose.msra.mxu0 %v1919
      %2037 = vmatprep.subr.mxu0 0.0
      %2038 = vmatpush1.xpose.msra.mxu0 %v1916
      %2039 = vmatprep.subr.mxu0 0.0
      %2040 = vmatpush1.xpose.msra.mxu0 %v1913
      %2041 = vmatprep.subr.mxu0 0.0
      %2042 = vmatpush1.xpose.msra.mxu0 %v1910
      %2043 = vmatprep.subr.mxu0 0.0
      %2044 = vmatpush1.xpose.msra.mxu0 %v1907
      %2045 = vmatprep.subr.mxu0 0.0
      %2046 = vmatpush1.xpose.msra.mxu0 %v1904
      %2047 = vmatprep.subr.mxu0 0.0
      %2048 = vmatpush1.xpose.msra.mxu0 %v1901
      %2049 = vmatprep.subr.mxu0 0.0
      %2050 = vmatpush1.xpose.msra.mxu0 %v1898
      %2051 = vmatprep.subr.mxu0 0.0
      %2052 = vmatpush1.xpose.msra.mxu0 %v1895
      %2053 = vmatprep.subr.mxu0 0.0
      %2054 = vmatpush1.xpose.msra.mxu0 %v1892
      %2055 = vmatprep.subr.mxu0 0.0
      %2056 = vmatpush1.xpose.msra.mxu0 %v1889
      %2057 = vmatprep.subr.mxu0 0.0
      %2058 = vmatpush2.xpose.msra.mxu0 0.0
      %2059 = vmatprep.subr.mxu0 0.0
      %2060 = vmatpush2.xpose.msra.mxu0 0.0
      %2061 = vmatprep.subr.mxu0 0.0
      %2062 = vmatpush2.xpose.msra.mxu0 0.0
      %2063 = vmatprep.subr.mxu0 0.0
      %2064 = vmatpush2.xpose.msra.mxu0 0.0
      %2065 = vmatprep.subr.mxu0 0.0
      %2066 = vmatpush2.xpose.msra.mxu0 0.0
      %2067 = vmatprep.subr.mxu0 0.0
      %2068 = vmatpush2.xpose.msra.mxu0 0.0
      %2069 = vmatprep.subr.mxu0 0.0
      %2070 = vmatpush2.xpose.msra.mxu0 0.0
      %2071 = vmatprep.subr.mxu0 0.0
      %2072 = vmatpush2.xpose.msra.mxu0 0.0
      %2073 = vmatprep.subr.mxu0 0.0
      %2074 = vmatpush2.xpose.msra.mxu0 0.0
      %2075 = vmatprep.subr.mxu0 0.0
      %2076 = vmatpush2.xpose.msra.mxu0 0.0
      %2077 = vmatprep.subr.mxu0 0.0
      %2078 = vmatpush2.xpose.msra.mxu0 0.0
      %2079 = vmatprep.subr.mxu0 0.0
      %2080 = vmatpush2.xpose.msra.mxu0 0.0
      %2081 = vmatprep.subr.mxu0 0.0
      %2082 = vmatpush2.xpose.msra.mxu0 0.0
      %2083 = vmatprep.subr.mxu0 0.0
      %2084 = vmatpush2.xpose.msra.mxu0 0.0
      %2085 = vmatprep.subr.mxu0 0.0
      %2086 = vmatpush2.xpose.msra.mxu0 0.0
      %2087 = vmatprep.subr.mxu0 0.0
      %2088 = vmatpush2.xpose.msra.mxu0 0.0
      %2089 = vmatprep.mubr.f32.mxu0 0.0
      %2090 = vmatmul.mubr.f32.gmra.mxu0 %v1781
      %v2091 = vpop.f32.mrf.mxu0
      %v2092 = vadd.f32 0.0, %v2091
      %v2093 = vpop.f32.mrf.mxu0
      %2094 = vmatprep.mubr.f32.mxu0 0.0
      %2095 = vmatmul.mubr.f32.gmra.mxu0 %v1784
      %v2096 = vpop.f32.mrf.mxu0
      %v2097 = vadd.f32 0.0, %v2096
      %v2098 = vpop.f32.mrf.mxu0
      %2099 = vmatprep.mubr.f32.mxu0 0.0
      %2100 = vmatmul.mubr.f32.gmra.mxu0 %v1787
      %v2101 = vpop.f32.mrf.mxu0
      %v2102 = vadd.f32 0.0, %v2101
      %v2103 = vpop.f32.mrf.mxu0
      %2104 = vmatprep.mubr.f32.mxu0 0.0
      %2105 = vmatmul.mubr.f32.gmra.mxu0 %v1790
      %v2106 = vpop.f32.mrf.mxu0
      %v2107 = vadd.f32 0.0, %v2106
      %v2108 = vpop.f32.mrf.mxu0
      %2109 = vdwg.mxu0
      %v2110 = vadd.f32 %v1715, %v2003
      %v2111 = vadd.f32 %v1716, %v2005
      %v2112 = vadd.f32 %v1717, %v2092
      %v2113 = vadd.f32 %v1718, %v2009
      %v2114 = vadd.f32 %v1719, %v2011
      %v2115 = vadd.f32 %v1720, %v2097
      %v2116 = vadd.f32 %v1721, %v2015
      %v2117 = vadd.f32 %v1722, %v2017
      %v2118 = vadd.f32 %v1723, %v2102
      %v2119 = vadd.f32 %v1724, %v2021
      %v2120 = vadd.f32 %v1725, %v2023
      %v2121 = vadd.f32 %v1726, %v2107
      %v2122 = vld [vmem:[%s165 + $0x14] sm:$0xff]
      %v2123 = vld [vmem:[%s165 + $0x1c] sm:$0xff]
      %v2124 = vld [vmem:[%s165 + $0x24] sm:$0xff]
      %v2125 = vld [vmem:[%s165 + $0x2c] sm:$0xff]
      %v2126 = vld [vmem:[%s165 + $0x34] sm:$0xff]
      %v2127 = vld [vmem:[%s165 + $0x3c] sm:$0xff]
      %v2128 = vld [vmem:[%s165 + $0x44] sm:$0xff]
      %v2129 = vld [vmem:[%s165 + $0x4c] sm:$0xff]
      %v2130 = vld [vmem:[%s165 + $0x54] sm:$0xff]
      %v2131 = vld [vmem:[%s165 + $0x5c] sm:$0xff]
      %v2132 = vld [vmem:[%s165 + $0x64] sm:$0xff]
      %v2133 = vld [vmem:[%s165 + $0x6c] sm:$0xff]
      %v2134 = vld [vmem:[%s165 + $0x74] sm:$0xff]
      %v2135 = vld [vmem:[%s165 + $0x7c] sm:$0xff]
      %v2136 = vld [vmem:[%s165 + $0x84] sm:$0xff]
      %v2137 = vld [vmem:[%s165 + $0x8c] sm:$0xff]
      %v2138 = vld [vmem:[%s165 + $0x94] sm:$0xff]
      %v2139 = vld [vmem:[%s165 + $0x9c] sm:$0xff]
      %v2140 = vld [vmem:[%s165 + $0xa4] sm:$0xff]
      %v2141 = vld [vmem:[%s165 + $0xac] sm:$0xff]
      %v2142 = vld [vmem:[%s165 + $0xb4] sm:$0xff]
      %v2143 = vld [vmem:[%s165 + $0xbc] sm:$0xff]
      %v2144 = vld [vmem:[%s165 + $0xc4] sm:$0xff]
      %v2145 = vld [vmem:[%s165 + $0xcc] sm:$0xff]
      %v2146 = vld [vmem:[%s165 + $0xd4] sm:$0xff]
      %v2147 = vld [vmem:[%s165 + $0xdc] sm:$0xff]
      %v2148 = vld [vmem:[%s165 + $0xe4] sm:$0xff]
      %v2149 = vld [vmem:[%s165 + $0xec] sm:$0xff]
      %v2150 = vld [vmem:[%s165 + $0xf4] sm:$0xff]
      %v2151 = vld [vmem:[%s165 + $0xfc] sm:$0xff]
      %v2152 = vld [vmem:[%s165 + $0x104] sm:$0xff]
      %v2153 = vld [vmem:[%s165 + $0x10c] sm:$0xff]
      %v2154 = vld [vmem:[%s165 + $0x114] sm:$0xff]
      %v2155 = vld [vmem:[%s165 + $0x11c] sm:$0xff]
      %v2156 = vld [vmem:[%s165 + $0x124] sm:$0xff]
      %v2157 = vld [vmem:[%s165 + $0x12c] sm:$0xff]
      %v2158 = vld [vmem:[%s165 + $0x134] sm:$0xff]
      %v2159 = vld [vmem:[%s165 + $0x13c] sm:$0xff]
      %v2160 = vld [vmem:[%s165 + $0x144] sm:$0xff]
      %v2161 = vld [vmem:[%s165 + $0x14c] sm:$0xff]
      %v2162 = vld [vmem:[%s165 + $0x154] sm:$0xff]
      %v2163 = vld [vmem:[%s165 + $0x15c] sm:$0xff]
      %v2164 = vld [vmem:[%s165 + $0x164] sm:$0xff]
      %v2165 = vld [vmem:[%s165 + $0x16c] sm:$0xff]
      %v2166 = vld [vmem:[%s165 + $0x174] sm:$0xff]
      %v2167 = vld [vmem:[%s165 + $0x17c] sm:$0xff]
      %v2168 = vld [vmem:[%s165 + $0x184] sm:$0xff]
      %v2169 = vld [vmem:[%s165 + $0x18c] sm:$0xff]
      %s2170 = scalar_lea.vmem %s1, 160
      %v2171 = vld [vmem:[%s2170] sm:$0xff]
      %v2172 = vld [vmem:[%s2170 + $0x8] sm:$0xff]
      %v2173 = vld [vmem:[%s2170 + $0x10] sm:$0xff]
      %v2174 = vld [vmem:[%s2170 + $0x18] sm:$0xff]
      %v2176 = vsel %vm276, %v2171, 0
      %v2179 = vsel %vm276, %v2172, 0
      %v2182 = vsel %vm276, %v2173, 0
      %v2185 = vsel %vm276, %v2174, 0
      %v2188 = vsel %vm276, %v2122, 0
      %v2191 = vsel %vm276, %v2123, 0
      %v2194 = vsel %vm276, %v2124, 0
      %v2197 = vsel %vm276, %v2125, 0
      %v2200 = vsel %vm276, %v2126, 0
      %v2203 = vsel %vm276, %v2127, 0
      %v2206 = vsel %vm276, %v2128, 0
      %v2209 = vsel %vm276, %v2129, 0
      %v2212 = vsel %vm276, %v2130, 0
      %v2215 = vsel %vm276, %v2131, 0
      %v2218 = vsel %vm276, %v2132, 0
      %v2221 = vsel %vm276, %v2133, 0
      %v2224 = vsel %vm276, %v2134, 0
      %v2227 = vsel %vm276, %v2135, 0
      %v2230 = vsel %vm276, %v2136, 0
      %v2233 = vsel %vm276, %v2137, 0
      %v2236 = vsel %vm276, %v2138, 0
      %v2239 = vsel %vm276, %v2139, 0
      %v2242 = vsel %vm276, %v2140, 0
      %v2245 = vsel %vm276, %v2141, 0
      %v2248 = vsel %vm276, %v2142, 0
      %v2251 = vsel %vm276, %v2143, 0
      %v2254 = vsel %vm276, %v2144, 0
      %v2257 = vsel %vm276, %v2145, 0
      %v2260 = vsel %vm276, %v2146, 0
      %v2263 = vsel %vm276, %v2147, 0
      %v2266 = vsel %vm276, %v2148, 0
      %v2269 = vsel %vm276, %v2149, 0
      %v2272 = vsel %vm276, %v2150, 0
      %v2275 = vsel %vm276, %v2151, 0
      %v2278 = vsel %vm276, %v2152, 0
      %v2281 = vsel %vm276, %v2153, 0
      %v2284 = vsel %vm276, %v2154, 0
      %v2287 = vsel %vm276, %v2155, 0
      %v2290 = vsel %vm276, %v2156, 0
      %v2293 = vsel %vm276, %v2157, 0
      %v2296 = vsel %vm276, %v2158, 0
      %v2299 = vsel %vm276, %v2159, 0
      %v2302 = vsel %vm276, %v2160, 0
      %v2305 = vsel %vm276, %v2161, 0
      %v2308 = vsel %vm276, %v2162, 0
      %v2311 = vsel %vm276, %v2163, 0
      %v2314 = vsel %vm276, %v2164, 0
      %v2317 = vsel %vm276, %v2165, 0
      %v2320 = vsel %vm276, %v2166, 0
      %v2323 = vsel %vm276, %v2167, 0
      %v2326 = vsel %vm276, %v2168, 0
      %v2329 = vsel %vm276, %v2169, 0
      %2331 = vmatprep.subr.mxu0 0.0
      %2332 = vmatpush1.xpose.msra.mxu0 %v2233
      %2333 = vmatprep.subr.mxu0 0.0
      %2334 = vmatpush1.xpose.msra.mxu0 %v2230
      %2335 = vmatprep.subr.mxu0 0.0
      %2336 = vmatpush1.xpose.msra.mxu0 %v2227
      %2337 = vmatprep.subr.mxu0 0.0
      %2338 = vmatpush1.xpose.msra.mxu0 %v2224
      %2339 = vmatprep.subr.mxu0 0.0
      %2340 = vmatpush1.xpose.msra.mxu0 %v2221
      %2341 = vmatprep.subr.mxu0 0.0
      %2342 = vmatpush1.xpose.msra.mxu0 %v2218
      %2343 = vmatprep.subr.mxu0 0.0
      %2344 = vmatpush1.xpose.msra.mxu0 %v2215
      %2345 = vmatprep.subr.mxu0 0.0
      %2346 = vmatpush1.xpose.msra.mxu0 %v2212
      %2347 = vmatprep.subr.mxu0 0.0
      %2348 = vmatpush1.xpose.msra.mxu0 %v2209
      %2349 = vmatprep.subr.mxu0 0.0
      %2350 = vmatpush1.xpose.msra.mxu0 %v2206
      %2351 = vmatprep.subr.mxu0 0.0
      %2352 = vmatpush1.xpose.msra.mxu0 %v2203
      %2353 = vmatprep.subr.mxu0 0.0
      %2354 = vmatpush1.xpose.msra.mxu0 %v2200
      %2355 = vmatprep.subr.mxu0 0.0
      %2356 = vmatpush1.xpose.msra.mxu0 %v2197
      %2357 = vmatprep.subr.mxu0 0.0
      %2358 = vmatpush1.xpose.msra.mxu0 %v2194
      %2359 = vmatprep.subr.mxu0 0.0
      %2360 = vmatpush1.xpose.msra.mxu0 %v2191
      %2361 = vmatprep.subr.mxu0 0.0
      %2362 = vmatpush1.xpose.msra.mxu0 %v2188
      %2363 = vmatprep.subr.mxu0 0.0
      %2364 = vmatpush2.xpose.msra.mxu0 %v2281
      %2365 = vmatprep.subr.mxu0 0.0
      %2366 = vmatpush2.xpose.msra.mxu0 %v2278
      %2367 = vmatprep.subr.mxu0 0.0
      %2368 = vmatpush2.xpose.msra.mxu0 %v2275
      %2369 = vmatprep.subr.mxu0 0.0
      %2370 = vmatpush2.xpose.msra.mxu0 %v2272
      %2371 = vmatprep.subr.mxu0 0.0
      %2372 = vmatpush2.xpose.msra.mxu0 %v2269
      %2373 = vmatprep.subr.mxu0 0.0
      %2374 = vmatpush2.xpose.msra.mxu0 %v2266
      %2375 = vmatprep.subr.mxu0 0.0
      %2376 = vmatpush2.xpose.msra.mxu0 %v2263
      %2377 = vmatprep.subr.mxu0 0.0
      %2378 = vmatpush2.xpose.msra.mxu0 %v2260
      %2379 = vmatprep.subr.mxu0 0.0
      %2380 = vmatpush2.xpose.msra.mxu0 %v2257
      %2381 = vmatprep.subr.mxu0 0.0
      %2382 = vmatpush2.xpose.msra.mxu0 %v2254
      %2383 = vmatprep.subr.mxu0 0.0
      %2384 = vmatpush2.xpose.msra.mxu0 %v2251
      %2385 = vmatprep.subr.mxu0 0.0
      %2386 = vmatpush2.xpose.msra.mxu0 %v2248
      %2387 = vmatprep.subr.mxu0 0.0
      %2388 = vmatpush2.xpose.msra.mxu0 %v2245
      %2389 = vmatprep.subr.mxu0 0.0
      %2390 = vmatpush2.xpose.msra.mxu0 %v2242
      %2391 = vmatprep.subr.mxu0 0.0
      %2392 = vmatpush2.xpose.msra.mxu0 %v2239
      %2393 = vmatprep.subr.mxu0 0.0
      %2394 = vmatpush2.xpose.msra.mxu0 %v2236
      %2395 = vmatprep.mubr.f32.mxu0 0.0
      %2396 = vmatmul.mubr.f32.gmra.mxu0 %v2176
      %v2397 = vpop.f32.mrf.mxu0
      %v2398 = vadd.f32 0.0, %v2397
      %v2399 = vpop.f32.mrf.mxu0
      %v2400 = vadd.f32 0.0, %v2399
      %2401 = vmatprep.mubr.f32.mxu0 0.0
      %2402 = vmatmul.mubr.f32.gmra.mxu0 %v2179
      %v2403 = vpop.f32.mrf.mxu0
      %v2404 = vadd.f32 0.0, %v2403
      %v2405 = vpop.f32.mrf.mxu0
      %v2406 = vadd.f32 0.0, %v2405
      %2407 = vmatprep.mubr.f32.mxu0 0.0
      %2408 = vmatmul.mubr.f32.gmra.mxu0 %v2182
      %v2409 = vpop.f32.mrf.mxu0
      %v2410 = vadd.f32 0.0, %v2409
      %v2411 = vpop.f32.mrf.mxu0
      %v2412 = vadd.f32 0.0, %v2411
      %2413 = vmatprep.mubr.f32.mxu0 0.0
      %2414 = vmatmul.mubr.f32.gmra.mxu0 %v2185
      %v2415 = vpop.f32.mrf.mxu0
      %v2416 = vadd.f32 0.0, %v2415
      %v2417 = vpop.f32.mrf.mxu0
      %v2418 = vadd.f32 0.0, %v2417
      %2419 = vdwg.mxu0
      %2420 = vmatprep.subr.mxu0 0.0
      %2421 = vmatpush1.xpose.msra.mxu0 %v2329
      %2422 = vmatprep.subr.mxu0 0.0
      %2423 = vmatpush1.xpose.msra.mxu0 %v2326
      %2424 = vmatprep.subr.mxu0 0.0
      %2425 = vmatpush1.xpose.msra.mxu0 %v2323
      %2426 = vmatprep.subr.mxu0 0.0
      %2427 = vmatpush1.xpose.msra.mxu0 %v2320
      %2428 = vmatprep.subr.mxu0 0.0
      %2429 = vmatpush1.xpose.msra.mxu0 %v2317
      %2430 = vmatprep.subr.mxu0 0.0
      %2431 = vmatpush1.xpose.msra.mxu0 %v2314
      %2432 = vmatprep.subr.mxu0 0.0
      %2433 = vmatpush1.xpose.msra.mxu0 %v2311
      %2434 = vmatprep.subr.mxu0 0.0
      %2435 = vmatpush1.xpose.msra.mxu0 %v2308
      %2436 = vmatprep.subr.mxu0 0.0
      %2437 = vmatpush1.xpose.msra.mxu0 %v2305
      %2438 = vmatprep.subr.mxu0 0.0
      %2439 = vmatpush1.xpose.msra.mxu0 %v2302
      %2440 = vmatprep.subr.mxu0 0.0
      %2441 = vmatpush1.xpose.msra.mxu0 %v2299
      %2442 = vmatprep.subr.mxu0 0.0
      %2443 = vmatpush1.xpose.msra.mxu0 %v2296
      %2444 = vmatprep.subr.mxu0 0.0
      %2445 = vmatpush1.xpose.msra.mxu0 %v2293
      %2446 = vmatprep.subr.mxu0 0.0
      %2447 = vmatpush1.xpose.msra.mxu0 %v2290
      %2448 = vmatprep.subr.mxu0 0.0
      %2449 = vmatpush1.xpose.msra.mxu0 %v2287
      %2450 = vmatprep.subr.mxu0 0.0
      %2451 = vmatpush1.xpose.msra.mxu0 %v2284
      %2452 = vmatprep.subr.mxu0 0.0
      %2453 = vmatpush2.xpose.msra.mxu0 0.0
      %2454 = vmatprep.subr.mxu0 0.0
      %2455 = vmatpush2.xpose.msra.mxu0 0.0
      %2456 = vmatprep.subr.mxu0 0.0
      %2457 = vmatpush2.xpose.msra.mxu0 0.0
      %2458 = vmatprep.subr.mxu0 0.0
      %2459 = vmatpush2.xpose.msra.mxu0 0.0
      %2460 = vmatprep.subr.mxu0 0.0
      %2461 = vmatpush2.xpose.msra.mxu0 0.0
      %2462 = vmatprep.subr.mxu0 0.0
      %2463 = vmatpush2.xpose.msra.mxu0 0.0
      %2464 = vmatprep.subr.mxu0 0.0
      %2465 = vmatpush2.xpose.msra.mxu0 0.0
      %2466 = vmatprep.subr.mxu0 0.0
      %2467 = vmatpush2.xpose.msra.mxu0 0.0
      %2468 = vmatprep.subr.mxu0 0.0
      %2469 = vmatpush2.xpose.msra.mxu0 0.0
      %2470 = vmatprep.subr.mxu0 0.0
      %2471 = vmatpush2.xpose.msra.mxu0 0.0
      %2472 = vmatprep.subr.mxu0 0.0
      %2473 = vmatpush2.xpose.msra.mxu0 0.0
      %2474 = vmatprep.subr.mxu0 0.0
      %2475 = vmatpush2.xpose.msra.mxu0 0.0
      %2476 = vmatprep.subr.mxu0 0.0
      %2477 = vmatpush2.xpose.msra.mxu0 0.0
      %2478 = vmatprep.subr.mxu0 0.0
      %2479 = vmatpush2.xpose.msra.mxu0 0.0
      %2480 = vmatprep.subr.mxu0 0.0
      %2481 = vmatpush2.xpose.msra.mxu0 0.0
      %2482 = vmatprep.subr.mxu0 0.0
      %2483 = vmatpush2.xpose.msra.mxu0 0.0
      %2484 = vmatprep.mubr.f32.mxu0 0.0
      %2485 = vmatmul.mubr.f32.gmra.mxu0 %v2176
      %v2486 = vpop.f32.mrf.mxu0
      %v2487 = vadd.f32 0.0, %v2486
      %v2488 = vpop.f32.mrf.mxu0
      %2489 = vmatprep.mubr.f32.mxu0 0.0
      %2490 = vmatmul.mubr.f32.gmra.mxu0 %v2179
      %v2491 = vpop.f32.mrf.mxu0
      %v2492 = vadd.f32 0.0, %v2491
      %v2493 = vpop.f32.mrf.mxu0
      %2494 = vmatprep.mubr.f32.mxu0 0.0
      %2495 = vmatmul.mubr.f32.gmra.mxu0 %v2182
      %v2496 = vpop.f32.mrf.mxu0
      %v2497 = vadd.f32 0.0, %v2496
      %v2498 = vpop.f32.mrf.mxu0
      %2499 = vmatprep.mubr.f32.mxu0 0.0
      %2500 = vmatmul.mubr.f32.gmra.mxu0 %v2185
      %v2501 = vpop.f32.mrf.mxu0
      %v2502 = vadd.f32 0.0, %v2501
      %v2503 = vpop.f32.mrf.mxu0
      %2504 = vdwg.mxu0
      %v2505 = vadd.f32 %v2110, %v2398
      %v2506 = vadd.f32 %v2111, %v2400
      %v2507 = vadd.f32 %v2112, %v2487
      %v2508 = vadd.f32 %v2113, %v2404
      %v2509 = vadd.f32 %v2114, %v2406
      %v2510 = vadd.f32 %v2115, %v2492
      %v2511 = vadd.f32 %v2116, %v2410
      %v2512 = vadd.f32 %v2117, %v2412
      %v2513 = vadd.f32 %v2118, %v2497
      %v2514 = vadd.f32 %v2119, %v2416
      %v2515 = vadd.f32 %v2120, %v2418
      %v2516 = vadd.f32 %v2121, %v2502
      %v2517 = vld [vmem:[%s165 + $0x24] sm:$0xff]
      %v2518 = vld [vmem:[%s165 + $0x2c] sm:$0xff]
      %v2519 = vld [vmem:[%s165 + $0x34] sm:$0xff]
      %v2520 = vld [vmem:[%s165 + $0x3c] sm:$0xff]
      %v2521 = vld [vmem:[%s165 + $0x44] sm:$0xff]
      %v2522 = vld [vmem:[%s165 + $0x4c] sm:$0xff]
      %v2523 = vld [vmem:[%s165 + $0x54] sm:$0xff]
      %v2524 = vld [vmem:[%s165 + $0x5c] sm:$0xff]
      %v2525 = vld [vmem:[%s165 + $0x64] sm:$0xff]
      %v2526 = vld [vmem:[%s165 + $0x6c] sm:$0xff]
      %v2527 = vld [vmem:[%s165 + $0x74] sm:$0xff]
      %v2528 = vld [vmem:[%s165 + $0x7c] sm:$0xff]
      %v2529 = vld [vmem:[%s165 + $0x84] sm:$0xff]
      %v2530 = vld [vmem:[%s165 + $0x8c] sm:$0xff]
      %v2531 = vld [vmem:[%s165 + $0x94] sm:$0xff]
      %v2532 = vld [vmem:[%s165 + $0x9c] sm:$0xff]
      %v2533 = vld [vmem:[%s165 + $0xa4] sm:$0xff]
      %v2534 = vld [vmem:[%s165 + $0xac] sm:$0xff]
      %v2535 = vld [vmem:[%s165 + $0xb4] sm:$0xff]
      %v2536 = vld [vmem:[%s165 + $0xbc] sm:$0xff]
      %v2537 = vld [vmem:[%s165 + $0xc4] sm:$0xff]
      %v2538 = vld [vmem:[%s165 + $0xcc] sm:$0xff]
      %v2539 = vld [vmem:[%s165 + $0xd4] sm:$0xff]
      %v2540 = vld [vmem:[%s165 + $0xdc] sm:$0xff]
      %v2541 = vld [vmem:[%s165 + $0xe4] sm:$0xff]
      %v2542 = vld [vmem:[%s165 + $0xec] sm:$0xff]
      %v2543 = vld [vmem:[%s165 + $0xf4] sm:$0xff]
      %v2544 = vld [vmem:[%s165 + $0xfc] sm:$0xff]
      %v2545 = vld [vmem:[%s165 + $0x104] sm:$0xff]
      %v2546 = vld [vmem:[%s165 + $0x10c] sm:$0xff]
      %v2547 = vld [vmem:[%s165 + $0x114] sm:$0xff]
      %v2548 = vld [vmem:[%s165 + $0x11c] sm:$0xff]
      %v2549 = vld [vmem:[%s165 + $0x124] sm:$0xff]
      %v2550 = vld [vmem:[%s165 + $0x12c] sm:$0xff]
      %v2551 = vld [vmem:[%s165 + $0x134] sm:$0xff]
      %v2552 = vld [vmem:[%s165 + $0x13c] sm:$0xff]
      %v2553 = vld [vmem:[%s165 + $0x144] sm:$0xff]
      %v2554 = vld [vmem:[%s165 + $0x14c] sm:$0xff]
      %v2555 = vld [vmem:[%s165 + $0x154] sm:$0xff]
      %v2556 = vld [vmem:[%s165 + $0x15c] sm:$0xff]
      %v2557 = vld [vmem:[%s165 + $0x164] sm:$0xff]
      %v2558 = vld [vmem:[%s165 + $0x16c] sm:$0xff]
      %v2559 = vld [vmem:[%s165 + $0x174] sm:$0xff]
      %v2560 = vld [vmem:[%s165 + $0x17c] sm:$0xff]
      %v2561 = vld [vmem:[%s165 + $0x184] sm:$0xff]
      %v2562 = vld [vmem:[%s165 + $0x18c] sm:$0xff]
      %v2563 = vld [vmem:[%s165 + $0x194] sm:$0xff]
      %v2564 = vld [vmem:[%s165 + $0x19c] sm:$0xff]
      %s2565 = scalar_lea.vmem %s1, 192
      %v2566 = vld [vmem:[%s2565] sm:$0xff]
      %v2567 = vld [vmem:[%s2565 + $0x8] sm:$0xff]
      %v2568 = vld [vmem:[%s2565 + $0x10] sm:$0xff]
      %v2569 = vld [vmem:[%s2565 + $0x18] sm:$0xff]
      %v2571 = vsel %vm276, %v2566, 0
      %v2574 = vsel %vm276, %v2567, 0
      %v2577 = vsel %vm276, %v2568, 0
      %v2580 = vsel %vm276, %v2569, 0
      %v2583 = vsel %vm276, %v2517, 0
      %v2586 = vsel %vm276, %v2518, 0
      %v2589 = vsel %vm276, %v2519, 0
      %v2592 = vsel %vm276, %v2520, 0
      %v2595 = vsel %vm276, %v2521, 0
      %v2598 = vsel %vm276, %v2522, 0
      %v2601 = vsel %vm276, %v2523, 0
      %v2604 = vsel %vm276, %v2524, 0
      %v2607 = vsel %vm276, %v2525, 0
      %v2610 = vsel %vm276, %v2526, 0
      %v2613 = vsel %vm276, %v2527, 0
      %v2616 = vsel %vm276, %v2528, 0
      %v2619 = vsel %vm276, %v2529, 0
      %v2622 = vsel %vm276, %v2530, 0
      %v2625 = vsel %vm276, %v2531, 0
      %v2628 = vsel %vm276, %v2532, 0
      %v2631 = vsel %vm276, %v2533, 0
      %v2634 = vsel %vm276, %v2534, 0
      %v2637 = vsel %vm276, %v2535, 0
      %v2640 = vsel %vm276, %v2536, 0
      %v2643 = vsel %vm276, %v2537, 0
      %v2646 = vsel %vm276, %v2538, 0
      %v2649 = vsel %vm276, %v2539, 0
      %v2652 = vsel %vm276, %v2540, 0
      %v2655 = vsel %vm276, %v2541, 0
      %v2658 = vsel %vm276, %v2542, 0
      %v2661 = vsel %vm276, %v2543, 0
      %v2664 = vsel %vm276, %v2544, 0
      %v2667 = vsel %vm276, %v2545, 0
      %v2670 = vsel %vm276, %v2546, 0
      %v2673 = vsel %vm276, %v2547, 0
      %v2676 = vsel %vm276, %v2548, 0
      %v2679 = vsel %vm276, %v2549, 0
      %v2682 = vsel %vm276, %v2550, 0
      %v2685 = vsel %vm276, %v2551, 0
      %v2688 = vsel %vm276, %v2552, 0
      %v2691 = vsel %vm276, %v2553, 0
      %v2694 = vsel %vm276, %v2554, 0
      %v2697 = vsel %vm276, %v2555, 0
      %v2700 = vsel %vm276, %v2556, 0
      %v2703 = vsel %vm276, %v2557, 0
      %v2706 = vsel %vm276, %v2558, 0
      %v2709 = vsel %vm276, %v2559, 0
      %v2712 = vsel %vm276, %v2560, 0
      %v2715 = vsel %vm276, %v2561, 0
      %v2718 = vsel %vm276, %v2562, 0
      %v2721 = vsel %vm276, %v2563, 0
      %v2724 = vsel %vm276, %v2564, 0
      %2726 = vmatprep.subr.mxu0 0.0
      %2727 = vmatpush1.xpose.msra.mxu0 %v2628
      %2728 = vmatprep.subr.mxu0 0.0
      %2729 = vmatpush1.xpose.msra.mxu0 %v2625
      %2730 = vmatprep.subr.mxu0 0.0
      %2731 = vmatpush1.xpose.msra.mxu0 %v2622
      %2732 = vmatprep.subr.mxu0 0.0
      %2733 = vmatpush1.xpose.msra.mxu0 %v2619
      %2734 = vmatprep.subr.mxu0 0.0
      %2735 = vmatpush1.xpose.msra.mxu0 %v2616
      %2736 = vmatprep.subr.mxu0 0.0
      %2737 = vmatpush1.xpose.msra.mxu0 %v2613
      %2738 = vmatprep.subr.mxu0 0.0
      %2739 = vmatpush1.xpose.msra.mxu0 %v2610
      %2740 = vmatprep.subr.mxu0 0.0
      %2741 = vmatpush1.xpose.msra.mxu0 %v2607
      %2742 = vmatprep.subr.mxu0 0.0
      %2743 = vmatpush1.xpose.msra.mxu0 %v2604
      %2744 = vmatprep.subr.mxu0 0.0
      %2745 = vmatpush1.xpose.msra.mxu0 %v2601
      %2746 = vmatprep.subr.mxu0 0.0
      %2747 = vmatpush1.xpose.msra.mxu0 %v2598
      %2748 = vmatprep.subr.mxu0 0.0
      %2749 = vmatpush1.xpose.msra.mxu0 %v2595
      %2750 = vmatprep.subr.mxu0 0.0
      %2751 = vmatpush1.xpose.msra.mxu0 %v2592
      %2752 = vmatprep.subr.mxu0 0.0
      %2753 = vmatpush1.xpose.msra.mxu0 %v2589
      %2754 = vmatprep.subr.mxu0 0.0
      %2755 = vmatpush1.xpose.msra.mxu0 %v2586
      %2756 = vmatprep.subr.mxu0 0.0
      %2757 = vmatpush1.xpose.msra.mxu0 %v2583
      %2758 = vmatprep.subr.mxu0 0.0
      %2759 = vmatpush2.xpose.msra.mxu0 %v2676
      %2760 = vmatprep.subr.mxu0 0.0
      %2761 = vmatpush2.xpose.msra.mxu0 %v2673
      %2762 = vmatprep.subr.mxu0 0.0
      %2763 = vmatpush2.xpose.msra.mxu0 %v2670
      %2764 = vmatprep.subr.mxu0 0.0
      %2765 = vmatpush2.xpose.msra.mxu0 %v2667
      %2766 = vmatprep.subr.mxu0 0.0
      %2767 = vmatpush2.xpose.msra.mxu0 %v2664
      %2768 = vmatprep.subr.mxu0 0.0
      %2769 = vmatpush2.xpose.msra.mxu0 %v2661
      %2770 = vmatprep.subr.mxu0 0.0
      %2771 = vmatpush2.xpose.msra.mxu0 %v2658
      %2772 = vmatprep.subr.mxu0 0.0
      %2773 = vmatpush2.xpose.msra.mxu0 %v2655
      %2774 = vmatprep.subr.mxu0 0.0
      %2775 = vmatpush2.xpose.msra.mxu0 %v2652
      %2776 = vmatprep.subr.mxu0 0.0
      %2777 = vmatpush2.xpose.msra.mxu0 %v2649
      %2778 = vmatprep.subr.mxu0 0.0
      %2779 = vmatpush2.xpose.msra.mxu0 %v2646
      %2780 = vmatprep.subr.mxu0 0.0
      %2781 = vmatpush2.xpose.msra.mxu0 %v2643
      %2782 = vmatprep.subr.mxu0 0.0
      %2783 = vmatpush2.xpose.msra.mxu0 %v2640
      %2784 = vmatprep.subr.mxu0 0.0
      %2785 = vmatpush2.xpose.msra.mxu0 %v2637
      %2786 = vmatprep.subr.mxu0 0.0
      %2787 = vmatpush2.xpose.msra.mxu0 %v2634
      %2788 = vmatprep.subr.mxu0 0.0
      %2789 = vmatpush2.xpose.msra.mxu0 %v2631
      %2790 = vmatprep.mubr.f32.mxu0 0.0
      %2791 = vmatmul.mubr.f32.gmra.mxu0 %v2571
      %v2792 = vpop.f32.mrf.mxu0
      %v2793 = vadd.f32 0.0, %v2792
      %v2794 = vpop.f32.mrf.mxu0
      %v2795 = vadd.f32 0.0, %v2794
      %2796 = vmatprep.mubr.f32.mxu0 0.0
      %2797 = vmatmul.mubr.f32.gmra.mxu0 %v2574
      %v2798 = vpop.f32.mrf.mxu0
      %v2799 = vadd.f32 0.0, %v2798
      %v2800 = vpop.f32.mrf.mxu0
      %v2801 = vadd.f32 0.0, %v2800
      %2802 = vmatprep.mubr.f32.mxu0 0.0
      %2803 = vmatmul.mubr.f32.gmra.mxu0 %v2577
      %v2804 = vpop.f32.mrf.mxu0
      %v2805 = vadd.f32 0.0, %v2804
      %v2806 = vpop.f32.mrf.mxu0
      %v2807 = vadd.f32 0.0, %v2806
      %2808 = vmatprep.mubr.f32.mxu0 0.0
      %2809 = vmatmul.mubr.f32.gmra.mxu0 %v2580
      %v2810 = vpop.f32.mrf.mxu0
      %v2811 = vadd.f32 0.0, %v2810
      %v2812 = vpop.f32.mrf.mxu0
      %v2813 = vadd.f32 0.0, %v2812
      %2814 = vdwg.mxu0
      %2815 = vmatprep.subr.mxu0 0.0
      %2816 = vmatpush1.xpose.msra.mxu0 %v2724
      %2817 = vmatprep.subr.mxu0 0.0
      %2818 = vmatpush1.xpose.msra.mxu0 %v2721
      %2819 = vmatprep.subr.mxu0 0.0
      %2820 = vmatpush1.xpose.msra.mxu0 %v2718
      %2821 = vmatprep.subr.mxu0 0.0
      %2822 = vmatpush1.xpose.msra.mxu0 %v2715
      %2823 = vmatprep.subr.mxu0 0.0
      %2824 = vmatpush1.xpose.msra.mxu0 %v2712
      %2825 = vmatprep.subr.mxu0 0.0
      %2826 = vmatpush1.xpose.msra.mxu0 %v2709
      %2827 = vmatprep.subr.mxu0 0.0
      %2828 = vmatpush1.xpose.msra.mxu0 %v2706
      %2829 = vmatprep.subr.mxu0 0.0
      %2830 = vmatpush1.xpose.msra.mxu0 %v2703
      %2831 = vmatprep.subr.mxu0 0.0
      %2832 = vmatpush1.xpose.msra.mxu0 %v2700
      %2833 = vmatprep.subr.mxu0 0.0
      %2834 = vmatpush1.xpose.msra.mxu0 %v2697
      %2835 = vmatprep.subr.mxu0 0.0
      %2836 = vmatpush1.xpose.msra.mxu0 %v2694
      %2837 = vmatprep.subr.mxu0 0.0
      %2838 = vmatpush1.xpose.msra.mxu0 %v2691
      %2839 = vmatprep.subr.mxu0 0.0
      %2840 = vmatpush1.xpose.msra.mxu0 %v2688
      %2841 = vmatprep.subr.mxu0 0.0
      %2842 = vmatpush1.xpose.msra.mxu0 %v2685
      %2843 = vmatprep.subr.mxu0 0.0
      %2844 = vmatpush1.xpose.msra.mxu0 %v2682
      %2845 = vmatprep.subr.mxu0 0.0
      %2846 = vmatpush1.xpose.msra.mxu0 %v2679
      %2847 = vmatprep.subr.mxu0 0.0
      %2848 = vmatpush2.xpose.msra.mxu0 0.0
      %2849 = vmatprep.subr.mxu0 0.0
      %2850 = vmatpush2.xpose.msra.mxu0 0.0
      %2851 = vmatprep.subr.mxu0 0.0
      %2852 = vmatpush2.xpose.msra.mxu0 0.0
      %2853 = vmatprep.subr.mxu0 0.0
      %2854 = vmatpush2.xpose.msra.mxu0 0.0
      %2855 = vmatprep.subr.mxu0 0.0
      %2856 = vmatpush2.xpose.msra.mxu0 0.0
      %2857 = vmatprep.subr.mxu0 0.0
      %2858 = vmatpush2.xpose.msra.mxu0 0.0
      %2859 = vmatprep.subr.mxu0 0.0
      %2860 = vmatpush2.xpose.msra.mxu0 0.0
      %2861 = vmatprep.subr.mxu0 0.0
      %2862 = vmatpush2.xpose.msra.mxu0 0.0
      %2863 = vmatprep.subr.mxu0 0.0
      %2864 = vmatpush2.xpose.msra.mxu0 0.0
      %2865 = vmatprep.subr.mxu0 0.0
      %2866 = vmatpush2.xpose.msra.mxu0 0.0
      %2867 = vmatprep.subr.mxu0 0.0
      %2868 = vmatpush2.xpose.msra.mxu0 0.0
      %2869 = vmatprep.subr.mxu0 0.0
      %2870 = vmatpush2.xpose.msra.mxu0 0.0
      %2871 = vmatprep.subr.mxu0 0.0
      %2872 = vmatpush2.xpose.msra.mxu0 0.0
      %2873 = vmatprep.subr.mxu0 0.0
      %2874 = vmatpush2.xpose.msra.mxu0 0.0
      %2875 = vmatprep.subr.mxu0 0.0
      %2876 = vmatpush2.xpose.msra.mxu0 0.0
      %2877 = vmatprep.subr.mxu0 0.0
      %2878 = vmatpush2.xpose.msra.mxu0 0.0
      %2879 = vmatprep.mubr.f32.mxu0 0.0
      %2880 = vmatmul.mubr.f32.gmra.mxu0 %v2571
      %v2881 = vpop.f32.mrf.mxu0
      %v2882 = vadd.f32 0.0, %v2881
      %v2883 = vpop.f32.mrf.mxu0
      %2884 = vmatprep.mubr.f32.mxu0 0.0
      %2885 = vmatmul.mubr.f32.gmra.mxu0 %v2574
      %v2886 = vpop.f32.mrf.mxu0
      %v2887 = vadd.f32 0.0, %v2886
      %v2888 = vpop.f32.mrf.mxu0
      %2889 = vmatprep.mubr.f32.mxu0 0.0
      %2890 = vmatmul.mubr.f32.gmra.mxu0 %v2577
      %v2891 = vpop.f32.mrf.mxu0
      %v2892 = vadd.f32 0.0, %v2891
      %v2893 = vpop.f32.mrf.mxu0
      %2894 = vmatprep.mubr.f32.mxu0 0.0
      %2895 = vmatmul.mubr.f32.gmra.mxu0 %v2580
      %v2896 = vpop.f32.mrf.mxu0
      %v2897 = vadd.f32 0.0, %v2896
      %v2898 = vpop.f32.mrf.mxu0
      %2899 = vdwg.mxu0
      %v2900 = vadd.f32 %v2505, %v2793
      %v2901 = vadd.f32 %v2506, %v2795
      %v2902 = vadd.f32 %v2507, %v2882
      %v2903 = vadd.f32 %v2508, %v2799
      %v2904 = vadd.f32 %v2509, %v2801
      %v2905 = vadd.f32 %v2510, %v2887
      %v2906 = vadd.f32 %v2511, %v2805
      %v2907 = vadd.f32 %v2512, %v2807
      %v2908 = vadd.f32 %v2513, %v2892
      %v2909 = vadd.f32 %v2514, %v2811
      %v2910 = vadd.f32 %v2515, %v2813
      %v2911 = vadd.f32 %v2516, %v2897
      %v2912 = vld [vmem:[%s165 + $0x25] sm:$0xff]
      %v2913 = vld [vmem:[%s165 + $0x2d] sm:$0xff]
      %v2914 = vld [vmem:[%s165 + $0x35] sm:$0xff]
      %v2915 = vld [vmem:[%s165 + $0x3d] sm:$0xff]
      %v2916 = vld [vmem:[%s165 + $0x45] sm:$0xff]
      %v2917 = vld [vmem:[%s165 + $0x4d] sm:$0xff]
      %v2918 = vld [vmem:[%s165 + $0x55] sm:$0xff]
      %v2919 = vld [vmem:[%s165 + $0x5d] sm:$0xff]
      %v2920 = vld [vmem:[%s165 + $0x65] sm:$0xff]
      %v2921 = vld [vmem:[%s165 + $0x6d] sm:$0xff]
      %v2922 = vld [vmem:[%s165 + $0x75] sm:$0xff]
      %v2923 = vld [vmem:[%s165 + $0x7d] sm:$0xff]
      %v2924 = vld [vmem:[%s165 + $0x85] sm:$0xff]
      %v2925 = vld [vmem:[%s165 + $0x8d] sm:$0xff]
      %v2926 = vld [vmem:[%s165 + $0x95] sm:$0xff]
      %v2927 = vld [vmem:[%s165 + $0x9d] sm:$0xff]
      %v2928 = vld [vmem:[%s165 + $0xa5] sm:$0xff]
      %v2929 = vld [vmem:[%s165 + $0xad] sm:$0xff]
      %v2930 = vld [vmem:[%s165 + $0xb5] sm:$0xff]
      %v2931 = vld [vmem:[%s165 + $0xbd] sm:$0xff]
      %v2932 = vld [vmem:[%s165 + $0xc5] sm:$0xff]
      %v2933 = vld [vmem:[%s165 + $0xcd] sm:$0xff]
      %v2934 = vld [vmem:[%s165 + $0xd5] sm:$0xff]
      %v2935 = vld [vmem:[%s165 + $0xdd] sm:$0xff]
      %v2936 = vld [vmem:[%s165 + $0xe5] sm:$0xff]
      %v2937 = vld [vmem:[%s165 + $0xed] sm:$0xff]
      %v2938 = vld [vmem:[%s165 + $0xf5] sm:$0xff]
      %v2939 = vld [vmem:[%s165 + $0xfd] sm:$0xff]
      %v2940 = vld [vmem:[%s165 + $0x105] sm:$0xff]
      %v2941 = vld [vmem:[%s165 + $0x10d] sm:$0xff]
      %v2942 = vld [vmem:[%s165 + $0x115] sm:$0xff]
      %v2943 = vld [vmem:[%s165 + $0x11d] sm:$0xff]
      %v2944 = vld [vmem:[%s165 + $0x125] sm:$0xff]
      %v2945 = vld [vmem:[%s165 + $0x12d] sm:$0xff]
      %v2946 = vld [vmem:[%s165 + $0x135] sm:$0xff]
      %v2947 = vld [vmem:[%s165 + $0x13d] sm:$0xff]
      %v2948 = vld [vmem:[%s165 + $0x145] sm:$0xff]
      %v2949 = vld [vmem:[%s165 + $0x14d] sm:$0xff]
      %v2950 = vld [vmem:[%s165 + $0x155] sm:$0xff]
      %v2951 = vld [vmem:[%s165 + $0x15d] sm:$0xff]
      %v2952 = vld [vmem:[%s165 + $0x165] sm:$0xff]
      %v2953 = vld [vmem:[%s165 + $0x16d] sm:$0xff]
      %v2954 = vld [vmem:[%s165 + $0x175] sm:$0xff]
      %v2955 = vld [vmem:[%s165 + $0x17d] sm:$0xff]
      %v2956 = vld [vmem:[%s165 + $0x185] sm:$0xff]
      %v2957 = vld [vmem:[%s165 + $0x18d] sm:$0xff]
      %v2958 = vld [vmem:[%s165 + $0x195] sm:$0xff]
      %v2959 = vld [vmem:[%s165 + $0x19d] sm:$0xff]
      %s2960 = scalar_lea.vmem %s1, 224
      %v2961 = vld [vmem:[%s2960] sm:$0xff]
      %v2962 = vld [vmem:[%s2960 + $0x8] sm:$0xff]
      %v2963 = vld [vmem:[%s2960 + $0x10] sm:$0xff]
      %v2964 = vld [vmem:[%s2960 + $0x18] sm:$0xff]
      %v2966 = vsel %vm276, %v2961, 0
      %v2969 = vsel %vm276, %v2962, 0
      %v2972 = vsel %vm276, %v2963, 0
      %v2975 = vsel %vm276, %v2964, 0
      %v2978 = vsel %vm276, %v2912, 0
      %v2981 = vsel %vm276, %v2913, 0
      %v2984 = vsel %vm276, %v2914, 0
      %v2987 = vsel %vm276, %v2915, 0
      %v2990 = vsel %vm276, %v2916, 0
      %v2993 = vsel %vm276, %v2917, 0
      %v2996 = vsel %vm276, %v2918, 0
      %v2999 = vsel %vm276, %v2919, 0
      %v3002 = vsel %vm276, %v2920, 0
      %v3005 = vsel %vm276, %v2921, 0
      %v3008 = vsel %vm276, %v2922, 0
      %v3011 = vsel %vm276, %v2923, 0
      %v3014 = vsel %vm276, %v2924, 0
      %v3017 = vsel %vm276, %v2925, 0
      %v3020 = vsel %vm276, %v2926, 0
      %v3023 = vsel %vm276, %v2927, 0
      %v3026 = vsel %vm276, %v2928, 0
      %v3029 = vsel %vm276, %v2929, 0
      %v3032 = vsel %vm276, %v2930, 0
      %v3035 = vsel %vm276, %v2931, 0
      %v3038 = vsel %vm276, %v2932, 0
      %v3041 = vsel %vm276, %v2933, 0
      %v3044 = vsel %vm276, %v2934, 0
      %v3047 = vsel %vm276, %v2935, 0
      %v3050 = vsel %vm276, %v2936, 0
      %v3053 = vsel %vm276, %v2937, 0
      %v3056 = vsel %vm276, %v2938, 0
      %v3059 = vsel %vm276, %v2939, 0
      %v3062 = vsel %vm276, %v2940, 0
      %v3065 = vsel %vm276, %v2941, 0
      %v3068 = vsel %vm276, %v2942, 0
      %v3071 = vsel %vm276, %v2943, 0
      %v3074 = vsel %vm276, %v2944, 0
      %v3077 = vsel %vm276, %v2945, 0
      %v3080 = vsel %vm276, %v2946, 0
      %v3083 = vsel %vm276, %v2947, 0
      %v3086 = vsel %vm276, %v2948, 0
      %v3089 = vsel %vm276, %v2949, 0
      %v3092 = vsel %vm276, %v2950, 0
      %v3095 = vsel %vm276, %v2951, 0
      %v3098 = vsel %vm276, %v2952, 0
      %v3101 = vsel %vm276, %v2953, 0
      %v3104 = vsel %vm276, %v2954, 0
      %v3107 = vsel %vm276, %v2955, 0
      %v3110 = vsel %vm276, %v2956, 0
      %v3113 = vsel %vm276, %v2957, 0
      %v3116 = vsel %vm276, %v2958, 0
      %v3119 = vsel %vm276, %v2959, 0
      %3121 = vmatprep.subr.mxu0 0.0
      %3122 = vmatpush1.xpose.msra.mxu0 %v3023
      %3123 = vmatprep.subr.mxu0 0.0
      %3124 = vmatpush1.xpose.msra.mxu0 %v3020
      %3125 = vmatprep.subr.mxu0 0.0
      %3126 = vmatpush1.xpose.msra.mxu0 %v3017
      %3127 = vmatprep.subr.mxu0 0.0
      %3128 = vmatpush1.xpose.msra.mxu0 %v3014
      %3129 = vmatprep.subr.mxu0 0.0
      %3130 = vmatpush1.xpose.msra.mxu0 %v3011
      %3131 = vmatprep.subr.mxu0 0.0
      %3132 = vmatpush1.xpose.msra.mxu0 %v3008
      %3133 = vmatprep.subr.mxu0 0.0
      %3134 = vmatpush1.xpose.msra.mxu0 %v3005
      %3135 = vmatprep.subr.mxu0 0.0
      %3136 = vmatpush1.xpose.msra.mxu0 %v3002
      %3137 = vmatprep.subr.mxu0 0.0
      %3138 = vmatpush1.xpose.msra.mxu0 %v2999
      %3139 = vmatprep.subr.mxu0 0.0
      %3140 = vmatpush1.xpose.msra.mxu0 %v2996
      %3141 = vmatprep.subr.mxu0 0.0
      %3142 = vmatpush1.xpose.msra.mxu0 %v2993
      %3143 = vmatprep.subr.mxu0 0.0
      %3144 = vmatpush1.xpose.msra.mxu0 %v2990
      %3145 = vmatprep.subr.mxu0 0.0
      %3146 = vmatpush1.xpose.msra.mxu0 %v2987
      %3147 = vmatprep.subr.mxu0 0.0
      %3148 = vmatpush1.xpose.msra.mxu0 %v2984
      %3149 = vmatprep.subr.mxu0 0.0
      %3150 = vmatpush1.xpose.msra.mxu0 %v2981
      %3151 = vmatprep.subr.mxu0 0.0
      %3152 = vmatpush1.xpose.msra.mxu0 %v2978
      %3153 = vmatprep.subr.mxu0 0.0
      %3154 = vmatpush2.xpose.msra.mxu0 %v3071
      %3155 = vmatprep.subr.mxu0 0.0
      %3156 = vmatpush2.xpose.msra.mxu0 %v3068
      %3157 = vmatprep.subr.mxu0 0.0
      %3158 = vmatpush2.xpose.msra.mxu0 %v3065
      %3159 = vmatprep.subr.mxu0 0.0
      %3160 = vmatpush2.xpose.msra.mxu0 %v3062
      %3161 = vmatprep.subr.mxu0 0.0
      %3162 = vmatpush2.xpose.msra.mxu0 %v3059
      %3163 = vmatprep.subr.mxu0 0.0
      %3164 = vmatpush2.xpose.msra.mxu0 %v3056
      %3165 = vmatprep.subr.mxu0 0.0
      %3166 = vmatpush2.xpose.msra.mxu0 %v3053
      %3167 = vmatprep.subr.mxu0 0.0
      %3168 = vmatpush2.xpose.msra.mxu0 %v3050
      %3169 = vmatprep.subr.mxu0 0.0
      %3170 = vmatpush2.xpose.msra.mxu0 %v3047
      %3171 = vmatprep.subr.mxu0 0.0
      %3172 = vmatpush2.xpose.msra.mxu0 %v3044
      %3173 = vmatprep.subr.mxu0 0.0
      %3174 = vmatpush2.xpose.msra.mxu0 %v3041
      %3175 = vmatprep.subr.mxu0 0.0
      %3176 = vmatpush2.xpose.msra.mxu0 %v3038
      %3177 = vmatprep.subr.mxu0 0.0
      %3178 = vmatpush2.xpose.msra.mxu0 %v3035
      %3179 = vmatprep.subr.mxu0 0.0
      %3180 = vmatpush2.xpose.msra.mxu0 %v3032
      %3181 = vmatprep.subr.mxu0 0.0
      %3182 = vmatpush2.xpose.msra.mxu0 %v3029
      %3183 = vmatprep.subr.mxu0 0.0
      %3184 = vmatpush2.xpose.msra.mxu0 %v3026
      %3185 = vmatprep.mubr.f32.mxu0 0.0
      %3186 = vmatmul.mubr.f32.gmra.mxu0 %v2966
      %v3187 = vpop.f32.mrf.mxu0
      %v3188 = vadd.f32 0.0, %v3187
      %v3189 = vpop.f32.mrf.mxu0
      %v3190 = vadd.f32 0.0, %v3189
      %3191 = vmatprep.mubr.f32.mxu0 0.0
      %3192 = vmatmul.mubr.f32.gmra.mxu0 %v2969
      %v3193 = vpop.f32.mrf.mxu0
      %v3194 = vadd.f32 0.0, %v3193
      %v3195 = vpop.f32.mrf.mxu0
      %v3196 = vadd.f32 0.0, %v3195
      %3197 = vmatprep.mubr.f32.mxu0 0.0
      %3198 = vmatmul.mubr.f32.gmra.mxu0 %v2972
      %v3199 = vpop.f32.mrf.mxu0
      %v3200 = vadd.f32 0.0, %v3199
      %v3201 = vpop.f32.mrf.mxu0
      %v3202 = vadd.f32 0.0, %v3201
      %3203 = vmatprep.mubr.f32.mxu0 0.0
      %3204 = vmatmul.mubr.f32.gmra.mxu0 %v2975
      %v3205 = vpop.f32.mrf.mxu0
      %v3206 = vadd.f32 0.0, %v3205
      %v3207 = vpop.f32.mrf.mxu0
      %v3208 = vadd.f32 0.0, %v3207
      %3209 = vdwg.mxu0
      %3210 = vmatprep.subr.mxu0 0.0
      %3211 = vmatpush1.xpose.msra.mxu0 %v3119
      %3212 = vmatprep.subr.mxu0 0.0
      %3213 = vmatpush1.xpose.msra.mxu0 %v3116
      %3214 = vmatprep.subr.mxu0 0.0
      %3215 = vmatpush1.xpose.msra.mxu0 %v3113
      %3216 = vmatprep.subr.mxu0 0.0
      %3217 = vmatpush1.xpose.msra.mxu0 %v3110
      %3218 = vmatprep.subr.mxu0 0.0
      %3219 = vmatpush1.xpose.msra.mxu0 %v3107
      %3220 = vmatprep.subr.mxu0 0.0
      %3221 = vmatpush1.xpose.msra.mxu0 %v3104
      %3222 = vmatprep.subr.mxu0 0.0
      %3223 = vmatpush1.xpose.msra.mxu0 %v3101
      %3224 = vmatprep.subr.mxu0 0.0
      %3225 = vmatpush1.xpose.msra.mxu0 %v3098
      %3226 = vmatprep.subr.mxu0 0.0
      %3227 = vmatpush1.xpose.msra.mxu0 %v3095
      %3228 = vmatprep.subr.mxu0 0.0
      %3229 = vmatpush1.xpose.msra.mxu0 %v3092
      %3230 = vmatprep.subr.mxu0 0.0
      %3231 = vmatpush1.xpose.msra.mxu0 %v3089
      %3232 = vmatprep.subr.mxu0 0.0
      %3233 = vmatpush1.xpose.msra.mxu0 %v3086
      %3234 = vmatprep.subr.mxu0 0.0
      %3235 = vmatpush1.xpose.msra.mxu0 %v3083
      %3236 = vmatprep.subr.mxu0 0.0
      %3237 = vmatpush1.xpose.msra.mxu0 %v3080
      %3238 = vmatprep.subr.mxu0 0.0
      %3239 = vmatpush1.xpose.msra.mxu0 %v3077
      %3240 = vmatprep.subr.mxu0 0.0
      %3241 = vmatpush1.xpose.msra.mxu0 %v3074
      %3242 = vmatprep.subr.mxu0 0.0
      %3243 = vmatpush2.xpose.msra.mxu0 0.0
      %3244 = vmatprep.subr.mxu0 0.0
      %3245 = vmatpush2.xpose.msra.mxu0 0.0
      %3246 = vmatprep.subr.mxu0 0.0
      %3247 = vmatpush2.xpose.msra.mxu0 0.0
      %3248 = vmatprep.subr.mxu0 0.0
      %3249 = vmatpush2.xpose.msra.mxu0 0.0
      %3250 = vmatprep.subr.mxu0 0.0
      %3251 = vmatpush2.xpose.msra.mxu0 0.0
      %3252 = vmatprep.subr.mxu0 0.0
      %3253 = vmatpush2.xpose.msra.mxu0 0.0
      %3254 = vmatprep.subr.mxu0 0.0
      %3255 = vmatpush2.xpose.msra.mxu0 0.0
      %3256 = vmatprep.subr.mxu0 0.0
      %3257 = vmatpush2.xpose.msra.mxu0 0.0
      %3258 = vmatprep.subr.mxu0 0.0
      %3259 = vmatpush2.xpose.msra.mxu0 0.0
      %3260 = vmatprep.subr.mxu0 0.0
      %3261 = vmatpush2.xpose.msra.mxu0 0.0
      %3262 = vmatprep.subr.mxu0 0.0
      %3263 = vmatpush2.xpose.msra.mxu0 0.0
      %3264 = vmatprep.subr.mxu0 0.0
      %3265 = vmatpush2.xpose.msra.mxu0 0.0
      %3266 = vmatprep.subr.mxu0 0.0
      %3267 = vmatpush2.xpose.msra.mxu0 0.0
      %3268 = vmatprep.subr.mxu0 0.0
      %3269 = vmatpush2.xpose.msra.mxu0 0.0
      %3270 = vmatprep.subr.mxu0 0.0
      %3271 = vmatpush2.xpose.msra.mxu0 0.0
      %3272 = vmatprep.subr.mxu0 0.0
      %3273 = vmatpush2.xpose.msra.mxu0 0.0
      %3274 = vmatprep.mubr.f32.mxu0 0.0
      %3275 = vmatmul.mubr.f32.gmra.mxu0 %v2966
      %v3276 = vpop.f32.mrf.mxu0
      %v3277 = vadd.f32 0.0, %v3276
      %v3278 = vpop.f32.mrf.mxu0
      %3279 = vmatprep.mubr.f32.mxu0 0.0
      %3280 = vmatmul.mubr.f32.gmra.mxu0 %v2969
      %v3281 = vpop.f32.mrf.mxu0
      %v3282 = vadd.f32 0.0, %v3281
      %v3283 = vpop.f32.mrf.mxu0
      %3284 = vmatprep.mubr.f32.mxu0 0.0
      %3285 = vmatmul.mubr.f32.gmra.mxu0 %v2972
      %v3286 = vpop.f32.mrf.mxu0
      %v3287 = vadd.f32 0.0, %v3286
      %v3288 = vpop.f32.mrf.mxu0
      %3289 = vmatprep.mubr.f32.mxu0 0.0
      %3290 = vmatmul.mubr.f32.gmra.mxu0 %v2975
      %v3291 = vpop.f32.mrf.mxu0
      %v3292 = vadd.f32 0.0, %v3291
      %v3293 = vpop.f32.mrf.mxu0
      %3294 = vdwg.mxu0
      %v3295 = vadd.f32 %v2900, %v3188
      %v3296 = vadd.f32 %v2901, %v3190
      %v3297 = vadd.f32 %v2902, %v3277
      %v3298 = vadd.f32 %v2903, %v3194
      %v3299 = vadd.f32 %v2904, %v3196
      %v3300 = vadd.f32 %v2905, %v3282
      %v3301 = vadd.f32 %v2906, %v3200
      %v3302 = vadd.f32 %v2907, %v3202
      %v3303 = vadd.f32 %v2908, %v3287
      %v3304 = vadd.f32 %v2909, %v3206
      %v3305 = vadd.f32 %v2910, %v3208
      %v3306 = vadd.f32 %v2911, %v3292
      %v3307 = vld [vmem:[%s165 + $0x26] sm:$0xff]
      %v3308 = vld [vmem:[%s165 + $0x2e] sm:$0xff]
      %v3309 = vld [vmem:[%s165 + $0x36] sm:$0xff]
      %v3310 = vld [vmem:[%s165 + $0x3e] sm:$0xff]
      %v3311 = vld [vmem:[%s165 + $0x46] sm:$0xff]
      %v3312 = vld [vmem:[%s165 + $0x4e] sm:$0xff]
      %v3313 = vld [vmem:[%s165 + $0x56] sm:$0xff]
      %v3314 = vld [vmem:[%s165 + $0x5e] sm:$0xff]
      %v3315 = vld [vmem:[%s165 + $0x66] sm:$0xff]
      %v3316 = vld [vmem:[%s165 + $0x6e] sm:$0xff]
      %v3317 = vld [vmem:[%s165 + $0x76] sm:$0xff]
      %v3318 = vld [vmem:[%s165 + $0x7e] sm:$0xff]
      %v3319 = vld [vmem:[%s165 + $0x86] sm:$0xff]
      %v3320 = vld [vmem:[%s165 + $0x8e] sm:$0xff]
      %v3321 = vld [vmem:[%s165 + $0x96] sm:$0xff]
      %v3322 = vld [vmem:[%s165 + $0x9e] sm:$0xff]
      %v3323 = vld [vmem:[%s165 + $0xa6] sm:$0xff]
      %v3324 = vld [vmem:[%s165 + $0xae] sm:$0xff]
      %v3325 = vld [vmem:[%s165 + $0xb6] sm:$0xff]
      %v3326 = vld [vmem:[%s165 + $0xbe] sm:$0xff]
      %v3327 = vld [vmem:[%s165 + $0xc6] sm:$0xff]
      %v3328 = vld [vmem:[%s165 + $0xce] sm:$0xff]
      %v3329 = vld [vmem:[%s165 + $0xd6] sm:$0xff]
      %v3330 = vld [vmem:[%s165 + $0xde] sm:$0xff]
      %v3331 = vld [vmem:[%s165 + $0xe6] sm:$0xff]
      %v3332 = vld [vmem:[%s165 + $0xee] sm:$0xff]
      %v3333 = vld [vmem:[%s165 + $0xf6] sm:$0xff]
      %v3334 = vld [vmem:[%s165 + $0xfe] sm:$0xff]
      %v3335 = vld [vmem:[%s165 + $0x106] sm:$0xff]
      %v3336 = vld [vmem:[%s165 + $0x10e] sm:$0xff]
      %v3337 = vld [vmem:[%s165 + $0x116] sm:$0xff]
      %v3338 = vld [vmem:[%s165 + $0x11e] sm:$0xff]
      %v3339 = vld [vmem:[%s165 + $0x126] sm:$0xff]
      %v3340 = vld [vmem:[%s165 + $0x12e] sm:$0xff]
      %v3341 = vld [vmem:[%s165 + $0x136] sm:$0xff]
      %v3342 = vld [vmem:[%s165 + $0x13e] sm:$0xff]
      %v3343 = vld [vmem:[%s165 + $0x146] sm:$0xff]
      %v3344 = vld [vmem:[%s165 + $0x14e] sm:$0xff]
      %v3345 = vld [vmem:[%s165 + $0x156] sm:$0xff]
      %v3346 = vld [vmem:[%s165 + $0x15e] sm:$0xff]
      %v3347 = vld [vmem:[%s165 + $0x166] sm:$0xff]
      %v3348 = vld [vmem:[%s165 + $0x16e] sm:$0xff]
      %v3349 = vld [vmem:[%s165 + $0x176] sm:$0xff]
      %v3350 = vld [vmem:[%s165 + $0x17e] sm:$0xff]
      %v3351 = vld [vmem:[%s165 + $0x186] sm:$0xff]
      %v3352 = vld [vmem:[%s165 + $0x18e] sm:$0xff]
      %v3353 = vld [vmem:[%s165 + $0x196] sm:$0xff]
      %v3354 = vld [vmem:[%s165 + $0x19e] sm:$0xff]
      %s3355 = scalar_lea.vmem %s1, 256
      %v3356 = vld [vmem:[%s3355] sm:$0xff]
      %v3357 = vld [vmem:[%s3355 + $0x8] sm:$0xff]
      %v3358 = vld [vmem:[%s3355 + $0x10] sm:$0xff]
      %v3359 = vld [vmem:[%s3355 + $0x18] sm:$0xff]
      %v3361 = vsel %vm276, %v3356, 0
      %v3364 = vsel %vm276, %v3357, 0
      %v3367 = vsel %vm276, %v3358, 0
      %v3370 = vsel %vm276, %v3359, 0
      %v3373 = vsel %vm276, %v3307, 0
      %v3376 = vsel %vm276, %v3308, 0
      %v3379 = vsel %vm276, %v3309, 0
      %v3382 = vsel %vm276, %v3310, 0
      %v3385 = vsel %vm276, %v3311, 0
      %v3388 = vsel %vm276, %v3312, 0
      %v3391 = vsel %vm276, %v3313, 0
      %v3394 = vsel %vm276, %v3314, 0
      %v3397 = vsel %vm276, %v3315, 0
      %v3400 = vsel %vm276, %v3316, 0
      %v3403 = vsel %vm276, %v3317, 0
      %v3406 = vsel %vm276, %v3318, 0
      %v3409 = vsel %vm276, %v3319, 0
      %v3412 = vsel %vm276, %v3320, 0
      %v3415 = vsel %vm276, %v3321, 0
      %v3418 = vsel %vm276, %v3322, 0
      %v3421 = vsel %vm276, %v3323, 0
      %v3424 = vsel %vm276, %v3324, 0
      %v3427 = vsel %vm276, %v3325, 0
      %v3430 = vsel %vm276, %v3326, 0
      %v3433 = vsel %vm276, %v3327, 0
      %v3436 = vsel %vm276, %v3328, 0
      %v3439 = vsel %vm276, %v3329, 0
      %v3442 = vsel %vm276, %v3330, 0
      %v3445 = vsel %vm276, %v3331, 0
      %v3448 = vsel %vm276, %v3332, 0
      %v3451 = vsel %vm276, %v3333, 0
      %v3454 = vsel %vm276, %v3334, 0
      %v3457 = vsel %vm276, %v3335, 0
      %v3460 = vsel %vm276, %v3336, 0
      %v3463 = vsel %vm276, %v3337, 0
      %v3466 = vsel %vm276, %v3338, 0
      %v3469 = vsel %vm276, %v3339, 0
      %v3472 = vsel %vm276, %v3340, 0
      %v3475 = vsel %vm276, %v3341, 0
      %v3478 = vsel %vm276, %v3342, 0
      %v3481 = vsel %vm276, %v3343, 0
      %v3484 = vsel %vm276, %v3344, 0
      %v3487 = vsel %vm276, %v3345, 0
      %v3490 = vsel %vm276, %v3346, 0
      %v3493 = vsel %vm276, %v3347, 0
      %v3496 = vsel %vm276, %v3348, 0
      %v3499 = vsel %vm276, %v3349, 0
      %v3502 = vsel %vm276, %v3350, 0
      %v3505 = vsel %vm276, %v3351, 0
      %v3508 = vsel %vm276, %v3352, 0
      %v3511 = vsel %vm276, %v3353, 0
      %v3514 = vsel %vm276, %v3354, 0
      %3516 = vmatprep.subr.mxu0 0.0
      %3517 = vmatpush1.xpose.msra.mxu0 %v3418
      %3518 = vmatprep.subr.mxu0 0.0
      %3519 = vmatpush1.xpose.msra.mxu0 %v3415
      %3520 = vmatprep.subr.mxu0 0.0
      %3521 = vmatpush1.xpose.msra.mxu0 %v3412
      %3522 = vmatprep.subr.mxu0 0.0
      %3523 = vmatpush1.xpose.msra.mxu0 %v3409
      %3524 = vmatprep.subr.mxu0 0.0
      %3525 = vmatpush1.xpose.msra.mxu0 %v3406
      %3526 = vmatprep.subr.mxu0 0.0
      %3527 = vmatpush1.xpose.msra.mxu0 %v3403
      %3528 = vmatprep.subr.mxu0 0.0
      %3529 = vmatpush1.xpose.msra.mxu0 %v3400
      %3530 = vmatprep.subr.mxu0 0.0
      %3531 = vmatpush1.xpose.msra.mxu0 %v3397
      %3532 = vmatprep.subr.mxu0 0.0
      %3533 = vmatpush1.xpose.msra.mxu0 %v3394
      %3534 = vmatprep.subr.mxu0 0.0
      %3535 = vmatpush1.xpose.msra.mxu0 %v3391
      %3536 = vmatprep.subr.mxu0 0.0
      %3537 = vmatpush1.xpose.msra.mxu0 %v3388
      %3538 = vmatprep.subr.mxu0 0.0
      %3539 = vmatpush1.xpose.msra.mxu0 %v3385
      %3540 = vmatprep.subr.mxu0 0.0
      %3541 = vmatpush1.xpose.msra.mxu0 %v3382
      %3542 = vmatprep.subr.mxu0 0.0
      %3543 = vmatpush1.xpose.msra.mxu0 %v3379
      %3544 = vmatprep.subr.mxu0 0.0
      %3545 = vmatpush1.xpose.msra.mxu0 %v3376
      %3546 = vmatprep.subr.mxu0 0.0
      %3547 = vmatpush1.xpose.msra.mxu0 %v3373
      %3548 = vmatprep.subr.mxu0 0.0
      %3549 = vmatpush2.xpose.msra.mxu0 %v3466
      %3550 = vmatprep.subr.mxu0 0.0
      %3551 = vmatpush2.xpose.msra.mxu0 %v3463
      %3552 = vmatprep.subr.mxu0 0.0
      %3553 = vmatpush2.xpose.msra.mxu0 %v3460
      %3554 = vmatprep.subr.mxu0 0.0
      %3555 = vmatpush2.xpose.msra.mxu0 %v3457
      %3556 = vmatprep.subr.mxu0 0.0
      %3557 = vmatpush2.xpose.msra.mxu0 %v3454
      %3558 = vmatprep.subr.mxu0 0.0
      %3559 = vmatpush2.xpose.msra.mxu0 %v3451
      %3560 = vmatprep.subr.mxu0 0.0
      %3561 = vmatpush2.xpose.msra.mxu0 %v3448
      %3562 = vmatprep.subr.mxu0 0.0
      %3563 = vmatpush2.xpose.msra.mxu0 %v3445
      %3564 = vmatprep.subr.mxu0 0.0
      %3565 = vmatpush2.xpose.msra.mxu0 %v3442
      %3566 = vmatprep.subr.mxu0 0.0
      %3567 = vmatpush2.xpose.msra.mxu0 %v3439
      %3568 = vmatprep.subr.mxu0 0.0
      %3569 = vmatpush2.xpose.msra.mxu0 %v3436
      %3570 = vmatprep.subr.mxu0 0.0
      %3571 = vmatpush2.xpose.msra.mxu0 %v3433
      %3572 = vmatprep.subr.mxu0 0.0
      %3573 = vmatpush2.xpose.msra.mxu0 %v3430
      %3574 = vmatprep.subr.mxu0 0.0
      %3575 = vmatpush2.xpose.msra.mxu0 %v3427
      %3576 = vmatprep.subr.mxu0 0.0
      %3577 = vmatpush2.xpose.msra.mxu0 %v3424
      %3578 = vmatprep.subr.mxu0 0.0
      %3579 = vmatpush2.xpose.msra.mxu0 %v3421
      %3580 = vmatprep.mubr.f32.mxu0 0.0
      %3581 = vmatmul.mubr.f32.gmra.mxu0 %v3361
      %v3582 = vpop.f32.mrf.mxu0
      %v3583 = vadd.f32 0.0, %v3582
      %v3584 = vpop.f32.mrf.mxu0
      %v3585 = vadd.f32 0.0, %v3584
      %3586 = vmatprep.mubr.f32.mxu0 0.0
      %3587 = vmatmul.mubr.f32.gmra.mxu0 %v3364
      %v3588 = vpop.f32.mrf.mxu0
      %v3589 = vadd.f32 0.0, %v3588
      %v3590 = vpop.f32.mrf.mxu0
      %v3591 = vadd.f32 0.0, %v3590
      %3592 = vmatprep.mubr.f32.mxu0 0.0
      %3593 = vmatmul.mubr.f32.gmra.mxu0 %v3367
      %v3594 = vpop.f32.mrf.mxu0
      %v3595 = vadd.f32 0.0, %v3594
      %v3596 = vpop.f32.mrf.mxu0
      %v3597 = vadd.f32 0.0, %v3596
      %3598 = vmatprep.mubr.f32.mxu0 0.0
      %3599 = vmatmul.mubr.f32.gmra.mxu0 %v3370
      %v3600 = vpop.f32.mrf.mxu0
      %v3601 = vadd.f32 0.0, %v3600
      %v3602 = vpop.f32.mrf.mxu0
      %v3603 = vadd.f32 0.0, %v3602
      %3604 = vdwg.mxu0
      %3605 = vmatprep.subr.mxu0 0.0
      %3606 = vmatpush1.xpose.msra.mxu0 %v3514
      %3607 = vmatprep.subr.mxu0 0.0
      %3608 = vmatpush1.xpose.msra.mxu0 %v3511
      %3609 = vmatprep.subr.mxu0 0.0
      %3610 = vmatpush1.xpose.msra.mxu0 %v3508
      %3611 = vmatprep.subr.mxu0 0.0
      %3612 = vmatpush1.xpose.msra.mxu0 %v3505
      %3613 = vmatprep.subr.mxu0 0.0
      %3614 = vmatpush1.xpose.msra.mxu0 %v3502
      %3615 = vmatprep.subr.mxu0 0.0
      %3616 = vmatpush1.xpose.msra.mxu0 %v3499
      %3617 = vmatprep.subr.mxu0 0.0
      %3618 = vmatpush1.xpose.msra.mxu0 %v3496
      %3619 = vmatprep.subr.mxu0 0.0
      %3620 = vmatpush1.xpose.msra.mxu0 %v3493
      %3621 = vmatprep.subr.mxu0 0.0
      %3622 = vmatpush1.xpose.msra.mxu0 %v3490
      %3623 = vmatprep.subr.mxu0 0.0
      %3624 = vmatpush1.xpose.msra.mxu0 %v3487
      %3625 = vmatprep.subr.mxu0 0.0
      %3626 = vmatpush1.xpose.msra.mxu0 %v3484
      %3627 = vmatprep.subr.mxu0 0.0
      %3628 = vmatpush1.xpose.msra.mxu0 %v3481
      %3629 = vmatprep.subr.mxu0 0.0
      %3630 = vmatpush1.xpose.msra.mxu0 %v3478
      %3631 = vmatprep.subr.mxu0 0.0
      %3632 = vmatpush1.xpose.msra.mxu0 %v3475
      %3633 = vmatprep.subr.mxu0 0.0
      %3634 = vmatpush1.xpose.msra.mxu0 %v3472
      %3635 = vmatprep.subr.mxu0 0.0
      %3636 = vmatpush1.xpose.msra.mxu0 %v3469
      %3637 = vmatprep.subr.mxu0 0.0
      %3638 = vmatpush2.xpose.msra.mxu0 0.0
      %3639 = vmatprep.subr.mxu0 0.0
      %3640 = vmatpush2.xpose.msra.mxu0 0.0
      %3641 = vmatprep.subr.mxu0 0.0
      %3642 = vmatpush2.xpose.msra.mxu0 0.0
      %3643 = vmatprep.subr.mxu0 0.0
      %3644 = vmatpush2.xpose.msra.mxu0 0.0
      %3645 = vmatprep.subr.mxu0 0.0
      %3646 = vmatpush2.xpose.msra.mxu0 0.0
      %3647 = vmatprep.subr.mxu0 0.0
      %3648 = vmatpush2.xpose.msra.mxu0 0.0
      %3649 = vmatprep.subr.mxu0 0.0
      %3650 = vmatpush2.xpose.msra.mxu0 0.0
      %3651 = vmatprep.subr.mxu0 0.0
      %3652 = vmatpush2.xpose.msra.mxu0 0.0
      %3653 = vmatprep.subr.mxu0 0.0
      %3654 = vmatpush2.xpose.msra.mxu0 0.0
      %3655 = vmatprep.subr.mxu0 0.0
      %3656 = vmatpush2.xpose.msra.mxu0 0.0
      %3657 = vmatprep.subr.mxu0 0.0
      %3658 = vmatpush2.xpose.msra.mxu0 0.0
      %3659 = vmatprep.subr.mxu0 0.0
      %3660 = vmatpush2.xpose.msra.mxu0 0.0
      %3661 = vmatprep.subr.mxu0 0.0
      %3662 = vmatpush2.xpose.msra.mxu0 0.0
      %3663 = vmatprep.subr.mxu0 0.0
      %3664 = vmatpush2.xpose.msra.mxu0 0.0
      %3665 = vmatprep.subr.mxu0 0.0
      %3666 = vmatpush2.xpose.msra.mxu0 0.0
      %3667 = vmatprep.subr.mxu0 0.0
      %3668 = vmatpush2.xpose.msra.mxu0 0.0
      %3669 = vmatprep.mubr.f32.mxu0 0.0
      %3670 = vmatmul.mubr.f32.gmra.mxu0 %v3361
      %v3671 = vpop.f32.mrf.mxu0
      %v3672 = vadd.f32 0.0, %v3671
      %v3673 = vpop.f32.mrf.mxu0
      %3674 = vmatprep.mubr.f32.mxu0 0.0
      %3675 = vmatmul.mubr.f32.gmra.mxu0 %v3364
      %v3676 = vpop.f32.mrf.mxu0
      %v3677 = vadd.f32 0.0, %v3676
      %v3678 = vpop.f32.mrf.mxu0
      %3679 = vmatprep.mubr.f32.mxu0 0.0
      %3680 = vmatmul.mubr.f32.gmra.mxu0 %v3367
      %v3681 = vpop.f32.mrf.mxu0
      %v3682 = vadd.f32 0.0, %v3681
      %v3683 = vpop.f32.mrf.mxu0
      %3684 = vmatprep.mubr.f32.mxu0 0.0
      %3685 = vmatmul.mubr.f32.gmra.mxu0 %v3370
      %v3686 = vpop.f32.mrf.mxu0
      %v3687 = vadd.f32 0.0, %v3686
      %v3688 = vpop.f32.mrf.mxu0
      %3689 = vdwg.mxu0
      %v3690 = vadd.f32 %v3295, %v3583
      %v3691 = vadd.f32 %v3296, %v3585
      %v3692 = vadd.f32 %v3297, %v3672
      %v3693 = vadd.f32 %v3298, %v3589
      %v3694 = vadd.f32 %v3299, %v3591
      %v3695 = vadd.f32 %v3300, %v3677
      %v3696 = vadd.f32 %v3301, %v3595
      %v3697 = vadd.f32 %v3302, %v3597
      %v3698 = vadd.f32 %v3303, %v3682
      %v3699 = vadd.f32 %v3304, %v3601
      %v3700 = vadd.f32 %v3305, %v3603
      %v3701 = vadd.f32 %v3306, %v3687
      %v3702 = vld [vmem:[%s2] sm:$0x7]
      %v3704 = vlaneseq
      %v3705 = vshrl.u32 %v3704, 7
      %v3706 = vsub.s32 0, %v3705
      %v3707 = vrot.slane %v3702, %v3706
      %v3708 = vlaneseq
      %v3709 = vshrl.u32 %v3708, 7
      %v3710 = vsub.s32 1, %v3709
      %v3711 = vrot.slane %v3702, %v3710
      %v3712 = vlaneseq
      %v3713 = vshrl.u32 %v3712, 7
      %v3714 = vsub.s32 2, %v3713
      %v3715 = vrot.slane %v3702, %v3714
      %v3719 = vmul.f32 %v3690, %v3707
      %v3720 = vmul.f32 %v3691, %v3711
      %v3721 = vmul.f32 %v3692, %v3715
      %v3722 = vmul.f32 %v3693, %v3707
      %v3723 = vmul.f32 %v3694, %v3711
      %v3724 = vmul.f32 %v3695, %v3715
      %v3725 = vmul.f32 %v3696, %v3707
      %v3726 = vmul.f32 %v3697, %v3711
      %v3727 = vmul.f32 %v3698, %v3715
      %v3728 = vmul.f32 %v3699, %v3707
      %v3729 = vmul.f32 %v3700, %v3711
      %v3730 = vmul.f32 %v3701, %v3715
      %v3731 = vadd.f32 %v3719, %v3720
      %v3732 = vadd.f32 %v3731, %v3721
      %3733 = vadd.xlane.f32.xlu0 %v3732
      %v3734 = vpop.xlane.xlu0 %3733
      %v3735 = vadd.f32 %v3722, %v3723
      %v3736 = vadd.f32 %v3735, %v3724
      %3737 = vadd.xlane.f32.xlu0 %v3736
      %v3738 = vpop.xlane.xlu0 %3737
      %v3739 = vadd.f32 %v3725, %v3726
      %v3740 = vadd.f32 %v3739, %v3727
      %3741 = vadd.xlane.f32.xlu0 %v3740
      %v3742 = vpop.xlane.xlu0 %3741
      %v3743 = vadd.f32 %v3728, %v3729
      %v3744 = vadd.f32 %v3743, %v3730
      %3745 = vadd.xlane.f32.xlu0 %v3744
      %v3746 = vpop.xlane.xlu0 %3745
      %v3747 = vmul.f32 %v3690, %v3690
      %v3748 = vmul.f32 %v3691, %v3691
      %v3749 = vmul.f32 %v3692, %v3692
      %v3750 = vmul.f32 %v3693, %v3693
      %v3751 = vmul.f32 %v3694, %v3694
      %v3752 = vmul.f32 %v3695, %v3695
      %v3753 = vmul.f32 %v3696, %v3696
      %v3754 = vmul.f32 %v3697, %v3697
      %v3755 = vmul.f32 %v3698, %v3698
      %v3756 = vmul.f32 %v3699, %v3699
      %v3757 = vmul.f32 %v3700, %v3700
      %v3758 = vmul.f32 %v3701, %v3701
      %v3759 = vmul.f32 %v3747, %v3707
      %v3760 = vmul.f32 %v3748, %v3711
      %v3761 = vmul.f32 %v3749, %v3715
      %v3762 = vmul.f32 %v3750, %v3707
      %v3763 = vmul.f32 %v3751, %v3711
      %v3764 = vmul.f32 %v3752, %v3715
      %v3765 = vmul.f32 %v3753, %v3707
      %v3766 = vmul.f32 %v3754, %v3711
      %v3767 = vmul.f32 %v3755, %v3715
      %v3768 = vmul.f32 %v3756, %v3707
      %v3769 = vmul.f32 %v3757, %v3711
      %v3770 = vmul.f32 %v3758, %v3715
      %v3771 = vadd.f32 %v3759, %v3760
      %v3772 = vadd.f32 %v3771, %v3761
      %3773 = vadd.xlane.f32.xlu0 %v3772
      %v3774 = vpop.xlane.xlu0 %3773
      %v3775 = vadd.f32 %v3762, %v3763
      %v3776 = vadd.f32 %v3775, %v3764
      %3777 = vadd.xlane.f32.xlu0 %v3776
      %v3778 = vpop.xlane.xlu0 %3777
      %v3779 = vadd.f32 %v3765, %v3766
      %v3780 = vadd.f32 %v3779, %v3767
      %3781 = vadd.xlane.f32.xlu0 %v3780
      %v3782 = vpop.xlane.xlu0 %3781
      %v3783 = vadd.f32 %v3768, %v3769
      %v3784 = vadd.f32 %v3783, %v3770
      %3785 = vadd.xlane.f32.xlu0 %v3784
      %v3786 = vpop.xlane.xlu0 %3785
      %v3787 = vmul.f32 %v3734, 0.00390625
      %v3788 = vmul.f32 %v3738, 0.00390625
      %v3789 = vmul.f32 %v3742, 0.00390625
      %v3790 = vmul.f32 %v3746, 0.00390625
      %v3791 = vmul.f32 %v3774, 0.00390625
      %v3792 = vmul.f32 %v3778, 0.00390625
      %v3793 = vmul.f32 %v3782, 0.00390625
      %v3794 = vmul.f32 %v3786, 0.00390625
      %v3795 = vmul.f32 %v3787, %v3787
      %v3796 = vmul.f32 %v3788, %v3788
      %v3797 = vmul.f32 %v3789, %v3789
      %v3798 = vmul.f32 %v3790, %v3790
      %v3799 = vsub.f32 %v3791, %v3795
      %v3800 = vsub.f32 %v3792, %v3796
      %v3801 = vsub.f32 %v3793, %v3797
      %v3802 = vsub.f32 %v3794, %v3798
      %v3803 = vmax.f32 %v3799, 0.0
      %v3804 = vmax.f32 %v3800, 0.0
      %v3805 = vmax.f32 %v3801, 0.0
      %v3806 = vmax.f32 %v3802, 0.0
      %v3807 = vsub.f32 %v3690, %v3787
      %v3808 = vsub.f32 %v3691, %v3787
      %v3809 = vsub.f32 %v3692, %v3787
      %v3810 = vsub.f32 %v3693, %v3788
      %v3811 = vsub.f32 %v3694, %v3788
      %v3812 = vsub.f32 %v3695, %v3788
      %v3813 = vsub.f32 %v3696, %v3789
      %v3814 = vsub.f32 %v3697, %v3789
      %v3815 = vsub.f32 %v3698, %v3789
      %v3816 = vsub.f32 %v3699, %v3790
      %v3817 = vsub.f32 %v3700, %v3790
      %v3818 = vsub.f32 %v3701, %v3790
      %v3819 = vadd.f32 %v3803, 1e-05
      %v3820 = vadd.f32 %v3804, 1e-05
      %v3821 = vadd.f32 %v3805, 1e-05
      %v3822 = vadd.f32 %v3806, 1e-05
      %v3823 = vrsqrt.pop %v3819
      %v3824 = vrsqrt.pop %v3820
      %v3825 = vrsqrt.pop %v3821
      %v3826 = vrsqrt.pop %v3822
      %v3827 = vmul.f32 %v3807, %v3823
      %v3828 = vmul.f32 %v3808, %v3823
      %v3829 = vmul.f32 %v3809, %v3823
      %v3830 = vmul.f32 %v3810, %v3824
      %v3831 = vmul.f32 %v3811, %v3824
      %v3832 = vmul.f32 %v3812, %v3824
      %v3833 = vmul.f32 %v3813, %v3825
      %v3834 = vmul.f32 %v3814, %v3825
      %v3835 = vmul.f32 %v3815, %v3825
      %v3836 = vmul.f32 %v3816, %v3826
      %v3837 = vmul.f32 %v3817, %v3826
      %v3838 = vmul.f32 %v3818, %v3826
      %v3839 = vmax.f32 %v3827, 0.0
      %v3840 = vmax.f32 %v3828, 0.0
      %v3841 = vmax.f32 %v3829, 0.0
      %v3842 = vmax.f32 %v3830, 0.0
      %v3843 = vmax.f32 %v3831, 0.0
      %v3844 = vmax.f32 %v3832, 0.0
      %v3845 = vmax.f32 %v3833, 0.0
      %v3846 = vmax.f32 %v3834, 0.0
      %v3847 = vmax.f32 %v3835, 0.0
      %v3848 = vmax.f32 %v3836, 0.0
      %v3849 = vmax.f32 %v3837, 0.0
      %v3850 = vmax.f32 %v3838, 0.0
      %3851 = vst [vmem:[%s170] sm:$0xff] %v3839
      %3852 = vst [vmem:[%s170 + $0x8] sm:$0xff] %v3840
      %3853 = vst [vmem:[%s170 + $0x10] sm:$0xff] %v3841
      %3854 = vst [vmem:[%s170 + $0x18] sm:$0xff] %v3842
      %3855 = vst [vmem:[%s170 + $0x20] sm:$0xff] %v3843
      %3856 = vst [vmem:[%s170 + $0x28] sm:$0xff] %v3844
      %3857 = vst [vmem:[%s170 + $0x30] sm:$0xff] %v3845
      %3858 = vst [vmem:[%s170 + $0x38] sm:$0xff] %v3846
      %3859 = vst [vmem:[%s170 + $0x40] sm:$0xff] %v3847
      %3860 = vst [vmem:[%s170 + $0x48] sm:$0xff] %v3848
      %3861 = vst [vmem:[%s170 + $0x50] sm:$0xff] %v3849
      %3862 = vst [vmem:[%s170 + $0x58] sm:$0xff] %v3850
      %p3863 = scmp.lt.s32.totalorder %s14, 1
      %s3864 = scalar_select %p3863, %s14, 1
      %s3865 = smul.addr %s3864, 12
      %s3866 = smul.addr %s3865, 8
      %s3867 = scalar_lea.vmem %s3, %s3866
      // Predicated region
      $region33: #{relu_ins_conv2d.1} parent=31 // pred_check
        %p3868 = pneg %p100
      $region34: #{relu_ins_conv2d.1} parent=31 // pred_check_branch
        %3870 = sbr.rel (%p3868) target = $region36
      $region35: #{relu_ins_conv2d.1} parent=31 // pred_region
        _
      $region36: #{relu_ins_conv2d.1} parent=31 // pred_fallthru
        _
    $region32: #{relu_ins_conv2d.1} parent=5 // pred_fallthru
      _
    %p3871 = scmp.le.s32.totalorder 2, %s9
    // Predicated region
    $region37: #{relu_ins_conv2d.1} parent=5 // pred_check
      %p3872 = pneg %p3871
    $region38: #{relu_ins_conv2d.1} parent=5 // pred_check_branch
      %3874 = sbr.rel (%p3872) target = $region40
    $region39: #{relu_ins_conv2d.1} parent=5 // pred_region
      %s3875 = ssub.s32 %s9, 2
      // Predicated region
      $region41: #{relu_ins_conv2d.1} parent=39 // pred_check
        %p3876 = pneg %p106
      $region42: #{relu_ins_conv2d.1} parent=39 // pred_check_branch
        %3878 = sbr.rel (%p3876) target = $region44
      $region43: #{relu_ins_conv2d.1} parent=39 // pred_region
        %p3879 = scmp.lt.s32.totalorder %s15, 1
        %s3880 = scalar_select %p3879, %s15, 1
        %s3881 = smul.addr %s3880, 12
        %s3882 = smul.addr %s3881, 8
        %s3883 = scalar_lea.vmem %s3, %s3882
      $region44: #{relu_ins_conv2d.1} parent=39 // pred_fallthru
        _
    $region40: #{relu_ins_conv2d.1} parent=5 // pred_fallthru
      _
  $region6: #{relu_ins_conv2d.1} parent=0 // loop_footer
    %s13 = sadd.s32 1, %s9
  $region7: #{relu_ins_conv2d.1} parent=0 // loop_footer_branch
    %8 = sbr.rel target = $region3
  $region8: #{relu_ins_conv2d.1} parent=0 // loop_exit
    _

</llo_original>
